<compile_context>
chip_gen: v7x
topology: tpu7x:2x2x1
jax: 0.10.0
libtpu: 0.0.40
codegen_flags: <defaults>
</compile_context>

<pallas_src>
from functools import partial

import jax
import jax.numpy as jnp
from jax import lax
from jax.experimental import pallas as pl
from jax.experimental.pallas import tpu as pltpu

# --- synthetic "const" values (module constants) -----------------------------
N_USERS = 64
N_ITEMS = 128
N_LATENT_DIMS = 32

# Crossover below which the fused-XLA gather+mul+reduce wins over a kernel
# launch.  TODO(synk): re-benchmark this crossover per chip generation.
_PALLAS_MIN_SAMPLES = 8192

# Upper bound on samples per grid step (lane-dense, multiple of 128).
_BLOCK_N_MAX = 2048


def _choose_block_n(n, block_n_max=_BLOCK_N_MAX):
    """Pick a lane-dense block size (multiple of 128).

    Prefer >= 2 grid blocks so a v7x megacore can shard the "parallel" axis
    across both TensorCores, but cap the block so each step still amortizes
    the ~0.35 us/step fixed overhead with real work.
    """
    n128 = ((n + 127) // 128) * 128
    if n128 <= 256:
        return n128
    half = ((n128 + 255) // 256) * 128          # ~ceil(n/2), rounded up to 128
    return min(block_n_max, half)


# --- Pallas kernel: fused one-hot gather (single MXU matmul) + per-sample dot -
def _svd_mf_kernel(uids_ref, iidsh_ref, w_ref, o_ref):
    # uids_ref : (1, BN) int32 user ids (samples on lanes).
    # iidsh_ref: (1, BN) int32 item ids, already offset by N_USERS.
    # w_ref    : (2D, E) f32 block-diagonal combined transposed table,
    #            E = N_USERS + N_ITEMS.  Constant block index -> DMA'd once.
    # o_ref    : (1, BN) f32 lane-dense per-sample dot products.
    u_ids = uids_ref[...]                      # (1, BN)
    i_ids = iidsh_ref[...]                     # (1, BN), shifted into [N_USERS, E)
    bn = u_ids.shape[1]
    two_d, e = w_ref.shape
    d = two_d // 2

    # Stacked one-hot: one column per sample with two ones (its user row and
    # its shifted item row).  The block-diagonal W separates the two halves.
    rows = lax.broadcasted_iota(jnp.int32, (e, bn), 0)
    onehot = ((rows == u_ids) | (rows == i_ids)).astype(jnp.float32)   # (E, BN)

    # Single fused gather on the MXU: (2D, E) @ (E, BN) -> (2D, BN).
    # Rows [0, D) are the user embeddings, rows [D, 2D) the item embeddings.
    # One-hot selection + HIGHEST precision keeps it numerically exact.
    g = jnp.dot(w_ref[...], onehot,
                preferred_element_type=jnp.float32,
                precision=lax.Precision.HIGHEST)                       # (2D, BN)

    # Per-sample dot: elementwise multiply the two halves, reduce over D
    # (sublane axis), store a lane-dense (1, BN) block (unmasked full-lane vst).
    o_ref[...] = jnp.sum(g[:d] * g[d:], axis=0, keepdims=True)


@partial(jax.jit, static_argnames=("n_users",))
def svd_mf_dot_pallas(w_combined, u_ids, i_ids, *, n_users):
    """Fused gather + row-wise dot product.

    w_combined: (2D, n_users + n_items) f32 block-diagonal transposed table.
    u_ids/i_ids: (N,) int.  Returns (N,) f32.
    All prep (cast/shift/pad/reshape) runs inside this jit, fused with the call.
    """
    n = u_ids.shape[0]
    bn = _choose_block_n(n)
    n_pad = ((n + bn - 1) // bn) * bn
    pad = n_pad - n

    u32 = jnp.asarray(u_ids, jnp.int32)
    i32 = jnp.asarray(i_ids, jnp.int32) + n_users   # shift into item rows of W
    if pad:
        # Pad ids point at user row 0 / item row 0; padded lanes compute real
        # (discarded) values and are sliced off below.
        u32 = jnp.pad(u32, (0, pad))
        i32 = jnp.pad(i32, (0, pad), constant_values=n_users)
    u2 = u32.reshape(1, n_pad)
    i2 = i32.reshape(1, n_pad)

    grid = (n_pad // bn,)
    out = pl.pallas_call(
        _svd_mf_kernel,
        out_shape=jax.ShapeDtypeStruct((1, n_pad), jnp.float32),
        grid=grid,
        in_specs=[
            pl.BlockSpec((1, bn), lambda s: (0, s)),            # u_ids block
            pl.BlockSpec((1, bn), lambda s: (0, s)),            # shifted i_ids
            # Full combined table; constant block index => fetched once, not
            # re-DMA'd every grid step.
            pl.BlockSpec(w_combined.shape, lambda s: (0, 0)),
        ],
        out_specs=pl.BlockSpec((1, bn), lambda s: (0, s)),
        compiler_params=pltpu.CompilerParams(
            dimension_semantics=("parallel",),
        ),
    )(u2, i2, w_combined)
    return out[0, :n]


@jax.jit
def _svd_mf_dot_xla(u_table, i_table, u_ids, i_ids):
    # Small/medium-batch path: let XLA fuse gather + multiply + reduce.
    u = jnp.take(u_table, u_ids, axis=0)
    i = jnp.take(i_table, i_ids, axis=0)
    return jnp.sum(u * i, axis=-1)


# --- module-equivalent wrapper ------------------------------------------------
class SVD_MF:
    def __init__(self, n_latent_dims, key):
        self.n_latent_dims = n_latent_dims
        ku, ki = jax.random.split(key)
        # nn.init.normal_(std=0.01) equivalent, deterministic via PRNGKey.
        self.u_embeddings = 0.01 * jax.random.normal(
            ku, (N_USERS, n_latent_dims), dtype=jnp.float32
        )
        self.i_embeddings = 0.01 * jax.random.normal(
            ki, (N_ITEMS, n_latent_dims), dtype=jnp.float32
        )
        # One-time layout prep (outside the hot path): block-diagonal combined
        # transposed table  W = [[u^T, 0], [0, i^T]]  (2D, N_USERS + N_ITEMS).
        d = n_latent_dims
        w = jnp.zeros((2 * d, N_USERS + N_ITEMS), jnp.float32)
        w = w.at[:d, :N_USERS].set(self.u_embeddings.T)
        w = w.at[d:, N_USERS:].set(self.i_embeddings.T)
        self.w_combined = w

    def __call__(self, u_ids, i_ids):
        n = u_ids.shape[0]
        if n < _PALLAS_MIN_SAMPLES:
            return _svd_mf_dot_xla(self.u_embeddings, self.i_embeddings,
                                   u_ids, i_ids)
        return svd_mf_dot_pallas(self.w_combined, u_ids, i_ids,
                                 n_users=N_USERS)


if __name__ == "__main__":
    key = jax.random.PRNGKey(0)
    k_model, k_u, k_i = jax.random.split(key, 3)

    model = SVD_MF(N_LATENT_DIMS, k_model)

    # Small, deterministic inputs.  At this size _choose_block_n gives 2 grid
    # blocks of 512 samples each (both TensorCores busy on v7x).
    n_samples = 1024
    u_ids = jax.random.randint(k_u, (n_samples,), 0, N_USERS, dtype=jnp.int32)
    i_ids = jax.random.randint(k_i, (n_samples,), 0, N_ITEMS, dtype=jnp.int32)

    # Reference (same semantics as torch.bmm(u, i).view(-1)).
    u_emb = jnp.take(model.u_embeddings, u_ids, axis=0)
    i_emb = jnp.take(model.i_embeddings, i_ids, axis=0)
    ref = jnp.sum(u_emb * i_emb, axis=-1)

    # Exercise the Pallas path directly (the class would route N=1024 to the
    # XLA fallback given the raised crossover).
    out_pallas = svd_mf_dot_pallas(model.w_combined, u_ids, i_ids,
                                   n_users=N_USERS)
    out_pallas = jax.block_until_ready(out_pallas)
    assert out_pallas.shape == (n_samples,)
    assert jnp.allclose(out_pallas, ref, atol=1e-6, rtol=1e-5)

    # Exercise the module __call__ (jitted XLA fallback path at this size).
    out_model = model(u_ids, i_ids)
    out_model = jax.block_until_ready(out_model)
    assert jnp.allclose(out_model, ref, atol=1e-6, rtol=1e-5)

    # Tiny batch through the module as well.
    small = jax.block_until_ready(model(u_ids[:16], i_ids[:16]))
    assert jnp.allclose(small, ref[:16], atol=1e-6, rtol=1e-5)

    print("KERNEL_OK")
</pallas_src>

<mosaic_0001>
module attributes {stable_mosaic.version = 11 : i64} {
  func.func @_svd_mf_kernel(%arg0: i32, %arg1: memref<1x512xi32, #tpu.memory_space<vmem>>, %arg2: memref<1x512xi32, #tpu.memory_space<vmem>>, %arg3: memref<64x192xf32, #tpu.memory_space<vmem>>, %arg4: memref<1x512xf32, #tpu.memory_space<vmem>>) attributes {dimension_semantics = [#tpu.dimension_semantics<parallel>], iteration_bounds = array<i64: 2>, scalar_prefetch = 0 : i64, scratch_operands = 0 : i64, tpu.core_type = #tpu.core_type<tc>, window_params = [{transform_indices = @transform_0, window_bounds = array<i64: 1, 512>}, {transform_indices = @transform_1, window_bounds = array<i64: 1, 512>}, {pipeline_mode = #tpu.pipeline_mode<synchronous>, transform_indices = @transform_2, window_bounds = array<i64: 64, 192>}, {transform_indices = @transform_3, window_bounds = array<i64: 1, 512>}]} {
    %c0 = arith.constant 0 : index
    %c0_0 = arith.constant 0 : index
    %0 = vector.load %arg1[%c0, %c0_0] : memref<1x512xi32, #tpu.memory_space<vmem>>, vector<1x512xi32>
    %c0_1 = arith.constant 0 : index
    %c0_2 = arith.constant 0 : index
    %1 = vector.load %arg2[%c0_1, %c0_2] : memref<1x512xi32, #tpu.memory_space<vmem>>, vector<1x512xi32>
    %2 = tpu.iota {dimensions = array<i32: 0>} : vector<192x512xi32>
    %3 = vector.broadcast %0 : vector<1x512xi32> to vector<192x512xi32>
    %4 = arith.cmpi eq, %2, %3 : vector<192x512xi32>
    %5 = vector.broadcast %1 : vector<1x512xi32> to vector<192x512xi32>
    %6 = arith.cmpi eq, %2, %5 : vector<192x512xi32>
    %7 = arith.ori %4, %6 : vector<192x512xi1>
    %8 = arith.extui %7 : vector<192x512xi1> to vector<192x512xi32>
    %9 = arith.sitofp %8 : vector<192x512xi32> to vector<192x512xf32>
    %c0_3 = arith.constant 0 : index
    %c0_4 = arith.constant 0 : index
    %10 = vector.load %arg3[%c0_3, %c0_4] : memref<64x192xf32, #tpu.memory_space<vmem>>, vector<64x192xf32>
    %cst = arith.constant dense<0.000000e+00> : vector<64x512xf32>
    %11 = tpu.matmul %10, %9, %cst {dimension_numbers = #tpu.dot_dimension_numbers<[1], [0], [0], [1], [0, 0, 1, 1], [], []>, precision = #tpu.contract_precision<fp32>} : vector<64x192xf32>, vector<192x512xf32>, vector<64x512xf32> -> vector<64x512xf32>
    %12 = vector.extract_strided_slice %11 {offsets = [0, 0], sizes = [32, 512], strides = [1, 1]} : vector<64x512xf32> to vector<32x512xf32>
    %13 = vector.extract_strided_slice %11 {offsets = [32, 0], sizes = [32, 512], strides = [1, 1]} : vector<64x512xf32> to vector<32x512xf32>
    %14 = arith.mulf %12, %13 : vector<32x512xf32>
    %cst_5 = arith.constant dense<0.000000e+00> : vector<512xf32>
    %15 = vector.multi_reduction <add>, %14, %cst_5 [0] : vector<32x512xf32> to vector<512xf32>
    %16 = vector.shape_cast %15 : vector<512xf32> to vector<1x512xf32>
    %c0_6 = arith.constant 0 : index
    %c0_7 = arith.constant 0 : index
    %17 = vector.load %arg4[%c0_6, %c0_7] : memref<1x512xf32, #tpu.memory_space<vmem>>, vector<1x512xf32>
    tpu.vector_store %arg4[%c0_6, %c0_7], %16 {strides = array<i32>} : memref<1x512xf32, #tpu.memory_space<vmem>>, vector<1x512xf32>,
    return
  }
  func.func @transform_0(%arg0: i32) -> (i32, i32) {
    %c0_i32 = arith.constant 0 : i32
    %c0_i32_0 = arith.constant 0 : i32
    return %c0_i32, %arg0 : i32, i32
  }
  func.func @transform_1(%arg0: i32) -> (i32, i32) {
    %c0_i32 = arith.constant 0 : i32
    %c0_i32_0 = arith.constant 0 : i32
    return %c0_i32, %arg0 : i32, i32
  }
  func.func @transform_2(%arg0: i32) -> (i32, i32) {
    %c0_i32 = arith.constant 0 : i32
    %c0_i32_0 = arith.constant 0 : i32
    %c0_i32_1 = arith.constant 0 : i32
    return %c0_i32, %c0_i32_0 : i32, i32
  }
  func.func @transform_3(%arg0: i32) -> (i32, i32) {
    %c0_i32 = arith.constant 0 : i32
    %c0_i32_0 = arith.constant 0 : i32
    return %c0_i32, %arg0 : i32, i32
  }
}

</mosaic_0001>

<llo_original>
// kernel: svd_mf_dot_pallas.1
$region0: #{svd_mf_dot_pallas.1}
  #allocation0 [shape = 'u32[]', space=smem, size = 0x4, offset = 0x4, fixed_abs, tag = 'smem constant byte address 0x4 - core index']
  #allocation1 [shape = 'u32[144,128]{1,0:T(1,128)}', space=vmem, size = 0x12000, scoped, tag = 'internal scratch']
  %s0 = inlined_call_operand.vmem [shape: s32[1,1024], index: 0, kind: input, shape index: {}]
  %s1 = inlined_call_operand.vmem [shape: s32[1,1024], index: 1, kind: input, shape index: {}]
  %s2 = inlined_call_operand.hbm [shape: f32[64,192], index: 2, kind: input, shape index: {}]
  %s3 = inlined_call_operand.hbm [shape: f32[1,1024], index: 3, kind: output, shape index: {}]
  %s4 = sld [smem:[#allocation0]]
  $region49: #{svd_mf_dot_pallas.1} parent=0
    _
  %s6 = ssub.s32 1, %s4
  %s7 = scalar_select 0, %s6, %s4
  $region1: #{svd_mf_dot_pallas.1} parent=0
    #allocation2 [shape = 'u8[65536]{0}', space=vmem, size = 0x10000, scoped, tag = 'input window, operand 2, single buffered']
    #allocation3 [shape = 's32[2]{0}', space=sflag, size = 0x8, scoped, tag = 'scoped memory for svd_mf_dot_pallas.1']
    #allocation4 [shape = 's32[2]{0}', space=sflag, size = 0x8, scoped, tag = 'scoped memory for svd_mf_dot_pallas.1']
    #allocation5 [shape = 'u8[4096]{0}', space=vmem, size = 0x1000, scoped, tag = 'output window, operand 0']
    %8 = vsyncpa [#allocation3], 0
    %9 = vsyncpa [#allocation4], 0
    %s10 = scalar_lea.sflag [#allocation4], 1
    %11 = vsyncpa %s10, 0
    loop: start=0, step=1, limit=4
    $region2: #{svd_mf_dot_pallas.1} parent=1 // loop_pre_header
      _
    $region3: #{svd_mf_dot_pallas.1} parent=1 // loop_header
      %s13 = sphi 0, %s17
      %p14 = scmp.ge.s32.totalorder %s13, 4
      %s23 = sphi 0, %s25
      %s26 = sphi 0, %s23
      %s27 = sphi 0, %s26
      %s43 = sphi 0, %s27
      %s49 = sphi 0, %s51
      %s52 = sphi 0, %s49
      %s53 = sphi 0, %s52
      %s69 = sphi 0, %s53
      %s73 = sphi 0, %s73
      %s75 = sphi 0, %s73
      %s76 = sphi 0, %s75
      %s90 = sphi 0, %s76
      %s96 = sphi 0, %s98
      %s99 = sphi 0, %s96
      %s100 = sphi 0, %s99
      %s116 = sphi 0, %s100
    $region4: #{svd_mf_dot_pallas.1} parent=1 // loop_header_branch
      %16 = sbr.rel (%p14) target = $region8
    $region5: #{svd_mf_dot_pallas.1} parent=1 // loop_body
      %s18 = ssub.s32 %s13, 1
      %s19 = ssub.s32 %s13, 2
      %s20 = sadd.s32 %s13, 1
      %s21 = ssub.s32 %s13, %s20
      %p22 = scmp.eq.s32.totalorder %s21, 0
      %s24 = sadd.s32 %s23, 1
      %s25 = scalar_select %p22, %s23, %s24
      %p28 = pneg %p22
      %p29 = scmp.eq.s32.totalorder %s13, 1
      %p30 = por %p28, %p29
      %p31 = scmp.ne.s32.totalorder %s23, %s26
      %p32 = scmp.eq.s32.totalorder %s13, 0
      %p33 = por %p31, %p32
      %p34 = scmp.ne.s32.totalorder %s23, %s26
      %p35 = scmp.eq.s32.totalorder %s18, 1
      %p36 = por %p34, %p35
      %p37 = scmp.ne.s32.totalorder %s26, %s27
      %p38 = scmp.eq.s32.totalorder %s18, 0
      %p39 = por %p37, %p38
      %p40 = scmp.ne.s32.totalorder %s26, %s27
      %p41 = scmp.eq.s32.totalorder %s19, 1
      %p42 = por %p40, %p41
      %p44 = scmp.ne.s32.totalorder %s27, %s43
      %p45 = scmp.eq.s32.totalorder %s19, 0
      %p46 = por %p44, %p45
      %s47 = ssub.s32 %s13, %s20
      %p48 = scmp.eq.s32.totalorder %s47, 0
      %s50 = sadd.s32 %s49, 1
      %s51 = scalar_select %p48, %s49, %s50
      %p54 = pneg %p48
      %p55 = scmp.eq.s32.totalorder %s13, 1
      %p56 = por %p54, %p55
      %p57 = scmp.ne.s32.totalorder %s49, %s52
      %p58 = scmp.eq.s32.totalorder %s13, 0
      %p59 = por %p57, %p58
      %p60 = scmp.ne.s32.totalorder %s49, %s52
      %p61 = scmp.eq.s32.totalorder %s18, 1
      %p62 = por %p60, %p61
      %p63 = scmp.ne.s32.totalorder %s52, %s53
      %p64 = scmp.eq.s32.totalorder %s18, 0
      %p65 = por %p63, %p64
      %p66 = scmp.ne.s32.totalorder %s52, %s53
      %p67 = scmp.eq.s32.totalorder %s19, 1
      %p68 = por %p66, %p67
      %p70 = scmp.ne.s32.totalorder %s53, %s69
      %p71 = scmp.eq.s32.totalorder %s19, 0
      %p72 = por %p70, %p71
      %s74 = sadd.s32 %s73, 1
      %p77 = scmp.eq.s32.totalorder %s13, 1
      %p78 = scmp.ne.s32.totalorder %s73, %s75
      %p79 = scmp.eq.s32.totalorder %s13, 0
      %p80 = por %p78, %p79
      %p81 = scmp.ne.s32.totalorder %s73, %s75
      %p82 = scmp.eq.s32.totalorder %s18, 1
      %p83 = por %p81, %p82
      %p84 = scmp.ne.s32.totalorder %s75, %s76
      %p85 = scmp.eq.s32.totalorder %s18, 0
      %p86 = por %p84, %p85
      %p87 = scmp.ne.s32.totalorder %s75, %s76
      %p88 = scmp.eq.s32.totalorder %s19, 1
      %p89 = por %p87, %p88
      %p91 = scmp.ne.s32.totalorder %s76, %s90
      %p92 = scmp.eq.s32.totalorder %s19, 0
      %p93 = por %p91, %p92
      %s94 = ssub.s32 %s13, %s20
      %p95 = scmp.eq.s32.totalorder %s94, 0
      %s97 = sadd.s32 %s96, 1
      %s98 = scalar_select %p95, %s96, %s97
      %p101 = pneg %p95
      %p102 = scmp.eq.s32.totalorder %s13, 1
      %p103 = por %p101, %p102
      %p104 = scmp.ne.s32.totalorder %s96, %s99
      %p105 = scmp.eq.s32.totalorder %s13, 0
      %p106 = por %p104, %p105
      %p107 = scmp.ne.s32.totalorder %s96, %s99
      %p108 = scmp.eq.s32.totalorder %s18, 1
      %p109 = por %p107, %p108
      %p110 = scmp.ne.s32.totalorder %s99, %s100
      %p111 = scmp.eq.s32.totalorder %s18, 0
      %p112 = por %p110, %p111
      %p113 = scmp.ne.s32.totalorder %s99, %s100
      %p114 = scmp.eq.s32.totalorder %s19, 1
      %p115 = por %p113, %p114
      %p117 = scmp.ne.s32.totalorder %s100, %s116
      %p118 = scmp.eq.s32.totalorder %s19, 0
      %p119 = por %p117, %p118
      %p120 = scmp.le.s32.totalorder 1, %s13
      %p121 = scmp.lt.s32.totalorder %s13, 3
      %p122 = pnand %p120, %p121
      %p123 = pneg %p122
      // Predicated region
      $region9: #{svd_mf_dot_pallas.1} parent=5 // pred_check
        _
      $region10: #{svd_mf_dot_pallas.1} parent=5 // pred_check_branch
        %125 = sbr.rel (%p122) target = $region12
      $region11: #{svd_mf_dot_pallas.1} parent=5 // pred_region
        %s126 = ssub.s32 %s13, 1
        // Predicated region
        $region13: #{svd_mf_dot_pallas.1} parent=11 // pred_check
          %p127 = pneg %p86
        $region14: #{svd_mf_dot_pallas.1} parent=11 // pred_check_branch
          %129 = sbr.rel (%p127) target = $region16
        $region15: #{svd_mf_dot_pallas.1} parent=11 // pred_region
          %s131 = ssub.s32 2048, 2048
          %132 = vsyncadd [#allocation3], %s131
          %s133 = sshll.u32 [#allocation2], 4
          %s134 = int_to_ptr.vmem [resolvable:$true] %s133
          %139 = dma.hbm_to_vmem [thread:$0]  %s2, 2048, %s134, [#allocation3], 256, 256, 16
        $region16: #{svd_mf_dot_pallas.1} parent=11 // pred_fallthru
          _
      $region12: #{svd_mf_dot_pallas.1} parent=5 // pred_fallthru
        _
      %p140 = scmp.lt.s32.totalorder %s13, 2
      // Predicated region
      $region17: #{svd_mf_dot_pallas.1} parent=5 // pred_check
        %p141 = pneg %p140
      $region18: #{svd_mf_dot_pallas.1} parent=5 // pred_check_branch
        %143 = sbr.rel (%p141) target = $region20
      $region19: #{svd_mf_dot_pallas.1} parent=5 // pred_region
        // Predicated region
        $region21: #{svd_mf_dot_pallas.1} parent=19 // pred_check
          %p144 = pneg %p33
        $region22: #{svd_mf_dot_pallas.1} parent=19 // pred_check_branch
          %146 = sbr.rel (%p144) target = $region24
        $region23: #{svd_mf_dot_pallas.1} parent=19 // pred_region
          %s147 = smul.u32 4, %s13
          %p148 = scmp.lt.s32.totalorder %s147, 7
          %s149 = scalar_select %p148, %s147, 7
          %s150 = scalar_lea.vmem %s0, %s149
          %s151 = smul.u32 4, %s13
        $region24: #{svd_mf_dot_pallas.1} parent=19 // pred_fallthru
          _
        // Predicated region
        $region25: #{svd_mf_dot_pallas.1} parent=19 // pred_check
          %p152 = pneg %p59
        $region26: #{svd_mf_dot_pallas.1} parent=19 // pred_check_branch
          %154 = sbr.rel (%p152) target = $region28
        $region27: #{svd_mf_dot_pallas.1} parent=19 // pred_region
          %s155 = smul.u32 4, %s13
          %p156 = scmp.lt.s32.totalorder %s155, 7
          %s157 = scalar_select %p156, %s155, 7
          %s158 = scalar_lea.vmem %s1, %s157
          %s159 = smul.u32 4, %s13
        $region28: #{svd_mf_dot_pallas.1} parent=19 // pred_fallthru
          _
      $region20: #{svd_mf_dot_pallas.1} parent=5 // pred_fallthru
        _
      %p160 = scmp.le.s32.totalorder 1, %s13
      %p161 = scmp.lt.s32.totalorder %s13, 3
      %p162 = pnand %p160, %p161
      %p163 = pneg %p162
      // Predicated region
      $region29: #{svd_mf_dot_pallas.1} parent=5 // pred_check
        _
      $region30: #{svd_mf_dot_pallas.1} parent=5 // pred_check_branch
        %165 = sbr.rel (%p162) target = $region32
      $region31: #{svd_mf_dot_pallas.1} parent=5 // pred_region
        %s166 = ssub.s32 %s13, 1
        // Predicated region
        $region33: #{svd_mf_dot_pallas.1} parent=31 // pred_check
          %p167 = pneg %p86
        $region34: #{svd_mf_dot_pallas.1} parent=31 // pred_check_branch
          %169 = sbr.rel (%p167) target = $region36
        $region35: #{svd_mf_dot_pallas.1} parent=31 // pred_region
          %170 = dma.done [#allocation3], 2048
        $region36: #{svd_mf_dot_pallas.1} parent=31 // pred_fallthru
          _
        %s171 = smul.u32 4, %s18
        %p172 = scmp.lt.s32.totalorder %s171, 7
        %s173 = scalar_select %p172, %s171, 7
        %s174 = scalar_lea.vmem %s0, %s173
        %p175 = pneg %p39
        %p176 = pneg %p36
        %s177 = smul.u32 4, %s18
        %p178 = scmp.lt.s32.totalorder %s177, 7
        %s179 = scalar_select %p178, %s177, 7
        %s180 = scalar_lea.vmem %s1, %s179
        %p181 = pneg %p65
        %p182 = pneg %p62
        %p183 = pneg %p86
        %p184 = pneg %p83
        %p185 = pneg %p112
        %p186 = pneg %p109
        %s187 = sand.u32 %s99, 1
        %s188 = scalar_lea.sflag [#allocation4], %s187
        %s189 = sand.u32 %s99, 1
        %s190 = smul.addr %s189, 4
        %s191 = scalar_lea.vmem [#allocation5], %s190
        %s192 = smul.u32 4, %s18
        %p193 = scmp.lt.s32.totalorder %s192, 7
        %s194 = scalar_select %p193, %s192, 7
        %s195 = scalar_lea.vmem %s0, %s194
        %s196 = smul.u32 4, %s18
        %s197 = smul.u32 4, %s18
        %p198 = scmp.lt.s32.totalorder %s197, 7
        %s199 = scalar_select %p198, %s197, 7
        %s200 = scalar_lea.vmem %s1, %s199
        %s201 = smul.u32 4, %s18
        %s202 = smul.u32 4, %s18
        %v203 = vld [vmem:[%s195] sm:$0xf]
        %v204 = vld [vmem:[%s200] sm:$0xf]
        %v205 = vlaneseq
        %v206 = vshrl.u32 %v205, 7
        %v207 = vadd.s32 %v206, 8
        %v208 = vadd.s32 %v206, 16
        %v209 = vadd.s32 %v206, 24
        %v210 = vadd.s32 %v206, 32
        %v211 = vadd.s32 %v206, 40
        %v212 = vadd.s32 %v206, 48
        %v213 = vadd.s32 %v206, 56
        %v214 = vadd.s32 %v206, 64
        %v215 = vadd.s32 %v206, 72
        %v216 = vadd.s32 %v206, 80
        %v217 = vadd.s32 %v206, 88
        %v218 = vadd.s32 %v206, 96
        %v219 = vadd.s32 %v206, 104
        %v220 = vadd.s32 %v206, 112
        %v221 = vadd.s32 %v206, 120
        %v222 = vadd.s32 %v206, 128
        %v223 = vadd.s32 %v206, 136
        %v224 = vadd.s32 %v206, 144
        %v225 = vadd.s32 %v206, 152
        %v226 = vadd.s32 %v206, 160
        %v227 = vadd.s32 %v206, 168
        %v228 = vadd.s32 %v206, 176
        %v229 = vadd.s32 %v206, 184
        %v230 = vlaneseq
        %v231 = vshrl.u32 %v230, 7
        %v232 = vsub.s32 0, %v231
        %v233 = vrot.slane %v203, %v232
        %v234 = vlaneseq
        %v235 = vshrl.u32 %v234, 7
        %v236 = vsub.s32 1, %v235
        %v237 = vrot.slane %v203, %v236
        %v238 = vlaneseq
        %v239 = vshrl.u32 %v238, 7
        %v240 = vsub.s32 2, %v239
        %v241 = vrot.slane %v203, %v240
        %v242 = vlaneseq
        %v243 = vshrl.u32 %v242, 7
        %v244 = vsub.s32 3, %v243
        %v245 = vrot.slane %v203, %v244
        %vm246 = vcmp.eq.s32.totalorder %v206, %v233
        %vm247 = vcmp.eq.s32.totalorder %v206, %v237
        %vm248 = vcmp.eq.s32.totalorder %v206, %v241
        %vm249 = vcmp.eq.s32.totalorder %v206, %v245
        %vm250 = vcmp.eq.s32.totalorder %v207, %v233
        %vm251 = vcmp.eq.s32.totalorder %v207, %v237
        %vm252 = vcmp.eq.s32.totalorder %v207, %v241
        %vm253 = vcmp.eq.s32.totalorder %v207, %v245
        %vm254 = vcmp.eq.s32.totalorder %v208, %v233
        %vm255 = vcmp.eq.s32.totalorder %v208, %v237
        %vm256 = vcmp.eq.s32.totalorder %v208, %v241
        %vm257 = vcmp.eq.s32.totalorder %v208, %v245
        %vm258 = vcmp.eq.s32.totalorder %v209, %v233
        %vm259 = vcmp.eq.s32.totalorder %v209, %v237
        %vm260 = vcmp.eq.s32.totalorder %v209, %v241
        %vm261 = vcmp.eq.s32.totalorder %v209, %v245
        %vm262 = vcmp.eq.s32.totalorder %v210, %v233
        %vm263 = vcmp.eq.s32.totalorder %v210, %v237
        %vm264 = vcmp.eq.s32.totalorder %v210, %v241
        %vm265 = vcmp.eq.s32.totalorder %v210, %v245
        %vm266 = vcmp.eq.s32.totalorder %v211, %v233
        %vm267 = vcmp.eq.s32.totalorder %v211, %v237
        %vm268 = vcmp.eq.s32.totalorder %v211, %v241
        %vm269 = vcmp.eq.s32.totalorder %v211, %v245
        %vm270 = vcmp.eq.s32.totalorder %v212, %v233
        %vm271 = vcmp.eq.s32.totalorder %v212, %v237
        %vm272 = vcmp.eq.s32.totalorder %v212, %v241
        %vm273 = vcmp.eq.s32.totalorder %v212, %v245
        %vm274 = vcmp.eq.s32.totalorder %v213, %v233
        %vm275 = vcmp.eq.s32.totalorder %v213, %v237
        %vm276 = vcmp.eq.s32.totalorder %v213, %v241
        %vm277 = vcmp.eq.s32.totalorder %v213, %v245
        %vm278 = vcmp.eq.s32.totalorder %v214, %v233
        %vm279 = vcmp.eq.s32.totalorder %v214, %v237
        %vm280 = vcmp.eq.s32.totalorder %v214, %v241
        %vm281 = vcmp.eq.s32.totalorder %v214, %v245
        %vm282 = vcmp.eq.s32.totalorder %v215, %v233
        %vm283 = vcmp.eq.s32.totalorder %v215, %v237
        %vm284 = vcmp.eq.s32.totalorder %v215, %v241
        %vm285 = vcmp.eq.s32.totalorder %v215, %v245
        %vm286 = vcmp.eq.s32.totalorder %v216, %v233
        %vm287 = vcmp.eq.s32.totalorder %v216, %v237
        %vm288 = vcmp.eq.s32.totalorder %v216, %v241
        %vm289 = vcmp.eq.s32.totalorder %v216, %v245
        %vm290 = vcmp.eq.s32.totalorder %v217, %v233
        %vm291 = vcmp.eq.s32.totalorder %v217, %v237
        %vm292 = vcmp.eq.s32.totalorder %v217, %v241
        %vm293 = vcmp.eq.s32.totalorder %v217, %v245
        %vm294 = vcmp.eq.s32.totalorder %v218, %v233
        %vm295 = vcmp.eq.s32.totalorder %v218, %v237
        %vm296 = vcmp.eq.s32.totalorder %v218, %v241
        %vm297 = vcmp.eq.s32.totalorder %v218, %v245
        %vm298 = vcmp.eq.s32.totalorder %v219, %v233
        %vm299 = vcmp.eq.s32.totalorder %v219, %v237
        %vm300 = vcmp.eq.s32.totalorder %v219, %v241
        %vm301 = vcmp.eq.s32.totalorder %v219, %v245
        %vm302 = vcmp.eq.s32.totalorder %v220, %v233
        %vm303 = vcmp.eq.s32.totalorder %v220, %v237
        %vm304 = vcmp.eq.s32.totalorder %v220, %v241
        %vm305 = vcmp.eq.s32.totalorder %v220, %v245
        %vm306 = vcmp.eq.s32.totalorder %v221, %v233
        %vm307 = vcmp.eq.s32.totalorder %v221, %v237
        %vm308 = vcmp.eq.s32.totalorder %v221, %v241
        %vm309 = vcmp.eq.s32.totalorder %v221, %v245
        %vm310 = vcmp.eq.s32.totalorder %v222, %v233
        %vm311 = vcmp.eq.s32.totalorder %v222, %v237
        %vm312 = vcmp.eq.s32.totalorder %v222, %v241
        %vm313 = vcmp.eq.s32.totalorder %v222, %v245
        %vm314 = vcmp.eq.s32.totalorder %v223, %v233
        %vm315 = vcmp.eq.s32.totalorder %v223, %v237
        %vm316 = vcmp.eq.s32.totalorder %v223, %v241
        %vm317 = vcmp.eq.s32.totalorder %v223, %v245
        %vm318 = vcmp.eq.s32.totalorder %v224, %v233
        %vm319 = vcmp.eq.s32.totalorder %v224, %v237
        %vm320 = vcmp.eq.s32.totalorder %v224, %v241
        %vm321 = vcmp.eq.s32.totalorder %v224, %v245
        %vm322 = vcmp.eq.s32.totalorder %v225, %v233
        %vm323 = vcmp.eq.s32.totalorder %v225, %v237
        %vm324 = vcmp.eq.s32.totalorder %v225, %v241
        %vm325 = vcmp.eq.s32.totalorder %v225, %v245
        %vm326 = vcmp.eq.s32.totalorder %v226, %v233
        %vm327 = vcmp.eq.s32.totalorder %v226, %v237
        %vm328 = vcmp.eq.s32.totalorder %v226, %v241
        %vm329 = vcmp.eq.s32.totalorder %v226, %v245
        %vm330 = vcmp.eq.s32.totalorder %v227, %v233
        %vm331 = vcmp.eq.s32.totalorder %v227, %v237
        %vm332 = vcmp.eq.s32.totalorder %v227, %v241
        %vm333 = vcmp.eq.s32.totalorder %v227, %v245
        %vm334 = vcmp.eq.s32.totalorder %v228, %v233
        %vm335 = vcmp.eq.s32.totalorder %v228, %v237
        %vm336 = vcmp.eq.s32.totalorder %v228, %v241
        %vm337 = vcmp.eq.s32.totalorder %v228, %v245
        %vm338 = vcmp.eq.s32.totalorder %v229, %v233
        %vm339 = vcmp.eq.s32.totalorder %v229, %v237
        %vm340 = vcmp.eq.s32.totalorder %v229, %v241
        %vm341 = vcmp.eq.s32.totalorder %v229, %v245
        %v342 = vlaneseq
        %v343 = vshrl.u32 %v342, 7
        %v344 = vsub.s32 0, %v343
        %v345 = vrot.slane %v204, %v344
        %v346 = vlaneseq
        %v347 = vshrl.u32 %v346, 7
        %v348 = vsub.s32 1, %v347
        %v349 = vrot.slane %v204, %v348
        %v350 = vlaneseq
        %v351 = vshrl.u32 %v350, 7
        %v352 = vsub.s32 2, %v351
        %v353 = vrot.slane %v204, %v352
        %v354 = vlaneseq
        %v355 = vshrl.u32 %v354, 7
        %v356 = vsub.s32 3, %v355
        %v357 = vrot.slane %v204, %v356
        %vm358 = vcmp.eq.s32.totalorder %v206, %v345
        %vm359 = vcmp.eq.s32.totalorder %v206, %v349
        %vm360 = vcmp.eq.s32.totalorder %v206, %v353
        %vm361 = vcmp.eq.s32.totalorder %v206, %v357
        %vm362 = vcmp.eq.s32.totalorder %v207, %v345
        %vm363 = vcmp.eq.s32.totalorder %v207, %v349
        %vm364 = vcmp.eq.s32.totalorder %v207, %v353
        %vm365 = vcmp.eq.s32.totalorder %v207, %v357
        %vm366 = vcmp.eq.s32.totalorder %v208, %v345
        %vm367 = vcmp.eq.s32.totalorder %v208, %v349
        %vm368 = vcmp.eq.s32.totalorder %v208, %v353
        %vm369 = vcmp.eq.s32.totalorder %v208, %v357
        %vm370 = vcmp.eq.s32.totalorder %v209, %v345
        %vm371 = vcmp.eq.s32.totalorder %v209, %v349
        %vm372 = vcmp.eq.s32.totalorder %v209, %v353
        %vm373 = vcmp.eq.s32.totalorder %v209, %v357
        %vm374 = vcmp.eq.s32.totalorder %v210, %v345
        %vm375 = vcmp.eq.s32.totalorder %v210, %v349
        %vm376 = vcmp.eq.s32.totalorder %v210, %v353
        %vm377 = vcmp.eq.s32.totalorder %v210, %v357
        %vm378 = vcmp.eq.s32.totalorder %v211, %v345
        %vm379 = vcmp.eq.s32.totalorder %v211, %v349
        %vm380 = vcmp.eq.s32.totalorder %v211, %v353
        %vm381 = vcmp.eq.s32.totalorder %v211, %v357
        %vm382 = vcmp.eq.s32.totalorder %v212, %v345
        %vm383 = vcmp.eq.s32.totalorder %v212, %v349
        %vm384 = vcmp.eq.s32.totalorder %v212, %v353
        %vm385 = vcmp.eq.s32.totalorder %v212, %v357
        %vm386 = vcmp.eq.s32.totalorder %v213, %v345
        %vm387 = vcmp.eq.s32.totalorder %v213, %v349
        %vm388 = vcmp.eq.s32.totalorder %v213, %v353
        %vm389 = vcmp.eq.s32.totalorder %v213, %v357
        %vm390 = vcmp.eq.s32.totalorder %v214, %v345
        %vm391 = vcmp.eq.s32.totalorder %v214, %v349
        %vm392 = vcmp.eq.s32.totalorder %v214, %v353
        %vm393 = vcmp.eq.s32.totalorder %v214, %v357
        %vm394 = vcmp.eq.s32.totalorder %v215, %v345
        %vm395 = vcmp.eq.s32.totalorder %v215, %v349
        %vm396 = vcmp.eq.s32.totalorder %v215, %v353
        %vm397 = vcmp.eq.s32.totalorder %v215, %v357
        %vm398 = vcmp.eq.s32.totalorder %v216, %v345
        %vm399 = vcmp.eq.s32.totalorder %v216, %v349
        %vm400 = vcmp.eq.s32.totalorder %v216, %v353
        %vm401 = vcmp.eq.s32.totalorder %v216, %v357
        %vm402 = vcmp.eq.s32.totalorder %v217, %v345
        %vm403 = vcmp.eq.s32.totalorder %v217, %v349
        %vm404 = vcmp.eq.s32.totalorder %v217, %v353
        %vm405 = vcmp.eq.s32.totalorder %v217, %v357
        %vm406 = vcmp.eq.s32.totalorder %v218, %v345
        %vm407 = vcmp.eq.s32.totalorder %v218, %v349
        %vm408 = vcmp.eq.s32.totalorder %v218, %v353
        %vm409 = vcmp.eq.s32.totalorder %v218, %v357
        %vm410 = vcmp.eq.s32.totalorder %v219, %v345
        %vm411 = vcmp.eq.s32.totalorder %v219, %v349
        %vm412 = vcmp.eq.s32.totalorder %v219, %v353
        %vm413 = vcmp.eq.s32.totalorder %v219, %v357
        %vm414 = vcmp.eq.s32.totalorder %v220, %v345
        %vm415 = vcmp.eq.s32.totalorder %v220, %v349
        %vm416 = vcmp.eq.s32.totalorder %v220, %v353
        %vm417 = vcmp.eq.s32.totalorder %v220, %v357
        %vm418 = vcmp.eq.s32.totalorder %v221, %v345
        %vm419 = vcmp.eq.s32.totalorder %v221, %v349
        %vm420 = vcmp.eq.s32.totalorder %v221, %v353
        %vm421 = vcmp.eq.s32.totalorder %v221, %v357
        %vm422 = vcmp.eq.s32.totalorder %v222, %v345
        %vm423 = vcmp.eq.s32.totalorder %v222, %v349
        %vm424 = vcmp.eq.s32.totalorder %v222, %v353
        %vm425 = vcmp.eq.s32.totalorder %v222, %v357
        %vm426 = vcmp.eq.s32.totalorder %v223, %v345
        %vm427 = vcmp.eq.s32.totalorder %v223, %v349
        %vm428 = vcmp.eq.s32.totalorder %v223, %v353
        %vm429 = vcmp.eq.s32.totalorder %v223, %v357
        %vm430 = vcmp.eq.s32.totalorder %v224, %v345
        %vm431 = vcmp.eq.s32.totalorder %v224, %v349
        %vm432 = vcmp.eq.s32.totalorder %v224, %v353
        %vm433 = vcmp.eq.s32.totalorder %v224, %v357
        %vm434 = vcmp.eq.s32.totalorder %v225, %v345
        %vm435 = vcmp.eq.s32.totalorder %v225, %v349
        %vm436 = vcmp.eq.s32.totalorder %v225, %v353
        %vm437 = vcmp.eq.s32.totalorder %v225, %v357
        %vm438 = vcmp.eq.s32.totalorder %v226, %v345
        %vm439 = vcmp.eq.s32.totalorder %v226, %v349
        %vm440 = vcmp.eq.s32.totalorder %v226, %v353
        %vm441 = vcmp.eq.s32.totalorder %v226, %v357
        %vm442 = vcmp.eq.s32.totalorder %v227, %v345
        %vm443 = vcmp.eq.s32.totalorder %v227, %v349
        %vm444 = vcmp.eq.s32.totalorder %v227, %v353
        %vm445 = vcmp.eq.s32.totalorder %v227, %v357
        %vm446 = vcmp.eq.s32.totalorder %v228, %v345
        %vm447 = vcmp.eq.s32.totalorder %v228, %v349
        %vm448 = vcmp.eq.s32.totalorder %v228, %v353
        %vm449 = vcmp.eq.s32.totalorder %v228, %v357
        %vm450 = vcmp.eq.s32.totalorder %v229, %v345
        %vm451 = vcmp.eq.s32.totalorder %v229, %v349
        %vm452 = vcmp.eq.s32.totalorder %v229, %v353
        %vm453 = vcmp.eq.s32.totalorder %v229, %v357
        %vm454 = vmor %vm246, %vm358
        %vm455 = vmor %vm247, %vm359
        %vm456 = vmor %vm248, %vm360
        %vm457 = vmor %vm249, %vm361
        %vm458 = vmor %vm250, %vm362
        %vm459 = vmor %vm251, %vm363
        %vm460 = vmor %vm252, %vm364
        %vm461 = vmor %vm253, %vm365
        %vm462 = vmor %vm254, %vm366
        %vm463 = vmor %vm255, %vm367
        %vm464 = vmor %vm256, %vm368
        %vm465 = vmor %vm257, %vm369
        %vm466 = vmor %vm258, %vm370
        %vm467 = vmor %vm259, %vm371
        %vm468 = vmor %vm260, %vm372
        %vm469 = vmor %vm261, %vm373
        %vm470 = vmor %vm262, %vm374
        %vm471 = vmor %vm263, %vm375
        %vm472 = vmor %vm264, %vm376
        %vm473 = vmor %vm265, %vm377
        %vm474 = vmor %vm266, %vm378
        %vm475 = vmor %vm267, %vm379
        %vm476 = vmor %vm268, %vm380
        %vm477 = vmor %vm269, %vm381
        %vm478 = vmor %vm270, %vm382
        %vm479 = vmor %vm271, %vm383
        %vm480 = vmor %vm272, %vm384
        %vm481 = vmor %vm273, %vm385
        %vm482 = vmor %vm274, %vm386
        %vm483 = vmor %vm275, %vm387
        %vm484 = vmor %vm276, %vm388
        %vm485 = vmor %vm277, %vm389
        %vm486 = vmor %vm278, %vm390
        %vm487 = vmor %vm279, %vm391
        %vm488 = vmor %vm280, %vm392
        %vm489 = vmor %vm281, %vm393
        %vm490 = vmor %vm282, %vm394
        %vm491 = vmor %vm283, %vm395
        %vm492 = vmor %vm284, %vm396
        %vm493 = vmor %vm285, %vm397
        %vm494 = vmor %vm286, %vm398
        %vm495 = vmor %vm287, %vm399
        %vm496 = vmor %vm288, %vm400
        %vm497 = vmor %vm289, %vm401
        %vm498 = vmor %vm290, %vm402
        %vm499 = vmor %vm291, %vm403
        %vm500 = vmor %vm292, %vm404
        %vm501 = vmor %vm293, %vm405
        %vm502 = vmor %vm294, %vm406
        %vm503 = vmor %vm295, %vm407
        %vm504 = vmor %vm296, %vm408
        %vm505 = vmor %vm297, %vm409
        %vm506 = vmor %vm298, %vm410
        %vm507 = vmor %vm299, %vm411
        %vm508 = vmor %vm300, %vm412
        %vm509 = vmor %vm301, %vm413
        %vm510 = vmor %vm302, %vm414
        %vm511 = vmor %vm303, %vm415
        %vm512 = vmor %vm304, %vm416
        %vm513 = vmor %vm305, %vm417
        %vm514 = vmor %vm306, %vm418
        %vm515 = vmor %vm307, %vm419
        %vm516 = vmor %vm308, %vm420
        %vm517 = vmor %vm309, %vm421
        %vm518 = vmor %vm310, %vm422
        %vm519 = vmor %vm311, %vm423
        %vm520 = vmor %vm312, %vm424
        %vm521 = vmor %vm313, %vm425
        %vm522 = vmor %vm314, %vm426
        %vm523 = vmor %vm315, %vm427
        %vm524 = vmor %vm316, %vm428
        %vm525 = vmor %vm317, %vm429
        %vm526 = vmor %vm318, %vm430
        %vm527 = vmor %vm319, %vm431
        %vm528 = vmor %vm320, %vm432
        %vm529 = vmor %vm321, %vm433
        %vm530 = vmor %vm322, %vm434
        %vm531 = vmor %vm323, %vm435
        %vm532 = vmor %vm324, %vm436
        %vm533 = vmor %vm325, %vm437
        %vm534 = vmor %vm326, %vm438
        %vm535 = vmor %vm327, %vm439
        %vm536 = vmor %vm328, %vm440
        %vm537 = vmor %vm329, %vm441
        %vm538 = vmor %vm330, %vm442
        %vm539 = vmor %vm331, %vm443
        %vm540 = vmor %vm332, %vm444
        %vm541 = vmor %vm333, %vm445
        %vm542 = vmor %vm334, %vm446
        %vm543 = vmor %vm335, %vm447
        %vm544 = vmor %vm336, %vm448
        %vm545 = vmor %vm337, %vm449
        %vm546 = vmor %vm338, %vm450
        %vm547 = vmor %vm339, %vm451
        %vm548 = vmor %vm340, %vm452
        %vm549 = vmor %vm341, %vm453
        %v550 = vsel %vm454, 1, 0
        %v551 = vsel %vm455, 1, 0
        %v552 = vsel %vm456, 1, 0
        %v553 = vsel %vm457, 1, 0
        %v554 = vsel %vm458, 1, 0
        %v555 = vsel %vm459, 1, 0
        %v556 = vsel %vm460, 1, 0
        %v557 = vsel %vm461, 1, 0
        %v558 = vsel %vm462, 1, 0
        %v559 = vsel %vm463, 1, 0
        %v560 = vsel %vm464, 1, 0
        %v561 = vsel %vm465, 1, 0
        %v562 = vsel %vm466, 1, 0
        %v563 = vsel %vm467, 1, 0
        %v564 = vsel %vm468, 1, 0
        %v565 = vsel %vm469, 1, 0
        %v566 = vsel %vm470, 1, 0
        %v567 = vsel %vm471, 1, 0
        %v568 = vsel %vm472, 1, 0
        %v569 = vsel %vm473, 1, 0
        %v570 = vsel %vm474, 1, 0
        %v571 = vsel %vm475, 1, 0
        %v572 = vsel %vm476, 1, 0
        %v573 = vsel %vm477, 1, 0
        %v574 = vsel %vm478, 1, 0
        %v575 = vsel %vm479, 1, 0
        %v576 = vsel %vm480, 1, 0
        %v577 = vsel %vm481, 1, 0
        %v578 = vsel %vm482, 1, 0
        %v579 = vsel %vm483, 1, 0
        %v580 = vsel %vm484, 1, 0
        %v581 = vsel %vm485, 1, 0
        %v582 = vsel %vm486, 1, 0
        %v583 = vsel %vm487, 1, 0
        %v584 = vsel %vm488, 1, 0
        %v585 = vsel %vm489, 1, 0
        %v586 = vsel %vm490, 1, 0
        %v587 = vsel %vm491, 1, 0
        %v588 = vsel %vm492, 1, 0
        %v589 = vsel %vm493, 1, 0
        %v590 = vsel %vm494, 1, 0
        %v591 = vsel %vm495, 1, 0
        %v592 = vsel %vm496, 1, 0
        %v593 = vsel %vm497, 1, 0
        %v594 = vsel %vm498, 1, 0
        %v595 = vsel %vm499, 1, 0
        %v596 = vsel %vm500, 1, 0
        %v597 = vsel %vm501, 1, 0
        %v598 = vsel %vm502, 1, 0
        %v599 = vsel %vm503, 1, 0
        %v600 = vsel %vm504, 1, 0
        %v601 = vsel %vm505, 1, 0
        %v602 = vsel %vm506, 1, 0
        %v603 = vsel %vm507, 1, 0
        %v604 = vsel %vm508, 1, 0
        %v605 = vsel %vm509, 1, 0
        %v606 = vsel %vm510, 1, 0
        %v607 = vsel %vm511, 1, 0
        %v608 = vsel %vm512, 1, 0
        %v609 = vsel %vm513, 1, 0
        %v610 = vsel %vm514, 1, 0
        %v611 = vsel %vm515, 1, 0
        %v612 = vsel %vm516, 1, 0
        %v613 = vsel %vm517, 1, 0
        %v614 = vsel %vm518, 1, 0
        %v615 = vsel %vm519, 1, 0
        %v616 = vsel %vm520, 1, 0
        %v617 = vsel %vm521, 1, 0
        %v618 = vsel %vm522, 1, 0
        %v619 = vsel %vm523, 1, 0
        %v620 = vsel %vm524, 1, 0
        %v621 = vsel %vm525, 1, 0
        %v622 = vsel %vm526, 1, 0
        %v623 = vsel %vm527, 1, 0
        %v624 = vsel %vm528, 1, 0
        %v625 = vsel %vm529, 1, 0
        %v626 = vsel %vm530, 1, 0
        %v627 = vsel %vm531, 1, 0
        %v628 = vsel %vm532, 1, 0
        %v629 = vsel %vm533, 1, 0
        %v630 = vsel %vm534, 1, 0
        %v631 = vsel %vm535, 1, 0
        %v632 = vsel %vm536, 1, 0
        %v633 = vsel %vm537, 1, 0
        %v634 = vsel %vm538, 1, 0
        %v635 = vsel %vm539, 1, 0
        %v636 = vsel %vm540, 1, 0
        %v637 = vsel %vm541, 1, 0
        %v638 = vsel %vm542, 1, 0
        %v639 = vsel %vm543, 1, 0
        %v640 = vsel %vm544, 1, 0
        %v641 = vsel %vm545, 1, 0
        %v642 = vsel %vm546, 1, 0
        %v643 = vsel %vm547, 1, 0
        %v644 = vsel %vm548, 1, 0
        %v645 = vsel %vm549, 1, 0
        %v646 = vcvt.s32.f32 %v550
        %v647 = vcvt.s32.f32 %v551
        %v648 = vcvt.s32.f32 %v552
        %v649 = vcvt.s32.f32 %v553
        %v650 = vcvt.s32.f32 %v554
        %v651 = vcvt.s32.f32 %v555
        %v652 = vcvt.s32.f32 %v556
        %v653 = vcvt.s32.f32 %v557
        %v654 = vcvt.s32.f32 %v558
        %v655 = vcvt.s32.f32 %v559
        %v656 = vcvt.s32.f32 %v560
        %v657 = vcvt.s32.f32 %v561
        %v658 = vcvt.s32.f32 %v562
        %v659 = vcvt.s32.f32 %v563
        %v660 = vcvt.s32.f32 %v564
        %v661 = vcvt.s32.f32 %v565
        %v662 = vcvt.s32.f32 %v566
        %v663 = vcvt.s32.f32 %v567
        %v664 = vcvt.s32.f32 %v568
        %v665 = vcvt.s32.f32 %v569
        %v666 = vcvt.s32.f32 %v570
        %v667 = vcvt.s32.f32 %v571
        %v668 = vcvt.s32.f32 %v572
        %v669 = vcvt.s32.f32 %v573
        %v670 = vcvt.s32.f32 %v574
        %v671 = vcvt.s32.f32 %v575
        %v672 = vcvt.s32.f32 %v576
        %v673 = vcvt.s32.f32 %v577
        %v674 = vcvt.s32.f32 %v578
        %v675 = vcvt.s32.f32 %v579
        %v676 = vcvt.s32.f32 %v580
        %v677 = vcvt.s32.f32 %v581
        %v678 = vcvt.s32.f32 %v582
        %v679 = vcvt.s32.f32 %v583
        %v680 = vcvt.s32.f32 %v584
        %v681 = vcvt.s32.f32 %v585
        %v682 = vcvt.s32.f32 %v586
        %v683 = vcvt.s32.f32 %v587
        %v684 = vcvt.s32.f32 %v588
        %v685 = vcvt.s32.f32 %v589
        %v686 = vcvt.s32.f32 %v590
        %v687 = vcvt.s32.f32 %v591
        %v688 = vcvt.s32.f32 %v592
        %v689 = vcvt.s32.f32 %v593
        %v690 = vcvt.s32.f32 %v594
        %v691 = vcvt.s32.f32 %v595
        %v692 = vcvt.s32.f32 %v596
        %v693 = vcvt.s32.f32 %v597
        %v694 = vcvt.s32.f32 %v598
        %v695 = vcvt.s32.f32 %v599
        %v696 = vcvt.s32.f32 %v600
        %v697 = vcvt.s32.f32 %v601
        %v698 = vcvt.s32.f32 %v602
        %v699 = vcvt.s32.f32 %v603
        %v700 = vcvt.s32.f32 %v604
        %v701 = vcvt.s32.f32 %v605
        %v702 = vcvt.s32.f32 %v606
        %v703 = vcvt.s32.f32 %v607
        %v704 = vcvt.s32.f32 %v608
        %v705 = vcvt.s32.f32 %v609
        %v706 = vcvt.s32.f32 %v610
        %v707 = vcvt.s32.f32 %v611
        %v708 = vcvt.s32.f32 %v612
        %v709 = vcvt.s32.f32 %v613
        %v710 = vcvt.s32.f32 %v614
        %v711 = vcvt.s32.f32 %v615
        %v712 = vcvt.s32.f32 %v616
        %v713 = vcvt.s32.f32 %v617
        %v714 = vcvt.s32.f32 %v618
        %v715 = vcvt.s32.f32 %v619
        %v716 = vcvt.s32.f32 %v620
        %v717 = vcvt.s32.f32 %v621
        %v718 = vcvt.s32.f32 %v622
        %v719 = vcvt.s32.f32 %v623
        %v720 = vcvt.s32.f32 %v624
        %v721 = vcvt.s32.f32 %v625
        %v722 = vcvt.s32.f32 %v626
        %v723 = vcvt.s32.f32 %v627
        %v724 = vcvt.s32.f32 %v628
        %v725 = vcvt.s32.f32 %v629
        %v726 = vcvt.s32.f32 %v630
        %v727 = vcvt.s32.f32 %v631
        %v728 = vcvt.s32.f32 %v632
        %v729 = vcvt.s32.f32 %v633
        %v730 = vcvt.s32.f32 %v634
        %v731 = vcvt.s32.f32 %v635
        %v732 = vcvt.s32.f32 %v636
        %v733 = vcvt.s32.f32 %v637
        %v734 = vcvt.s32.f32 %v638
        %v735 = vcvt.s32.f32 %v639
        %v736 = vcvt.s32.f32 %v640
        %v737 = vcvt.s32.f32 %v641
        %v738 = vcvt.s32.f32 %v642
        %v739 = vcvt.s32.f32 %v643
        %v740 = vcvt.s32.f32 %v644
        %v741 = vcvt.s32.f32 %v645
        %v742 = vld [vmem:[#allocation2] sm:$0xff]
        %v743 = vld [vmem:[#allocation2 + $0x8] sm:$0xff]
        %v744 = vld [vmem:[#allocation2 + $0x10] sm:$0xff]
        %v745 = vld [vmem:[#allocation2 + $0x18] sm:$0xff]
        %v746 = vld [vmem:[#allocation2 + $0x20] sm:$0xff]
        %v747 = vld [vmem:[#allocation2 + $0x28] sm:$0xff]
        %v748 = vld [vmem:[#allocation2 + $0x30] sm:$0xff]
        %v749 = vld [vmem:[#allocation2 + $0x38] sm:$0xff]
        %v750 = vld [vmem:[#allocation2 + $0x40] sm:$0xff]
        %v751 = vld [vmem:[#allocation2 + $0x48] sm:$0xff]
        %v752 = vld [vmem:[#allocation2 + $0x50] sm:$0xff]
        %v753 = vld [vmem:[#allocation2 + $0x58] sm:$0xff]
        %v754 = vld [vmem:[#allocation2 + $0x60] sm:$0xff]
        %v755 = vld [vmem:[#allocation2 + $0x68] sm:$0xff]
        %v756 = vld [vmem:[#allocation2 + $0x70] sm:$0xff]
        %v757 = vld [vmem:[#allocation2 + $0x78] sm:$0xff]
        %vm758 = vcmask 523264
        %v760 = vsel %vm758, %v743, 0
        %v763 = vsel %vm758, %v745, 0
        %v766 = vsel %vm758, %v747, 0
        %v769 = vsel %vm758, %v749, 0
        %v772 = vsel %vm758, %v751, 0
        %v775 = vsel %vm758, %v753, 0
        %v778 = vsel %vm758, %v755, 0
        %v781 = vsel %vm758, %v757, 0
        %v783 = vand.u32 %v647, 4294901760
        %784 = vmatprep.subr.mxu0 %v783
        %v785 = vand.u32 %v646, 4294901760
        %786 = vmatpush1.msra.mxu0 %v785
        %v787 = vand.u32 %v651, 4294901760
        %788 = vmatprep.subr.mxu0 %v787
        %v789 = vand.u32 %v650, 4294901760
        %790 = vmatpush1.msra.mxu0 %v789
        %v791 = vand.u32 %v655, 4294901760
        %792 = vmatprep.subr.mxu0 %v791
        %v793 = vand.u32 %v654, 4294901760
        %794 = vmatpush1.msra.mxu0 %v793
        %v795 = vand.u32 %v659, 4294901760
        %796 = vmatprep.subr.mxu0 %v795
        %v797 = vand.u32 %v658, 4294901760
        %798 = vmatpush1.msra.mxu0 %v797
        %v799 = vand.u32 %v663, 4294901760
        %800 = vmatprep.subr.mxu0 %v799
        %v801 = vand.u32 %v662, 4294901760
        %802 = vmatpush1.msra.mxu0 %v801
        %v803 = vand.u32 %v667, 4294901760
        %804 = vmatprep.subr.mxu0 %v803
        %v805 = vand.u32 %v666, 4294901760
        %806 = vmatpush1.msra.mxu0 %v805
        %v807 = vand.u32 %v671, 4294901760
        %808 = vmatprep.subr.mxu0 %v807
        %v809 = vand.u32 %v670, 4294901760
        %810 = vmatpush1.msra.mxu0 %v809
        %v811 = vand.u32 %v675, 4294901760
        %812 = vmatprep.subr.mxu0 %v811
        %v813 = vand.u32 %v674, 4294901760
        %814 = vmatpush1.msra.mxu0 %v813
        %v815 = vand.u32 %v679, 4294901760
        %816 = vmatprep.subr.mxu0 %v815
        %v817 = vand.u32 %v678, 4294901760
        %818 = vmatpush1.msra.mxu0 %v817
        %v819 = vand.u32 %v683, 4294901760
        %820 = vmatprep.subr.mxu0 %v819
        %v821 = vand.u32 %v682, 4294901760
        %822 = vmatpush1.msra.mxu0 %v821
        %v823 = vand.u32 %v687, 4294901760
        %824 = vmatprep.subr.mxu0 %v823
        %v825 = vand.u32 %v686, 4294901760
        %826 = vmatpush1.msra.mxu0 %v825
        %v827 = vand.u32 %v691, 4294901760
        %828 = vmatprep.subr.mxu0 %v827
        %v829 = vand.u32 %v690, 4294901760
        %830 = vmatpush1.msra.mxu0 %v829
        %v831 = vand.u32 %v695, 4294901760
        %832 = vmatprep.subr.mxu0 %v831
        %v833 = vand.u32 %v694, 4294901760
        %834 = vmatpush1.msra.mxu0 %v833
        %v835 = vand.u32 %v699, 4294901760
        %836 = vmatprep.subr.mxu0 %v835
        %v837 = vand.u32 %v698, 4294901760
        %838 = vmatpush1.msra.mxu0 %v837
        %v839 = vand.u32 %v703, 4294901760
        %840 = vmatprep.subr.mxu0 %v839
        %v841 = vand.u32 %v702, 4294901760
        %842 = vmatpush1.msra.mxu0 %v841
        %v843 = vand.u32 %v707, 4294901760
        %844 = vmatprep.subr.mxu0 %v843
        %v845 = vand.u32 %v706, 4294901760
        %846 = vmatpush1.msra.mxu0 %v845
        %v847 = vand.u32 %v711, 4294901760
        %848 = vmatprep.subr.mxu0 %v847
        %v849 = vand.u32 %v710, 4294901760
        %850 = vmatpush1.msra.mxu0 %v849
        %v851 = vand.u32 %v715, 4294901760
        %852 = vmatprep.subr.mxu0 %v851
        %v853 = vand.u32 %v714, 4294901760
        %854 = vmatpush1.msra.mxu0 %v853
        %v855 = vand.u32 %v719, 4294901760
        %856 = vmatprep.subr.mxu0 %v855
        %v857 = vand.u32 %v718, 4294901760
        %858 = vmatpush1.msra.mxu0 %v857
        %v859 = vand.u32 %v723, 4294901760
        %860 = vmatprep.subr.mxu0 %v859
        %v861 = vand.u32 %v722, 4294901760
        %862 = vmatpush1.msra.mxu0 %v861
        %v863 = vand.u32 %v727, 4294901760
        %864 = vmatprep.subr.mxu0 %v863
        %v865 = vand.u32 %v726, 4294901760
        %866 = vmatpush1.msra.mxu0 %v865
        %v867 = vand.u32 %v731, 4294901760
        %868 = vmatprep.subr.mxu0 %v867
        %v869 = vand.u32 %v730, 4294901760
        %870 = vmatpush1.msra.mxu0 %v869
        %v871 = vand.u32 %v735, 4294901760
        %872 = vmatprep.subr.mxu0 %v871
        %v873 = vand.u32 %v734, 4294901760
        %874 = vmatpush1.msra.mxu0 %v873
        %v875 = vand.u32 %v739, 4294901760
        %876 = vmatprep.subr.mxu0 %v875
        %v877 = vand.u32 %v738, 4294901760
        %878 = vmatpush1.msra.mxu0 %v877
        %879 = vmatprep.subr.mxu0 0.0
        %880 = vmatpush1.msra.mxu0 0.0
        %881 = vmatprep.subr.mxu0 0.0
        %882 = vmatpush1.msra.mxu0 0.0
        %883 = vmatprep.subr.mxu0 0.0
        %884 = vmatpush1.msra.mxu0 0.0
        %885 = vmatprep.subr.mxu0 0.0
        %886 = vmatpush1.msra.mxu0 0.0
        %887 = vmatprep.subr.mxu0 0.0
        %888 = vmatpush1.msra.mxu0 0.0
        %889 = vmatprep.subr.mxu0 0.0
        %890 = vmatpush1.msra.mxu0 0.0
        %891 = vmatprep.subr.mxu0 0.0
        %892 = vmatpush1.msra.mxu0 0.0
        %893 = vmatprep.subr.mxu0 0.0
        %894 = vmatpush1.msra.mxu0 0.0
        %v895 = vand.u32 %v760, 4294901760
        %v896 = vsub.f32 %v760, %v895
        %v897 = vand.u32 %v896, 4294901760
        %v898 = vsub.f32 %v896, %v897
        %v899 = vand.u32 %v898, 4294901760
        %900 = vmatprep.mubr.f32.mxu0 %v899
        %v901 = vand.u32 %v742, 4294901760
        %v902 = vsub.f32 %v742, %v901
        %v903 = vand.u32 %v902, 4294901760
        %v904 = vsub.f32 %v902, %v903
        %v905 = vand.u32 %v904, 4294901760
        %906 = vmatmul.mubr.f32.gmra.mrb[0].mxu0 %v905
        %v907 = vpop.f32.mrb[0].mxu0
        %v908 = vadd.f32 0.0, %v907
        %v909 = vpop.f32.mrb[0].mxu0
        %v910 = vadd.f32 0.0, %v909
        %v911 = vand.u32 %v763, 4294901760
        %v912 = vsub.f32 %v763, %v911
        %v913 = vand.u32 %v912, 4294901760
        %v914 = vsub.f32 %v912, %v913
        %v915 = vand.u32 %v914, 4294901760
        %916 = vmatprep.mubr.f32.mxu0 %v915
        %v917 = vand.u32 %v744, 4294901760
        %v918 = vsub.f32 %v744, %v917
        %v919 = vand.u32 %v918, 4294901760
        %v920 = vsub.f32 %v918, %v919
        %v921 = vand.u32 %v920, 4294901760
        %922 = vmatmul.mubr.f32.gmra.mrb[0].mxu0 %v921
        %v923 = vpop.f32.mrb[0].mxu0
        %v924 = vadd.f32 0.0, %v923
        %v925 = vpop.f32.mrb[0].mxu0
        %v926 = vadd.f32 0.0, %v925
        %v927 = vand.u32 %v766, 4294901760
        %v928 = vsub.f32 %v766, %v927
        %v929 = vand.u32 %v928, 4294901760
        %v930 = vsub.f32 %v928, %v929
        %v931 = vand.u32 %v930, 4294901760
        %932 = vmatprep.mubr.f32.mxu0 %v931
        %v933 = vand.u32 %v746, 4294901760
        %v934 = vsub.f32 %v746, %v933
        %v935 = vand.u32 %v934, 4294901760
        %v936 = vsub.f32 %v934, %v935
        %v937 = vand.u32 %v936, 4294901760
        %938 = vmatmul.mubr.f32.gmra.mrb[0].mxu0 %v937
        %v939 = vpop.f32.mrb[0].mxu0
        %v940 = vadd.f32 0.0, %v939
        %v941 = vpop.f32.mrb[0].mxu0
        %v942 = vadd.f32 0.0, %v941
        %v943 = vand.u32 %v769, 4294901760
        %v944 = vsub.f32 %v769, %v943
        %v945 = vand.u32 %v944, 4294901760
        %v946 = vsub.f32 %v944, %v945
        %v947 = vand.u32 %v946, 4294901760
        %948 = vmatprep.mubr.f32.mxu0 %v947
        %v949 = vand.u32 %v748, 4294901760
        %v950 = vsub.f32 %v748, %v949
        %v951 = vand.u32 %v950, 4294901760
        %v952 = vsub.f32 %v950, %v951
        %v953 = vand.u32 %v952, 4294901760
        %954 = vmatmul.mubr.f32.gmra.mrb[0].mxu0 %v953
        %v955 = vpop.f32.mrb[0].mxu0
        %v956 = vadd.f32 0.0, %v955
        %v957 = vpop.f32.mrb[0].mxu0
        %v958 = vadd.f32 0.0, %v957
        %v959 = vand.u32 %v772, 4294901760
        %v960 = vsub.f32 %v772, %v959
        %v961 = vand.u32 %v960, 4294901760
        %v962 = vsub.f32 %v960, %v961
        %v963 = vand.u32 %v962, 4294901760
        %964 = vmatprep.mubr.f32.mxu0 %v963
        %v965 = vand.u32 %v750, 4294901760
        %v966 = vsub.f32 %v750, %v965
        %v967 = vand.u32 %v966, 4294901760
        %v968 = vsub.f32 %v966, %v967
        %v969 = vand.u32 %v968, 4294901760
        %970 = vmatmul.mubr.f32.gmra.mrb[0].mxu0 %v969
        %v971 = vpop.f32.mrb[0].mxu0
        %v972 = vadd.f32 0.0, %v971
        %v973 = vpop.f32.mrb[0].mxu0
        %v974 = vadd.f32 0.0, %v973
        %v975 = vand.u32 %v775, 4294901760
        %v976 = vsub.f32 %v775, %v975
        %v977 = vand.u32 %v976, 4294901760
        %v978 = vsub.f32 %v976, %v977
        %v979 = vand.u32 %v978, 4294901760
        %980 = vmatprep.mubr.f32.mxu0 %v979
        %v981 = vand.u32 %v752, 4294901760
        %v982 = vsub.f32 %v752, %v981
        %v983 = vand.u32 %v982, 4294901760
        %v984 = vsub.f32 %v982, %v983
        %v985 = vand.u32 %v984, 4294901760
        %986 = vmatmul.mubr.f32.gmra.mrb[0].mxu0 %v985
        %v987 = vpop.f32.mrb[0].mxu0
        %v988 = vadd.f32 0.0, %v987
        %v989 = vpop.f32.mrb[0].mxu0
        %v990 = vadd.f32 0.0, %v989
        %v991 = vand.u32 %v778, 4294901760
        %v992 = vsub.f32 %v778, %v991
        %v993 = vand.u32 %v992, 4294901760
        %v994 = vsub.f32 %v992, %v993
        %v995 = vand.u32 %v994, 4294901760
        %996 = vmatprep.mubr.f32.mxu0 %v995
        %v997 = vand.u32 %v754, 4294901760
        %v998 = vsub.f32 %v754, %v997
        %v999 = vand.u32 %v998, 4294901760
        %v1000 = vsub.f32 %v998, %v999
        %v1001 = vand.u32 %v1000, 4294901760
        %1002 = vmatmul.mubr.f32.gmra.mrb[0].mxu0 %v1001
        %v1003 = vpop.f32.mrb[0].mxu0
        %v1004 = vadd.f32 0.0, %v1003
        %v1005 = vpop.f32.mrb[0].mxu0
        %v1006 = vadd.f32 0.0, %v1005
        %v1007 = vand.u32 %v781, 4294901760
        %v1008 = vsub.f32 %v781, %v1007
        %v1009 = vand.u32 %v1008, 4294901760
        %v1010 = vsub.f32 %v1008, %v1009
        %v1011 = vand.u32 %v1010, 4294901760
        %1012 = vmatprep.mubr.f32.mxu0 %v1011
        %v1013 = vand.u32 %v756, 4294901760
        %v1014 = vsub.f32 %v756, %v1013
        %v1015 = vand.u32 %v1014, 4294901760
        %v1016 = vsub.f32 %v1014, %v1015
        %v1017 = vand.u32 %v1016, 4294901760
        %1018 = vmatmul.mubr.f32.gmra.mrb[0].mxu0 %v1017
        %v1019 = vpop.f32.mrb[0].mxu0
        %v1020 = vadd.f32 0.0, %v1019
        %v1021 = vpop.f32.mrb[0].mxu0
        %v1022 = vadd.f32 0.0, %v1021
        %1023 = vdwg.mxu0
        %v1024 = vand.u32 %v647, 4294901760
        %v1025 = vsub.f32 %v647, %v1024
        %v1026 = vand.u32 %v1025, 4294901760
        %v1027 = vsub.f32 %v1025, %v1026
        %v1028 = vand.u32 %v1027, 4294901760
        %1029 = vmatprep.subr.mxu0 %v1028
        %v1030 = vand.u32 %v646, 4294901760
        %v1031 = vsub.f32 %v646, %v1030
        %v1032 = vand.u32 %v1031, 4294901760
        %v1033 = vsub.f32 %v1031, %v1032
        %v1034 = vand.u32 %v1033, 4294901760
        %1035 = vmatpush1.msra.mxu0 %v1034
        %v1036 = vand.u32 %v651, 4294901760
        %v1037 = vsub.f32 %v651, %v1036
        %v1038 = vand.u32 %v1037, 4294901760
        %v1039 = vsub.f32 %v1037, %v1038
        %v1040 = vand.u32 %v1039, 4294901760
        %1041 = vmatprep.subr.mxu0 %v1040
        %v1042 = vand.u32 %v650, 4294901760
        %v1043 = vsub.f32 %v650, %v1042
        %v1044 = vand.u32 %v1043, 4294901760
        %v1045 = vsub.f32 %v1043, %v1044
        %v1046 = vand.u32 %v1045, 4294901760
        %1047 = vmatpush1.msra.mxu0 %v1046
        %v1048 = vand.u32 %v655, 4294901760
        %v1049 = vsub.f32 %v655, %v1048
        %v1050 = vand.u32 %v1049, 4294901760
        %v1051 = vsub.f32 %v1049, %v1050
        %v1052 = vand.u32 %v1051, 4294901760
        %1053 = vmatprep.subr.mxu0 %v1052
        %v1054 = vand.u32 %v654, 4294901760
        %v1055 = vsub.f32 %v654, %v1054
        %v1056 = vand.u32 %v1055, 4294901760
        %v1057 = vsub.f32 %v1055, %v1056
        %v1058 = vand.u32 %v1057, 4294901760
        %1059 = vmatpush1.msra.mxu0 %v1058
        %v1060 = vand.u32 %v659, 4294901760
        %v1061 = vsub.f32 %v659, %v1060
        %v1062 = vand.u32 %v1061, 4294901760
        %v1063 = vsub.f32 %v1061, %v1062
        %v1064 = vand.u32 %v1063, 4294901760
        %1065 = vmatprep.subr.mxu0 %v1064
        %v1066 = vand.u32 %v658, 4294901760
        %v1067 = vsub.f32 %v658, %v1066
        %v1068 = vand.u32 %v1067, 4294901760
        %v1069 = vsub.f32 %v1067, %v1068
        %v1070 = vand.u32 %v1069, 4294901760
        %1071 = vmatpush1.msra.mxu0 %v1070
        %v1072 = vand.u32 %v663, 4294901760
        %v1073 = vsub.f32 %v663, %v1072
        %v1074 = vand.u32 %v1073, 4294901760
        %v1075 = vsub.f32 %v1073, %v1074
        %v1076 = vand.u32 %v1075, 4294901760
        %1077 = vmatprep.subr.mxu0 %v1076
        %v1078 = vand.u32 %v662, 4294901760
        %v1079 = vsub.f32 %v662, %v1078
        %v1080 = vand.u32 %v1079, 4294901760
        %v1081 = vsub.f32 %v1079, %v1080
        %v1082 = vand.u32 %v1081, 4294901760
        %1083 = vmatpush1.msra.mxu0 %v1082
        %v1084 = vand.u32 %v667, 4294901760
        %v1085 = vsub.f32 %v667, %v1084
        %v1086 = vand.u32 %v1085, 4294901760
        %v1087 = vsub.f32 %v1085, %v1086
        %v1088 = vand.u32 %v1087, 4294901760
        %1089 = vmatprep.subr.mxu0 %v1088
        %v1090 = vand.u32 %v666, 4294901760
        %v1091 = vsub.f32 %v666, %v1090
        %v1092 = vand.u32 %v1091, 4294901760
        %v1093 = vsub.f32 %v1091, %v1092
        %v1094 = vand.u32 %v1093, 4294901760
        %1095 = vmatpush1.msra.mxu0 %v1094
        %v1096 = vand.u32 %v671, 4294901760
        %v1097 = vsub.f32 %v671, %v1096
        %v1098 = vand.u32 %v1097, 4294901760
        %v1099 = vsub.f32 %v1097, %v1098
        %v1100 = vand.u32 %v1099, 4294901760
        %1101 = vmatprep.subr.mxu0 %v1100
        %v1102 = vand.u32 %v670, 4294901760
        %v1103 = vsub.f32 %v670, %v1102
        %v1104 = vand.u32 %v1103, 4294901760
        %v1105 = vsub.f32 %v1103, %v1104
        %v1106 = vand.u32 %v1105, 4294901760
        %1107 = vmatpush1.msra.mxu0 %v1106
        %v1108 = vand.u32 %v675, 4294901760
        %v1109 = vsub.f32 %v675, %v1108
        %v1110 = vand.u32 %v1109, 4294901760
        %v1111 = vsub.f32 %v1109, %v1110
        %v1112 = vand.u32 %v1111, 4294901760
        %1113 = vmatprep.subr.mxu0 %v1112
        %v1114 = vand.u32 %v674, 4294901760
        %v1115 = vsub.f32 %v674, %v1114
        %v1116 = vand.u32 %v1115, 4294901760
        %v1117 = vsub.f32 %v1115, %v1116
        %v1118 = vand.u32 %v1117, 4294901760
        %1119 = vmatpush1.msra.mxu0 %v1118
        %v1120 = vand.u32 %v679, 4294901760
        %v1121 = vsub.f32 %v679, %v1120
        %v1122 = vand.u32 %v1121, 4294901760
        %v1123 = vsub.f32 %v1121, %v1122
        %v1124 = vand.u32 %v1123, 4294901760
        %1125 = vmatprep.subr.mxu0 %v1124
        %v1126 = vand.u32 %v678, 4294901760
        %v1127 = vsub.f32 %v678, %v1126
        %v1128 = vand.u32 %v1127, 4294901760
        %v1129 = vsub.f32 %v1127, %v1128
        %v1130 = vand.u32 %v1129, 4294901760
        %1131 = vmatpush1.msra.mxu0 %v1130
        %v1132 = vand.u32 %v683, 4294901760
        %v1133 = vsub.f32 %v683, %v1132
        %v1134 = vand.u32 %v1133, 4294901760
        %v1135 = vsub.f32 %v1133, %v1134
        %v1136 = vand.u32 %v1135, 4294901760
        %1137 = vmatprep.subr.mxu0 %v1136
        %v1138 = vand.u32 %v682, 4294901760
        %v1139 = vsub.f32 %v682, %v1138
        %v1140 = vand.u32 %v1139, 4294901760
        %v1141 = vsub.f32 %v1139, %v1140
        %v1142 = vand.u32 %v1141, 4294901760
        %1143 = vmatpush1.msra.mxu0 %v1142
        %v1144 = vand.u32 %v687, 4294901760
        %v1145 = vsub.f32 %v687, %v1144
        %v1146 = vand.u32 %v1145, 4294901760
        %v1147 = vsub.f32 %v1145, %v1146
        %v1148 = vand.u32 %v1147, 4294901760
        %1149 = vmatprep.subr.mxu0 %v1148
        %v1150 = vand.u32 %v686, 4294901760
        %v1151 = vsub.f32 %v686, %v1150
        %v1152 = vand.u32 %v1151, 4294901760
        %v1153 = vsub.f32 %v1151, %v1152
        %v1154 = vand.u32 %v1153, 4294901760
        %1155 = vmatpush1.msra.mxu0 %v1154
        %v1156 = vand.u32 %v691, 4294901760
        %v1157 = vsub.f32 %v691, %v1156
        %v1158 = vand.u32 %v1157, 4294901760
        %v1159 = vsub.f32 %v1157, %v1158
        %v1160 = vand.u32 %v1159, 4294901760
        %1161 = vmatprep.subr.mxu0 %v1160
        %v1162 = vand.u32 %v690, 4294901760
        %v1163 = vsub.f32 %v690, %v1162
        %v1164 = vand.u32 %v1163, 4294901760
        %v1165 = vsub.f32 %v1163, %v1164
        %v1166 = vand.u32 %v1165, 4294901760
        %1167 = vmatpush1.msra.mxu0 %v1166
        %v1168 = vand.u32 %v695, 4294901760
        %v1169 = vsub.f32 %v695, %v1168
        %v1170 = vand.u32 %v1169, 4294901760
        %v1171 = vsub.f32 %v1169, %v1170
        %v1172 = vand.u32 %v1171, 4294901760
        %1173 = vmatprep.subr.mxu0 %v1172
        %v1174 = vand.u32 %v694, 4294901760
        %v1175 = vsub.f32 %v694, %v1174
        %v1176 = vand.u32 %v1175, 4294901760
        %v1177 = vsub.f32 %v1175, %v1176
        %v1178 = vand.u32 %v1177, 4294901760
        %1179 = vmatpush1.msra.mxu0 %v1178
        %v1180 = vand.u32 %v699, 4294901760
        %v1181 = vsub.f32 %v699, %v1180
        %v1182 = vand.u32 %v1181, 4294901760
        %v1183 = vsub.f32 %v1181, %v1182
        %v1184 = vand.u32 %v1183, 4294901760
        %1185 = vmatprep.subr.mxu0 %v1184
        %v1186 = vand.u32 %v698, 4294901760
        %v1187 = vsub.f32 %v698, %v1186
        %v1188 = vand.u32 %v1187, 4294901760
        %v1189 = vsub.f32 %v1187, %v1188
        %v1190 = vand.u32 %v1189, 4294901760
        %1191 = vmatpush1.msra.mxu0 %v1190
        %v1192 = vand.u32 %v703, 4294901760
        %v1193 = vsub.f32 %v703, %v1192
        %v1194 = vand.u32 %v1193, 4294901760
        %v1195 = vsub.f32 %v1193, %v1194
        %v1196 = vand.u32 %v1195, 4294901760
        %1197 = vmatprep.subr.mxu0 %v1196
        %v1198 = vand.u32 %v702, 4294901760
        %v1199 = vsub.f32 %v702, %v1198
        %v1200 = vand.u32 %v1199, 4294901760
        %v1201 = vsub.f32 %v1199, %v1200
        %v1202 = vand.u32 %v1201, 4294901760
        %1203 = vmatpush1.msra.mxu0 %v1202
        %v1204 = vand.u32 %v707, 4294901760
        %v1205 = vsub.f32 %v707, %v1204
        %v1206 = vand.u32 %v1205, 4294901760
        %v1207 = vsub.f32 %v1205, %v1206
        %v1208 = vand.u32 %v1207, 4294901760
        %1209 = vmatprep.subr.mxu0 %v1208
        %v1210 = vand.u32 %v706, 4294901760
        %v1211 = vsub.f32 %v706, %v1210
        %v1212 = vand.u32 %v1211, 4294901760
        %v1213 = vsub.f32 %v1211, %v1212
        %v1214 = vand.u32 %v1213, 4294901760
        %1215 = vmatpush1.msra.mxu0 %v1214
        %v1216 = vand.u32 %v711, 4294901760
        %v1217 = vsub.f32 %v711, %v1216
        %v1218 = vand.u32 %v1217, 4294901760
        %v1219 = vsub.f32 %v1217, %v1218
        %v1220 = vand.u32 %v1219, 4294901760
        %1221 = vmatprep.subr.mxu0 %v1220
        %v1222 = vand.u32 %v710, 4294901760
        %v1223 = vsub.f32 %v710, %v1222
        %v1224 = vand.u32 %v1223, 4294901760
        %v1225 = vsub.f32 %v1223, %v1224
        %v1226 = vand.u32 %v1225, 4294901760
        %1227 = vmatpush1.msra.mxu0 %v1226
        %v1228 = vand.u32 %v715, 4294901760
        %v1229 = vsub.f32 %v715, %v1228
        %v1230 = vand.u32 %v1229, 4294901760
        %v1231 = vsub.f32 %v1229, %v1230
        %v1232 = vand.u32 %v1231, 4294901760
        %1233 = vmatprep.subr.mxu0 %v1232
        %v1234 = vand.u32 %v714, 4294901760
        %v1235 = vsub.f32 %v714, %v1234
        %v1236 = vand.u32 %v1235, 4294901760
        %v1237 = vsub.f32 %v1235, %v1236
        %v1238 = vand.u32 %v1237, 4294901760
        %1239 = vmatpush1.msra.mxu0 %v1238
        %v1240 = vand.u32 %v719, 4294901760
        %v1241 = vsub.f32 %v719, %v1240
        %v1242 = vand.u32 %v1241, 4294901760
        %v1243 = vsub.f32 %v1241, %v1242
        %v1244 = vand.u32 %v1243, 4294901760
        %1245 = vmatprep.subr.mxu0 %v1244
        %v1246 = vand.u32 %v718, 4294901760
        %v1247 = vsub.f32 %v718, %v1246
        %v1248 = vand.u32 %v1247, 4294901760
        %v1249 = vsub.f32 %v1247, %v1248
        %v1250 = vand.u32 %v1249, 4294901760
        %1251 = vmatpush1.msra.mxu0 %v1250
        %v1252 = vand.u32 %v723, 4294901760
        %v1253 = vsub.f32 %v723, %v1252
        %v1254 = vand.u32 %v1253, 4294901760
        %v1255 = vsub.f32 %v1253, %v1254
        %v1256 = vand.u32 %v1255, 4294901760
        %1257 = vmatprep.subr.mxu0 %v1256
        %v1258 = vand.u32 %v722, 4294901760
        %v1259 = vsub.f32 %v722, %v1258
        %v1260 = vand.u32 %v1259, 4294901760
        %v1261 = vsub.f32 %v1259, %v1260
        %v1262 = vand.u32 %v1261, 4294901760
        %1263 = vmatpush1.msra.mxu0 %v1262
        %v1264 = vand.u32 %v727, 4294901760
        %v1265 = vsub.f32 %v727, %v1264
        %v1266 = vand.u32 %v1265, 4294901760
        %v1267 = vsub.f32 %v1265, %v1266
        %v1268 = vand.u32 %v1267, 4294901760
        %1269 = vmatprep.subr.mxu0 %v1268
        %v1270 = vand.u32 %v726, 4294901760
        %v1271 = vsub.f32 %v726, %v1270
        %v1272 = vand.u32 %v1271, 4294901760
        %v1273 = vsub.f32 %v1271, %v1272
        %v1274 = vand.u32 %v1273, 4294901760
        %1275 = vmatpush1.msra.mxu0 %v1274
        %v1276 = vand.u32 %v731, 4294901760
        %v1277 = vsub.f32 %v731, %v1276
        %v1278 = vand.u32 %v1277, 4294901760
        %v1279 = vsub.f32 %v1277, %v1278
        %v1280 = vand.u32 %v1279, 4294901760
        %1281 = vmatprep.subr.mxu0 %v1280
        %v1282 = vand.u32 %v730, 4294901760
        %v1283 = vsub.f32 %v730, %v1282
        %v1284 = vand.u32 %v1283, 4294901760
        %v1285 = vsub.f32 %v1283, %v1284
        %v1286 = vand.u32 %v1285, 4294901760
        %1287 = vmatpush1.msra.mxu0 %v1286
        %v1288 = vand.u32 %v735, 4294901760
        %v1289 = vsub.f32 %v735, %v1288
        %v1290 = vand.u32 %v1289, 4294901760
        %v1291 = vsub.f32 %v1289, %v1290
        %v1292 = vand.u32 %v1291, 4294901760
        %1293 = vmatprep.subr.mxu0 %v1292
        %v1294 = vand.u32 %v734, 4294901760
        %v1295 = vsub.f32 %v734, %v1294
        %v1296 = vand.u32 %v1295, 4294901760
        %v1297 = vsub.f32 %v1295, %v1296
        %v1298 = vand.u32 %v1297, 4294901760
        %1299 = vmatpush1.msra.mxu0 %v1298
        %v1300 = vand.u32 %v739, 4294901760
        %v1301 = vsub.f32 %v739, %v1300
        %v1302 = vand.u32 %v1301, 4294901760
        %v1303 = vsub.f32 %v1301, %v1302
        %v1304 = vand.u32 %v1303, 4294901760
        %1305 = vmatprep.subr.mxu0 %v1304
        %v1306 = vand.u32 %v738, 4294901760
        %v1307 = vsub.f32 %v738, %v1306
        %v1308 = vand.u32 %v1307, 4294901760
        %v1309 = vsub.f32 %v1307, %v1308
        %v1310 = vand.u32 %v1309, 4294901760
        %1311 = vmatpush1.msra.mxu0 %v1310
        %1312 = vmatprep.subr.mxu0 0.0
        %1313 = vmatpush1.msra.mxu0 0.0
        %1314 = vmatprep.subr.mxu0 0.0
        %1315 = vmatpush1.msra.mxu0 0.0
        %1316 = vmatprep.subr.mxu0 0.0
        %1317 = vmatpush1.msra.mxu0 0.0
        %1318 = vmatprep.subr.mxu0 0.0
        %1319 = vmatpush1.msra.mxu0 0.0
        %1320 = vmatprep.subr.mxu0 0.0
        %1321 = vmatpush1.msra.mxu0 0.0
        %1322 = vmatprep.subr.mxu0 0.0
        %1323 = vmatpush1.msra.mxu0 0.0
        %1324 = vmatprep.subr.mxu0 0.0
        %1325 = vmatpush1.msra.mxu0 0.0
        %1326 = vmatprep.subr.mxu0 0.0
        %1327 = vmatpush1.msra.mxu0 0.0
        %v1328 = vand.u32 %v760, 4294901760
        %1329 = vmatprep.mubr.f32.mxu0 %v1328
        %v1330 = vand.u32 %v742, 4294901760
        %1331 = vmatmul.mubr.f32.gmra.mrb[0].mxu0 %v1330
        %v1332 = vpop.f32.mrb[0].mxu0
        %v1333 = vadd.f32 %v908, %v1332
        %v1334 = vpop.f32.mrb[0].mxu0
        %v1335 = vadd.f32 %v910, %v1334
        %v1336 = vand.u32 %v763, 4294901760
        %1337 = vmatprep.mubr.f32.mxu0 %v1336
        %v1338 = vand.u32 %v744, 4294901760
        %1339 = vmatmul.mubr.f32.gmra.mrb[0].mxu0 %v1338
        %v1340 = vpop.f32.mrb[0].mxu0
        %v1341 = vadd.f32 %v924, %v1340
        %v1342 = vpop.f32.mrb[0].mxu0
        %v1343 = vadd.f32 %v926, %v1342
        %v1344 = vand.u32 %v766, 4294901760
        %1345 = vmatprep.mubr.f32.mxu0 %v1344
        %v1346 = vand.u32 %v746, 4294901760
        %1347 = vmatmul.mubr.f32.gmra.mrb[0].mxu0 %v1346
        %v1348 = vpop.f32.mrb[0].mxu0
        %v1349 = vadd.f32 %v940, %v1348
        %v1350 = vpop.f32.mrb[0].mxu0
        %v1351 = vadd.f32 %v942, %v1350
        %v1352 = vand.u32 %v769, 4294901760
        %1353 = vmatprep.mubr.f32.mxu0 %v1352
        %v1354 = vand.u32 %v748, 4294901760
        %1355 = vmatmul.mubr.f32.gmra.mrb[0].mxu0 %v1354
        %v1356 = vpop.f32.mrb[0].mxu0
        %v1357 = vadd.f32 %v956, %v1356
        %v1358 = vpop.f32.mrb[0].mxu0
        %v1359 = vadd.f32 %v958, %v1358
        %v1360 = vand.u32 %v772, 4294901760
        %1361 = vmatprep.mubr.f32.mxu0 %v1360
        %v1362 = vand.u32 %v750, 4294901760
        %1363 = vmatmul.mubr.f32.gmra.mrb[0].mxu0 %v1362
        %v1364 = vpop.f32.mrb[0].mxu0
        %v1365 = vadd.f32 %v972, %v1364
        %v1366 = vpop.f32.mrb[0].mxu0
        %v1367 = vadd.f32 %v974, %v1366
        %v1368 = vand.u32 %v775, 4294901760
        %1369 = vmatprep.mubr.f32.mxu0 %v1368
        %v1370 = vand.u32 %v752, 4294901760
        %1371 = vmatmul.mubr.f32.gmra.mrb[0].mxu0 %v1370
        %v1372 = vpop.f32.mrb[0].mxu0
        %v1373 = vadd.f32 %v988, %v1372
        %v1374 = vpop.f32.mrb[0].mxu0
        %v1375 = vadd.f32 %v990, %v1374
        %v1376 = vand.u32 %v778, 4294901760
        %1377 = vmatprep.mubr.f32.mxu0 %v1376
        %v1378 = vand.u32 %v754, 4294901760
        %1379 = vmatmul.mubr.f32.gmra.mrb[0].mxu0 %v1378
        %v1380 = vpop.f32.mrb[0].mxu0
        %v1381 = vadd.f32 %v1004, %v1380
        %v1382 = vpop.f32.mrb[0].mxu0
        %v1383 = vadd.f32 %v1006, %v1382
        %v1384 = vand.u32 %v781, 4294901760
        %1385 = vmatprep.mubr.f32.mxu0 %v1384
        %v1386 = vand.u32 %v756, 4294901760
        %1387 = vmatmul.mubr.f32.gmra.mrb[0].mxu0 %v1386
        %v1388 = vpop.f32.mrb[0].mxu0
        %v1389 = vadd.f32 %v1020, %v1388
        %v1390 = vpop.f32.mrb[0].mxu0
        %v1391 = vadd.f32 %v1022, %v1390
        %1392 = vdwg.mxu0
        %v1393 = vand.u32 %v647, 4294901760
        %v1394 = vsub.f32 %v647, %v1393
        %1395 = vmatprep.subr.mxu0 %v1394
        %v1396 = vand.u32 %v646, 4294901760
        %v1397 = vsub.f32 %v646, %v1396
        %1398 = vmatpush1.msra.mxu0 %v1397
        %v1399 = vand.u32 %v651, 4294901760
        %v1400 = vsub.f32 %v651, %v1399
        %1401 = vmatprep.subr.mxu0 %v1400
        %v1402 = vand.u32 %v650, 4294901760
        %v1403 = vsub.f32 %v650, %v1402
        %1404 = vmatpush1.msra.mxu0 %v1403
        %v1405 = vand.u32 %v655, 4294901760
        %v1406 = vsub.f32 %v655, %v1405
        %1407 = vmatprep.subr.mxu0 %v1406
        %v1408 = vand.u32 %v654, 4294901760
        %v1409 = vsub.f32 %v654, %v1408
        %1410 = vmatpush1.msra.mxu0 %v1409
        %v1411 = vand.u32 %v659, 4294901760
        %v1412 = vsub.f32 %v659, %v1411
        %1413 = vmatprep.subr.mxu0 %v1412
        %v1414 = vand.u32 %v658, 4294901760
        %v1415 = vsub.f32 %v658, %v1414
        %1416 = vmatpush1.msra.mxu0 %v1415
        %v1417 = vand.u32 %v663, 4294901760
        %v1418 = vsub.f32 %v663, %v1417
        %1419 = vmatprep.subr.mxu0 %v1418
        %v1420 = vand.u32 %v662, 4294901760
        %v1421 = vsub.f32 %v662, %v1420
        %1422 = vmatpush1.msra.mxu0 %v1421
        %v1423 = vand.u32 %v667, 4294901760
        %v1424 = vsub.f32 %v667, %v1423
        %1425 = vmatprep.subr.mxu0 %v1424
        %v1426 = vand.u32 %v666, 4294901760
        %v1427 = vsub.f32 %v666, %v1426
        %1428 = vmatpush1.msra.mxu0 %v1427
        %v1429 = vand.u32 %v671, 4294901760
        %v1430 = vsub.f32 %v671, %v1429
        %1431 = vmatprep.subr.mxu0 %v1430
        %v1432 = vand.u32 %v670, 4294901760
        %v1433 = vsub.f32 %v670, %v1432
        %1434 = vmatpush1.msra.mxu0 %v1433
        %v1435 = vand.u32 %v675, 4294901760
        %v1436 = vsub.f32 %v675, %v1435
        %1437 = vmatprep.subr.mxu0 %v1436
        %v1438 = vand.u32 %v674, 4294901760
        %v1439 = vsub.f32 %v674, %v1438
        %1440 = vmatpush1.msra.mxu0 %v1439
        %v1441 = vand.u32 %v679, 4294901760
        %v1442 = vsub.f32 %v679, %v1441
        %1443 = vmatprep.subr.mxu0 %v1442
        %v1444 = vand.u32 %v678, 4294901760
        %v1445 = vsub.f32 %v678, %v1444
        %1446 = vmatpush1.msra.mxu0 %v1445
        %v1447 = vand.u32 %v683, 4294901760
        %v1448 = vsub.f32 %v683, %v1447
        %1449 = vmatprep.subr.mxu0 %v1448
        %v1450 = vand.u32 %v682, 4294901760
        %v1451 = vsub.f32 %v682, %v1450
        %1452 = vmatpush1.msra.mxu0 %v1451
        %v1453 = vand.u32 %v687, 4294901760
        %v1454 = vsub.f32 %v687, %v1453
        %1455 = vmatprep.subr.mxu0 %v1454
        %v1456 = vand.u32 %v686, 4294901760
        %v1457 = vsub.f32 %v686, %v1456
        %1458 = vmatpush1.msra.mxu0 %v1457
        %v1459 = vand.u32 %v691, 4294901760
        %v1460 = vsub.f32 %v691, %v1459
        %1461 = vmatprep.subr.mxu0 %v1460
        %v1462 = vand.u32 %v690, 4294901760
        %v1463 = vsub.f32 %v690, %v1462
        %1464 = vmatpush1.msra.mxu0 %v1463
        %v1465 = vand.u32 %v695, 4294901760
        %v1466 = vsub.f32 %v695, %v1465
        %1467 = vmatprep.subr.mxu0 %v1466
        %v1468 = vand.u32 %v694, 4294901760
        %v1469 = vsub.f32 %v694, %v1468
        %1470 = vmatpush1.msra.mxu0 %v1469
        %v1471 = vand.u32 %v699, 4294901760
        %v1472 = vsub.f32 %v699, %v1471
        %1473 = vmatprep.subr.mxu0 %v1472
        %v1474 = vand.u32 %v698, 4294901760
        %v1475 = vsub.f32 %v698, %v1474
        %1476 = vmatpush1.msra.mxu0 %v1475
        %v1477 = vand.u32 %v703, 4294901760
        %v1478 = vsub.f32 %v703, %v1477
        %1479 = vmatprep.subr.mxu0 %v1478
        %v1480 = vand.u32 %v702, 4294901760
        %v1481 = vsub.f32 %v702, %v1480
        %1482 = vmatpush1.msra.mxu0 %v1481
        %v1483 = vand.u32 %v707, 4294901760
        %v1484 = vsub.f32 %v707, %v1483
        %1485 = vmatprep.subr.mxu0 %v1484
        %v1486 = vand.u32 %v706, 4294901760
        %v1487 = vsub.f32 %v706, %v1486
        %1488 = vmatpush1.msra.mxu0 %v1487
        %v1489 = vand.u32 %v711, 4294901760
        %v1490 = vsub.f32 %v711, %v1489
        %1491 = vmatprep.subr.mxu0 %v1490
        %v1492 = vand.u32 %v710, 4294901760
        %v1493 = vsub.f32 %v710, %v1492
        %1494 = vmatpush1.msra.mxu0 %v1493
        %v1495 = vand.u32 %v715, 4294901760
        %v1496 = vsub.f32 %v715, %v1495
        %1497 = vmatprep.subr.mxu0 %v1496
        %v1498 = vand.u32 %v714, 4294901760
        %v1499 = vsub.f32 %v714, %v1498
        %1500 = vmatpush1.msra.mxu0 %v1499
        %v1501 = vand.u32 %v719, 4294901760
        %v1502 = vsub.f32 %v719, %v1501
        %1503 = vmatprep.subr.mxu0 %v1502
        %v1504 = vand.u32 %v718, 4294901760
        %v1505 = vsub.f32 %v718, %v1504
        %1506 = vmatpush1.msra.mxu0 %v1505
        %v1507 = vand.u32 %v723, 4294901760
        %v1508 = vsub.f32 %v723, %v1507
        %1509 = vmatprep.subr.mxu0 %v1508
        %v1510 = vand.u32 %v722, 4294901760
        %v1511 = vsub.f32 %v722, %v1510
        %1512 = vmatpush1.msra.mxu0 %v1511
        %v1513 = vand.u32 %v727, 4294901760
        %v1514 = vsub.f32 %v727, %v1513
        %1515 = vmatprep.subr.mxu0 %v1514
        %v1516 = vand.u32 %v726, 4294901760
        %v1517 = vsub.f32 %v726, %v1516
        %1518 = vmatpush1.msra.mxu0 %v1517
        %v1519 = vand.u32 %v731, 4294901760
        %v1520 = vsub.f32 %v731, %v1519
        %1521 = vmatprep.subr.mxu0 %v1520
        %v1522 = vand.u32 %v730, 4294901760
        %v1523 = vsub.f32 %v730, %v1522
        %1524 = vmatpush1.msra.mxu0 %v1523
        %v1525 = vand.u32 %v735, 4294901760
        %v1526 = vsub.f32 %v735, %v1525
        %1527 = vmatprep.subr.mxu0 %v1526
        %v1528 = vand.u32 %v734, 4294901760
        %v1529 = vsub.f32 %v734, %v1528
        %1530 = vmatpush1.msra.mxu0 %v1529
        %v1531 = vand.u32 %v739, 4294901760
        %v1532 = vsub.f32 %v739, %v1531
        %1533 = vmatprep.subr.mxu0 %v1532
        %v1534 = vand.u32 %v738, 4294901760
        %v1535 = vsub.f32 %v738, %v1534
        %1536 = vmatpush1.msra.mxu0 %v1535
        %1537 = vmatprep.subr.mxu0 0.0
        %1538 = vmatpush1.msra.mxu0 0.0
        %1539 = vmatprep.subr.mxu0 0.0
        %1540 = vmatpush1.msra.mxu0 0.0
        %1541 = vmatprep.subr.mxu0 0.0
        %1542 = vmatpush1.msra.mxu0 0.0
        %1543 = vmatprep.subr.mxu0 0.0
        %1544 = vmatpush1.msra.mxu0 0.0
        %1545 = vmatprep.subr.mxu0 0.0
        %1546 = vmatpush1.msra.mxu0 0.0
        %1547 = vmatprep.subr.mxu0 0.0
        %1548 = vmatpush1.msra.mxu0 0.0
        %1549 = vmatprep.subr.mxu0 0.0
        %1550 = vmatpush1.msra.mxu0 0.0
        %1551 = vmatprep.subr.mxu0 0.0
        %1552 = vmatpush1.msra.mxu0 0.0
        %v1553 = vand.u32 %v760, 4294901760
        %v1554 = vsub.f32 %v760, %v1553
        %1555 = vmatprep.mubr.f32.mxu0 %v1554
        %v1556 = vand.u32 %v742, 4294901760
        %v1557 = vsub.f32 %v742, %v1556
        %1558 = vmatmul.mubr.f32.gmra.mrb[0].mxu0 %v1557
        %v1559 = vpop.f32.mrb[0].mxu0
        %v1560 = vadd.f32 %v1333, %v1559
        %v1561 = vpop.f32.mrb[0].mxu0
        %v1562 = vadd.f32 %v1335, %v1561
        %v1563 = vand.u32 %v763, 4294901760
        %v1564 = vsub.f32 %v763, %v1563
        %1565 = vmatprep.mubr.f32.mxu0 %v1564
        %v1566 = vand.u32 %v744, 4294901760
        %v1567 = vsub.f32 %v744, %v1566
        %1568 = vmatmul.mubr.f32.gmra.mrb[0].mxu0 %v1567
        %v1569 = vpop.f32.mrb[0].mxu0
        %v1570 = vadd.f32 %v1341, %v1569
        %v1571 = vpop.f32.mrb[0].mxu0
        %v1572 = vadd.f32 %v1343, %v1571
        %v1573 = vand.u32 %v766, 4294901760
        %v1574 = vsub.f32 %v766, %v1573
        %1575 = vmatprep.mubr.f32.mxu0 %v1574
        %v1576 = vand.u32 %v746, 4294901760
        %v1577 = vsub.f32 %v746, %v1576
        %1578 = vmatmul.mubr.f32.gmra.mrb[0].mxu0 %v1577
        %v1579 = vpop.f32.mrb[0].mxu0
        %v1580 = vadd.f32 %v1349, %v1579
        %v1581 = vpop.f32.mrb[0].mxu0
        %v1582 = vadd.f32 %v1351, %v1581
        %v1583 = vand.u32 %v769, 4294901760
        %v1584 = vsub.f32 %v769, %v1583
        %1585 = vmatprep.mubr.f32.mxu0 %v1584
        %v1586 = vand.u32 %v748, 4294901760
        %v1587 = vsub.f32 %v748, %v1586
        %1588 = vmatmul.mubr.f32.gmra.mrb[0].mxu0 %v1587
        %v1589 = vpop.f32.mrb[0].mxu0
        %v1590 = vadd.f32 %v1357, %v1589
        %v1591 = vpop.f32.mrb[0].mxu0
        %v1592 = vadd.f32 %v1359, %v1591
        %v1593 = vand.u32 %v772, 4294901760
        %v1594 = vsub.f32 %v772, %v1593
        %1595 = vmatprep.mubr.f32.mxu0 %v1594
        %v1596 = vand.u32 %v750, 4294901760
        %v1597 = vsub.f32 %v750, %v1596
        %1598 = vmatmul.mubr.f32.gmra.mrb[0].mxu0 %v1597
        %v1599 = vpop.f32.mrb[0].mxu0
        %v1600 = vadd.f32 %v1365, %v1599
        %v1601 = vpop.f32.mrb[0].mxu0
        %v1602 = vadd.f32 %v1367, %v1601
        %v1603 = vand.u32 %v775, 4294901760
        %v1604 = vsub.f32 %v775, %v1603
        %1605 = vmatprep.mubr.f32.mxu0 %v1604
        %v1606 = vand.u32 %v752, 4294901760
        %v1607 = vsub.f32 %v752, %v1606
        %1608 = vmatmul.mubr.f32.gmra.mrb[0].mxu0 %v1607
        %v1609 = vpop.f32.mrb[0].mxu0
        %v1610 = vadd.f32 %v1373, %v1609
        %v1611 = vpop.f32.mrb[0].mxu0
        %v1612 = vadd.f32 %v1375, %v1611
        %v1613 = vand.u32 %v778, 4294901760
        %v1614 = vsub.f32 %v778, %v1613
        %1615 = vmatprep.mubr.f32.mxu0 %v1614
        %v1616 = vand.u32 %v754, 4294901760
        %v1617 = vsub.f32 %v754, %v1616
        %1618 = vmatmul.mubr.f32.gmra.mrb[0].mxu0 %v1617
        %v1619 = vpop.f32.mrb[0].mxu0
        %v1620 = vadd.f32 %v1381, %v1619
        %v1621 = vpop.f32.mrb[0].mxu0
        %v1622 = vadd.f32 %v1383, %v1621
        %v1623 = vand.u32 %v781, 4294901760
        %v1624 = vsub.f32 %v781, %v1623
        %1625 = vmatprep.mubr.f32.mxu0 %v1624
        %v1626 = vand.u32 %v756, 4294901760
        %v1627 = vsub.f32 %v756, %v1626
        %1628 = vmatmul.mubr.f32.gmra.mrb[0].mxu0 %v1627
        %v1629 = vpop.f32.mrb[0].mxu0
        %v1630 = vadd.f32 %v1389, %v1629
        %v1631 = vpop.f32.mrb[0].mxu0
        %v1632 = vadd.f32 %v1391, %v1631
        %1633 = vdwg.mxu0
        %v1634 = vand.u32 %v647, 4294901760
        %1635 = vmatprep.subr.mxu0 %v1634
        %v1636 = vand.u32 %v646, 4294901760
        %1637 = vmatpush1.msra.mxu0 %v1636
        %v1638 = vand.u32 %v651, 4294901760
        %1639 = vmatprep.subr.mxu0 %v1638
        %v1640 = vand.u32 %v650, 4294901760
        %1641 = vmatpush1.msra.mxu0 %v1640
        %v1642 = vand.u32 %v655, 4294901760
        %1643 = vmatprep.subr.mxu0 %v1642
        %v1644 = vand.u32 %v654, 4294901760
        %1645 = vmatpush1.msra.mxu0 %v1644
        %v1646 = vand.u32 %v659, 4294901760
        %1647 = vmatprep.subr.mxu0 %v1646
        %v1648 = vand.u32 %v658, 4294901760
        %1649 = vmatpush1.msra.mxu0 %v1648
        %v1650 = vand.u32 %v663, 4294901760
        %1651 = vmatprep.subr.mxu0 %v1650
        %v1652 = vand.u32 %v662, 4294901760
        %1653 = vmatpush1.msra.mxu0 %v1652
        %v1654 = vand.u32 %v667, 4294901760
        %1655 = vmatprep.subr.mxu0 %v1654
        %v1656 = vand.u32 %v666, 4294901760
        %1657 = vmatpush1.msra.mxu0 %v1656
        %v1658 = vand.u32 %v671, 4294901760
        %1659 = vmatprep.subr.mxu0 %v1658
        %v1660 = vand.u32 %v670, 4294901760
        %1661 = vmatpush1.msra.mxu0 %v1660
        %v1662 = vand.u32 %v675, 4294901760
        %1663 = vmatprep.subr.mxu0 %v1662
        %v1664 = vand.u32 %v674, 4294901760
        %1665 = vmatpush1.msra.mxu0 %v1664
        %v1666 = vand.u32 %v679, 4294901760
        %1667 = vmatprep.subr.mxu0 %v1666
        %v1668 = vand.u32 %v678, 4294901760
        %1669 = vmatpush1.msra.mxu0 %v1668
        %v1670 = vand.u32 %v683, 4294901760
        %1671 = vmatprep.subr.mxu0 %v1670
        %v1672 = vand.u32 %v682, 4294901760
        %1673 = vmatpush1.msra.mxu0 %v1672
        %v1674 = vand.u32 %v687, 4294901760
        %1675 = vmatprep.subr.mxu0 %v1674
        %v1676 = vand.u32 %v686, 4294901760
        %1677 = vmatpush1.msra.mxu0 %v1676
        %v1678 = vand.u32 %v691, 4294901760
        %1679 = vmatprep.subr.mxu0 %v1678
        %v1680 = vand.u32 %v690, 4294901760
        %1681 = vmatpush1.msra.mxu0 %v1680
        %v1682 = vand.u32 %v695, 4294901760
        %1683 = vmatprep.subr.mxu0 %v1682
        %v1684 = vand.u32 %v694, 4294901760
        %1685 = vmatpush1.msra.mxu0 %v1684
        %v1686 = vand.u32 %v699, 4294901760
        %1687 = vmatprep.subr.mxu0 %v1686
        %v1688 = vand.u32 %v698, 4294901760
        %1689 = vmatpush1.msra.mxu0 %v1688
        %v1690 = vand.u32 %v703, 4294901760
        %1691 = vmatprep.subr.mxu0 %v1690
        %v1692 = vand.u32 %v702, 4294901760
        %1693 = vmatpush1.msra.mxu0 %v1692
        %v1694 = vand.u32 %v707, 4294901760
        %1695 = vmatprep.subr.mxu0 %v1694
        %v1696 = vand.u32 %v706, 4294901760
        %1697 = vmatpush1.msra.mxu0 %v1696
        %v1698 = vand.u32 %v711, 4294901760
        %1699 = vmatprep.subr.mxu0 %v1698
        %v1700 = vand.u32 %v710, 4294901760
        %1701 = vmatpush1.msra.mxu0 %v1700
        %v1702 = vand.u32 %v715, 4294901760
        %1703 = vmatprep.subr.mxu0 %v1702
        %v1704 = vand.u32 %v714, 4294901760
        %1705 = vmatpush1.msra.mxu0 %v1704
        %v1706 = vand.u32 %v719, 4294901760
        %1707 = vmatprep.subr.mxu0 %v1706
        %v1708 = vand.u32 %v718, 4294901760
        %1709 = vmatpush1.msra.mxu0 %v1708
        %v1710 = vand.u32 %v723, 4294901760
        %1711 = vmatprep.subr.mxu0 %v1710
        %v1712 = vand.u32 %v722, 4294901760
        %1713 = vmatpush1.msra.mxu0 %v1712
        %v1714 = vand.u32 %v727, 4294901760
        %1715 = vmatprep.subr.mxu0 %v1714
        %v1716 = vand.u32 %v726, 4294901760
        %1717 = vmatpush1.msra.mxu0 %v1716
        %v1718 = vand.u32 %v731, 4294901760
        %1719 = vmatprep.subr.mxu0 %v1718
        %v1720 = vand.u32 %v730, 4294901760
        %1721 = vmatpush1.msra.mxu0 %v1720
        %v1722 = vand.u32 %v735, 4294901760
        %1723 = vmatprep.subr.mxu0 %v1722
        %v1724 = vand.u32 %v734, 4294901760
        %1725 = vmatpush1.msra.mxu0 %v1724
        %v1726 = vand.u32 %v739, 4294901760
        %1727 = vmatprep.subr.mxu0 %v1726
        %v1728 = vand.u32 %v738, 4294901760
        %1729 = vmatpush1.msra.mxu0 %v1728
        %1730 = vmatprep.subr.mxu0 0.0
        %1731 = vmatpush1.msra.mxu0 0.0
        %1732 = vmatprep.subr.mxu0 0.0
        %1733 = vmatpush1.msra.mxu0 0.0
        %1734 = vmatprep.subr.mxu0 0.0
        %1735 = vmatpush1.msra.mxu0 0.0
        %1736 = vmatprep.subr.mxu0 0.0
        %1737 = vmatpush1.msra.mxu0 0.0
        %1738 = vmatprep.subr.mxu0 0.0
        %1739 = vmatpush1.msra.mxu0 0.0
        %1740 = vmatprep.subr.mxu0 0.0
        %1741 = vmatpush1.msra.mxu0 0.0
        %1742 = vmatprep.subr.mxu0 0.0
        %1743 = vmatpush1.msra.mxu0 0.0
        %1744 = vmatprep.subr.mxu0 0.0
        %1745 = vmatpush1.msra.mxu0 0.0
        %v1746 = vand.u32 %v760, 4294901760
        %v1747 = vsub.f32 %v760, %v1746
        %v1748 = vand.u32 %v1747, 4294901760
        %1749 = vmatprep.mubr.f32.mxu0 %v1748
        %v1750 = vand.u32 %v742, 4294901760
        %v1751 = vsub.f32 %v742, %v1750
        %v1752 = vand.u32 %v1751, 4294901760
        %1753 = vmatmul.mubr.f32.gmra.mrb[0].mxu0 %v1752
        %v1754 = vpop.f32.mrb[0].mxu0
        %v1755 = vadd.f32 %v1560, %v1754
        %v1756 = vpop.f32.mrb[0].mxu0
        %v1757 = vadd.f32 %v1562, %v1756
        %v1758 = vand.u32 %v763, 4294901760
        %v1759 = vsub.f32 %v763, %v1758
        %v1760 = vand.u32 %v1759, 4294901760
        %1761 = vmatprep.mubr.f32.mxu0 %v1760
        %v1762 = vand.u32 %v744, 4294901760
        %v1763 = vsub.f32 %v744, %v1762
        %v1764 = vand.u32 %v1763, 4294901760
        %1765 = vmatmul.mubr.f32.gmra.mrb[0].mxu0 %v1764
        %v1766 = vpop.f32.mrb[0].mxu0
        %v1767 = vadd.f32 %v1570, %v1766
        %v1768 = vpop.f32.mrb[0].mxu0
        %v1769 = vadd.f32 %v1572, %v1768
        %v1770 = vand.u32 %v766, 4294901760
        %v1771 = vsub.f32 %v766, %v1770
        %v1772 = vand.u32 %v1771, 4294901760
        %1773 = vmatprep.mubr.f32.mxu0 %v1772
        %v1774 = vand.u32 %v746, 4294901760
        %v1775 = vsub.f32 %v746, %v1774
        %v1776 = vand.u32 %v1775, 4294901760
        %1777 = vmatmul.mubr.f32.gmra.mrb[0].mxu0 %v1776
        %v1778 = vpop.f32.mrb[0].mxu0
        %v1779 = vadd.f32 %v1580, %v1778
        %v1780 = vpop.f32.mrb[0].mxu0
        %v1781 = vadd.f32 %v1582, %v1780
        %v1782 = vand.u32 %v769, 4294901760
        %v1783 = vsub.f32 %v769, %v1782
        %v1784 = vand.u32 %v1783, 4294901760
        %1785 = vmatprep.mubr.f32.mxu0 %v1784
        %v1786 = vand.u32 %v748, 4294901760
        %v1787 = vsub.f32 %v748, %v1786
        %v1788 = vand.u32 %v1787, 4294901760
        %1789 = vmatmul.mubr.f32.gmra.mrb[0].mxu0 %v1788
        %v1790 = vpop.f32.mrb[0].mxu0
        %v1791 = vadd.f32 %v1590, %v1790
        %v1792 = vpop.f32.mrb[0].mxu0
        %v1793 = vadd.f32 %v1592, %v1792
        %v1794 = vand.u32 %v772, 4294901760
        %v1795 = vsub.f32 %v772, %v1794
        %v1796 = vand.u32 %v1795, 4294901760
        %1797 = vmatprep.mubr.f32.mxu0 %v1796
        %v1798 = vand.u32 %v750, 4294901760
        %v1799 = vsub.f32 %v750, %v1798
        %v1800 = vand.u32 %v1799, 4294901760
        %1801 = vmatmul.mubr.f32.gmra.mrb[0].mxu0 %v1800
        %v1802 = vpop.f32.mrb[0].mxu0
        %v1803 = vadd.f32 %v1600, %v1802
        %v1804 = vpop.f32.mrb[0].mxu0
        %v1805 = vadd.f32 %v1602, %v1804
        %v1806 = vand.u32 %v775, 4294901760
        %v1807 = vsub.f32 %v775, %v1806
        %v1808 = vand.u32 %v1807, 4294901760
        %1809 = vmatprep.mubr.f32.mxu0 %v1808
        %v1810 = vand.u32 %v752, 4294901760
        %v1811 = vsub.f32 %v752, %v1810
        %v1812 = vand.u32 %v1811, 4294901760
        %1813 = vmatmul.mubr.f32.gmra.mrb[0].mxu0 %v1812
        %v1814 = vpop.f32.mrb[0].mxu0
        %v1815 = vadd.f32 %v1610, %v1814
        %v1816 = vpop.f32.mrb[0].mxu0
        %v1817 = vadd.f32 %v1612, %v1816
        %v1818 = vand.u32 %v778, 4294901760
        %v1819 = vsub.f32 %v778, %v1818
        %v1820 = vand.u32 %v1819, 4294901760
        %1821 = vmatprep.mubr.f32.mxu0 %v1820
        %v1822 = vand.u32 %v754, 4294901760
        %v1823 = vsub.f32 %v754, %v1822
        %v1824 = vand.u32 %v1823, 4294901760
        %1825 = vmatmul.mubr.f32.gmra.mrb[0].mxu0 %v1824
        %v1826 = vpop.f32.mrb[0].mxu0
        %v1827 = vadd.f32 %v1620, %v1826
        %v1828 = vpop.f32.mrb[0].mxu0
        %v1829 = vadd.f32 %v1622, %v1828
        %v1830 = vand.u32 %v781, 4294901760
        %v1831 = vsub.f32 %v781, %v1830
        %v1832 = vand.u32 %v1831, 4294901760
        %1833 = vmatprep.mubr.f32.mxu0 %v1832
        %v1834 = vand.u32 %v756, 4294901760
        %v1835 = vsub.f32 %v756, %v1834
        %v1836 = vand.u32 %v1835, 4294901760
        %1837 = vmatmul.mubr.f32.gmra.mrb[0].mxu0 %v1836
        %v1838 = vpop.f32.mrb[0].mxu0
        %v1839 = vadd.f32 %v1630, %v1838
        %v1840 = vpop.f32.mrb[0].mxu0
        %v1841 = vadd.f32 %v1632, %v1840
        %1842 = vdwg.mxu0
        %v1843 = vand.u32 %v647, 4294901760
        %v1844 = vsub.f32 %v647, %v1843
        %v1845 = vand.u32 %v1844, 4294901760
        %1846 = vmatprep.subr.mxu0 %v1845
        %v1847 = vand.u32 %v646, 4294901760
        %v1848 = vsub.f32 %v646, %v1847
        %v1849 = vand.u32 %v1848, 4294901760
        %1850 = vmatpush1.msra.mxu0 %v1849
        %v1851 = vand.u32 %v651, 4294901760
        %v1852 = vsub.f32 %v651, %v1851
        %v1853 = vand.u32 %v1852, 4294901760
        %1854 = vmatprep.subr.mxu0 %v1853
        %v1855 = vand.u32 %v650, 4294901760
        %v1856 = vsub.f32 %v650, %v1855
        %v1857 = vand.u32 %v1856, 4294901760
        %1858 = vmatpush1.msra.mxu0 %v1857
        %v1859 = vand.u32 %v655, 4294901760
        %v1860 = vsub.f32 %v655, %v1859
        %v1861 = vand.u32 %v1860, 4294901760
        %1862 = vmatprep.subr.mxu0 %v1861
        %v1863 = vand.u32 %v654, 4294901760
        %v1864 = vsub.f32 %v654, %v1863
        %v1865 = vand.u32 %v1864, 4294901760
        %1866 = vmatpush1.msra.mxu0 %v1865
        %v1867 = vand.u32 %v659, 4294901760
        %v1868 = vsub.f32 %v659, %v1867
        %v1869 = vand.u32 %v1868, 4294901760
        %1870 = vmatprep.subr.mxu0 %v1869
        %v1871 = vand.u32 %v658, 4294901760
        %v1872 = vsub.f32 %v658, %v1871
        %v1873 = vand.u32 %v1872, 4294901760
        %1874 = vmatpush1.msra.mxu0 %v1873
        %v1875 = vand.u32 %v663, 4294901760
        %v1876 = vsub.f32 %v663, %v1875
        %v1877 = vand.u32 %v1876, 4294901760
        %1878 = vmatprep.subr.mxu0 %v1877
        %v1879 = vand.u32 %v662, 4294901760
        %v1880 = vsub.f32 %v662, %v1879
        %v1881 = vand.u32 %v1880, 4294901760
        %1882 = vmatpush1.msra.mxu0 %v1881
        %v1883 = vand.u32 %v667, 4294901760
        %v1884 = vsub.f32 %v667, %v1883
        %v1885 = vand.u32 %v1884, 4294901760
        %1886 = vmatprep.subr.mxu0 %v1885
        %v1887 = vand.u32 %v666, 4294901760
        %v1888 = vsub.f32 %v666, %v1887
        %v1889 = vand.u32 %v1888, 4294901760
        %1890 = vmatpush1.msra.mxu0 %v1889
        %v1891 = vand.u32 %v671, 4294901760
        %v1892 = vsub.f32 %v671, %v1891
        %v1893 = vand.u32 %v1892, 4294901760
        %1894 = vmatprep.subr.mxu0 %v1893
        %v1895 = vand.u32 %v670, 4294901760
        %v1896 = vsub.f32 %v670, %v1895
        %v1897 = vand.u32 %v1896, 4294901760
        %1898 = vmatpush1.msra.mxu0 %v1897
        %v1899 = vand.u32 %v675, 4294901760
        %v1900 = vsub.f32 %v675, %v1899
        %v1901 = vand.u32 %v1900, 4294901760
        %1902 = vmatprep.subr.mxu0 %v1901
        %v1903 = vand.u32 %v674, 4294901760
        %v1904 = vsub.f32 %v674, %v1903
        %v1905 = vand.u32 %v1904, 4294901760
        %1906 = vmatpush1.msra.mxu0 %v1905
        %v1907 = vand.u32 %v679, 4294901760
        %v1908 = vsub.f32 %v679, %v1907
        %v1909 = vand.u32 %v1908, 4294901760
        %1910 = vmatprep.subr.mxu0 %v1909
        %v1911 = vand.u32 %v678, 4294901760
        %v1912 = vsub.f32 %v678, %v1911
        %v1913 = vand.u32 %v1912, 4294901760
        %1914 = vmatpush1.msra.mxu0 %v1913
        %v1915 = vand.u32 %v683, 4294901760
        %v1916 = vsub.f32 %v683, %v1915
        %v1917 = vand.u32 %v1916, 4294901760
        %1918 = vmatprep.subr.mxu0 %v1917
        %v1919 = vand.u32 %v682, 4294901760
        %v1920 = vsub.f32 %v682, %v1919
        %v1921 = vand.u32 %v1920, 4294901760
        %1922 = vmatpush1.msra.mxu0 %v1921
        %v1923 = vand.u32 %v687, 4294901760
        %v1924 = vsub.f32 %v687, %v1923
        %v1925 = vand.u32 %v1924, 4294901760
        %1926 = vmatprep.subr.mxu0 %v1925
        %v1927 = vand.u32 %v686, 4294901760
        %v1928 = vsub.f32 %v686, %v1927
        %v1929 = vand.u32 %v1928, 4294901760
        %1930 = vmatpush1.msra.mxu0 %v1929
        %v1931 = vand.u32 %v691, 4294901760
        %v1932 = vsub.f32 %v691, %v1931
        %v1933 = vand.u32 %v1932, 4294901760
        %1934 = vmatprep.subr.mxu0 %v1933
        %v1935 = vand.u32 %v690, 4294901760
        %v1936 = vsub.f32 %v690, %v1935
        %v1937 = vand.u32 %v1936, 4294901760
        %1938 = vmatpush1.msra.mxu0 %v1937
        %v1939 = vand.u32 %v695, 4294901760
        %v1940 = vsub.f32 %v695, %v1939
        %v1941 = vand.u32 %v1940, 4294901760
        %1942 = vmatprep.subr.mxu0 %v1941
        %v1943 = vand.u32 %v694, 4294901760
        %v1944 = vsub.f32 %v694, %v1943
        %v1945 = vand.u32 %v1944, 4294901760
        %1946 = vmatpush1.msra.mxu0 %v1945
        %v1947 = vand.u32 %v699, 4294901760
        %v1948 = vsub.f32 %v699, %v1947
        %v1949 = vand.u32 %v1948, 4294901760
        %1950 = vmatprep.subr.mxu0 %v1949
        %v1951 = vand.u32 %v698, 4294901760
        %v1952 = vsub.f32 %v698, %v1951
        %v1953 = vand.u32 %v1952, 4294901760
        %1954 = vmatpush1.msra.mxu0 %v1953
        %v1955 = vand.u32 %v703, 4294901760
        %v1956 = vsub.f32 %v703, %v1955
        %v1957 = vand.u32 %v1956, 4294901760
        %1958 = vmatprep.subr.mxu0 %v1957
        %v1959 = vand.u32 %v702, 4294901760
        %v1960 = vsub.f32 %v702, %v1959
        %v1961 = vand.u32 %v1960, 4294901760
        %1962 = vmatpush1.msra.mxu0 %v1961
        %v1963 = vand.u32 %v707, 4294901760
        %v1964 = vsub.f32 %v707, %v1963
        %v1965 = vand.u32 %v1964, 4294901760
        %1966 = vmatprep.subr.mxu0 %v1965
        %v1967 = vand.u32 %v706, 4294901760
        %v1968 = vsub.f32 %v706, %v1967
        %v1969 = vand.u32 %v1968, 4294901760
        %1970 = vmatpush1.msra.mxu0 %v1969
        %v1971 = vand.u32 %v711, 4294901760
        %v1972 = vsub.f32 %v711, %v1971
        %v1973 = vand.u32 %v1972, 4294901760
        %1974 = vmatprep.subr.mxu0 %v1973
        %v1975 = vand.u32 %v710, 4294901760
        %v1976 = vsub.f32 %v710, %v1975
        %v1977 = vand.u32 %v1976, 4294901760
        %1978 = vmatpush1.msra.mxu0 %v1977
        %v1979 = vand.u32 %v715, 4294901760
        %v1980 = vsub.f32 %v715, %v1979
        %v1981 = vand.u32 %v1980, 4294901760
        %1982 = vmatprep.subr.mxu0 %v1981
        %v1983 = vand.u32 %v714, 4294901760
        %v1984 = vsub.f32 %v714, %v1983
        %v1985 = vand.u32 %v1984, 4294901760
        %1986 = vmatpush1.msra.mxu0 %v1985
        %v1987 = vand.u32 %v719, 4294901760
        %v1988 = vsub.f32 %v719, %v1987
        %v1989 = vand.u32 %v1988, 4294901760
        %1990 = vmatprep.subr.mxu0 %v1989
        %v1991 = vand.u32 %v718, 4294901760
        %v1992 = vsub.f32 %v718, %v1991
        %v1993 = vand.u32 %v1992, 4294901760
        %1994 = vmatpush1.msra.mxu0 %v1993
        %v1995 = vand.u32 %v723, 4294901760
        %v1996 = vsub.f32 %v723, %v1995
        %v1997 = vand.u32 %v1996, 4294901760
        %1998 = vmatprep.subr.mxu0 %v1997
        %v1999 = vand.u32 %v722, 4294901760
        %v2000 = vsub.f32 %v722, %v1999
        %v2001 = vand.u32 %v2000, 4294901760
        %2002 = vmatpush1.msra.mxu0 %v2001
        %v2003 = vand.u32 %v727, 4294901760
        %v2004 = vsub.f32 %v727, %v2003
        %v2005 = vand.u32 %v2004, 4294901760
        %2006 = vmatprep.subr.mxu0 %v2005
        %v2007 = vand.u32 %v726, 4294901760
        %v2008 = vsub.f32 %v726, %v2007
        %v2009 = vand.u32 %v2008, 4294901760
        %2010 = vmatpush1.msra.mxu0 %v2009
        %v2011 = vand.u32 %v731, 4294901760
        %v2012 = vsub.f32 %v731, %v2011
        %v2013 = vand.u32 %v2012, 4294901760
        %2014 = vmatprep.subr.mxu0 %v2013
        %v2015 = vand.u32 %v730, 4294901760
        %v2016 = vsub.f32 %v730, %v2015
        %v2017 = vand.u32 %v2016, 4294901760
        %2018 = vmatpush1.msra.mxu0 %v2017
        %v2019 = vand.u32 %v735, 4294901760
        %v2020 = vsub.f32 %v735, %v2019
        %v2021 = vand.u32 %v2020, 4294901760
        %2022 = vmatprep.subr.mxu0 %v2021
        %v2023 = vand.u32 %v734, 4294901760
        %v2024 = vsub.f32 %v734, %v2023
        %v2025 = vand.u32 %v2024, 4294901760
        %2026 = vmatpush1.msra.mxu0 %v2025
        %v2027 = vand.u32 %v739, 4294901760
        %v2028 = vsub.f32 %v739, %v2027
        %v2029 = vand.u32 %v2028, 4294901760
        %2030 = vmatprep.subr.mxu0 %v2029
        %v2031 = vand.u32 %v738, 4294901760
        %v2032 = vsub.f32 %v738, %v2031
        %v2033 = vand.u32 %v2032, 4294901760
        %2034 = vmatpush1.msra.mxu0 %v2033
        %2035 = vmatprep.subr.mxu0 0.0
        %2036 = vmatpush1.msra.mxu0 0.0
        %2037 = vmatprep.subr.mxu0 0.0
        %2038 = vmatpush1.msra.mxu0 0.0
        %2039 = vmatprep.subr.mxu0 0.0
        %2040 = vmatpush1.msra.mxu0 0.0
        %2041 = vmatprep.subr.mxu0 0.0
        %2042 = vmatpush1.msra.mxu0 0.0
        %2043 = vmatprep.subr.mxu0 0.0
        %2044 = vmatpush1.msra.mxu0 0.0
        %2045 = vmatprep.subr.mxu0 0.0
        %2046 = vmatpush1.msra.mxu0 0.0
        %2047 = vmatprep.subr.mxu0 0.0
        %2048 = vmatpush1.msra.mxu0 0.0
        %2049 = vmatprep.subr.mxu0 0.0
        %2050 = vmatpush1.msra.mxu0 0.0
        %v2051 = vand.u32 %v760, 4294901760
        %2052 = vmatprep.mubr.f32.mxu0 %v2051
        %v2053 = vand.u32 %v742, 4294901760
        %2054 = vmatmul.mubr.f32.gmra.mrb[0].mxu0 %v2053
        %v2055 = vpop.f32.mrb[0].mxu0
        %v2056 = vadd.f32 %v1755, %v2055
        %v2057 = vpop.f32.mrb[0].mxu0
        %v2058 = vadd.f32 %v1757, %v2057
        %v2059 = vand.u32 %v763, 4294901760
        %2060 = vmatprep.mubr.f32.mxu0 %v2059
        %v2061 = vand.u32 %v744, 4294901760
        %2062 = vmatmul.mubr.f32.gmra.mrb[0].mxu0 %v2061
        %v2063 = vpop.f32.mrb[0].mxu0
        %v2064 = vadd.f32 %v1767, %v2063
        %v2065 = vpop.f32.mrb[0].mxu0
        %v2066 = vadd.f32 %v1769, %v2065
        %v2067 = vand.u32 %v766, 4294901760
        %2068 = vmatprep.mubr.f32.mxu0 %v2067
        %v2069 = vand.u32 %v746, 4294901760
        %2070 = vmatmul.mubr.f32.gmra.mrb[0].mxu0 %v2069
        %v2071 = vpop.f32.mrb[0].mxu0
        %v2072 = vadd.f32 %v1779, %v2071
        %v2073 = vpop.f32.mrb[0].mxu0
        %v2074 = vadd.f32 %v1781, %v2073
        %v2075 = vand.u32 %v769, 4294901760
        %2076 = vmatprep.mubr.f32.mxu0 %v2075
        %v2077 = vand.u32 %v748, 4294901760
        %2078 = vmatmul.mubr.f32.gmra.mrb[0].mxu0 %v2077
        %v2079 = vpop.f32.mrb[0].mxu0
        %v2080 = vadd.f32 %v1791, %v2079
        %v2081 = vpop.f32.mrb[0].mxu0
        %v2082 = vadd.f32 %v1793, %v2081
        %v2083 = vand.u32 %v772, 4294901760
        %2084 = vmatprep.mubr.f32.mxu0 %v2083
        %v2085 = vand.u32 %v750, 4294901760
        %2086 = vmatmul.mubr.f32.gmra.mrb[0].mxu0 %v2085
        %v2087 = vpop.f32.mrb[0].mxu0
        %v2088 = vadd.f32 %v1803, %v2087
        %v2089 = vpop.f32.mrb[0].mxu0
        %v2090 = vadd.f32 %v1805, %v2089
        %v2091 = vand.u32 %v775, 4294901760
        %2092 = vmatprep.mubr.f32.mxu0 %v2091
        %v2093 = vand.u32 %v752, 4294901760
        %2094 = vmatmul.mubr.f32.gmra.mrb[0].mxu0 %v2093
        %v2095 = vpop.f32.mrb[0].mxu0
        %v2096 = vadd.f32 %v1815, %v2095
        %v2097 = vpop.f32.mrb[0].mxu0
        %v2098 = vadd.f32 %v1817, %v2097
        %v2099 = vand.u32 %v778, 4294901760
        %2100 = vmatprep.mubr.f32.mxu0 %v2099
        %v2101 = vand.u32 %v754, 4294901760
        %2102 = vmatmul.mubr.f32.gmra.mrb[0].mxu0 %v2101
        %v2103 = vpop.f32.mrb[0].mxu0
        %v2104 = vadd.f32 %v1827, %v2103
        %v2105 = vpop.f32.mrb[0].mxu0
        %v2106 = vadd.f32 %v1829, %v2105
        %v2107 = vand.u32 %v781, 4294901760
        %2108 = vmatprep.mubr.f32.mxu0 %v2107
        %v2109 = vand.u32 %v756, 4294901760
        %2110 = vmatmul.mubr.f32.gmra.mrb[0].mxu0 %v2109
        %v2111 = vpop.f32.mrb[0].mxu0
        %v2112 = vadd.f32 %v1839, %v2111
        %v2113 = vpop.f32.mrb[0].mxu0
        %v2114 = vadd.f32 %v1841, %v2113
        %2115 = vdwg.mxu0
        %v2116 = vand.u32 %v647, 4294901760
        %2117 = vmatprep.subr.mxu0 %v2116
        %v2118 = vand.u32 %v646, 4294901760
        %2119 = vmatpush1.msra.mxu0 %v2118
        %v2120 = vand.u32 %v651, 4294901760
        %2121 = vmatprep.subr.mxu0 %v2120
        %v2122 = vand.u32 %v650, 4294901760
        %2123 = vmatpush1.msra.mxu0 %v2122
        %v2124 = vand.u32 %v655, 4294901760
        %2125 = vmatprep.subr.mxu0 %v2124
        %v2126 = vand.u32 %v654, 4294901760
        %2127 = vmatpush1.msra.mxu0 %v2126
        %v2128 = vand.u32 %v659, 4294901760
        %2129 = vmatprep.subr.mxu0 %v2128
        %v2130 = vand.u32 %v658, 4294901760
        %2131 = vmatpush1.msra.mxu0 %v2130
        %v2132 = vand.u32 %v663, 4294901760
        %2133 = vmatprep.subr.mxu0 %v2132
        %v2134 = vand.u32 %v662, 4294901760
        %2135 = vmatpush1.msra.mxu0 %v2134
        %v2136 = vand.u32 %v667, 4294901760
        %2137 = vmatprep.subr.mxu0 %v2136
        %v2138 = vand.u32 %v666, 4294901760
        %2139 = vmatpush1.msra.mxu0 %v2138
        %v2140 = vand.u32 %v671, 4294901760
        %2141 = vmatprep.subr.mxu0 %v2140
        %v2142 = vand.u32 %v670, 4294901760
        %2143 = vmatpush1.msra.mxu0 %v2142
        %v2144 = vand.u32 %v675, 4294901760
        %2145 = vmatprep.subr.mxu0 %v2144
        %v2146 = vand.u32 %v674, 4294901760
        %2147 = vmatpush1.msra.mxu0 %v2146
        %v2148 = vand.u32 %v679, 4294901760
        %2149 = vmatprep.subr.mxu0 %v2148
        %v2150 = vand.u32 %v678, 4294901760
        %2151 = vmatpush1.msra.mxu0 %v2150
        %v2152 = vand.u32 %v683, 4294901760
        %2153 = vmatprep.subr.mxu0 %v2152
        %v2154 = vand.u32 %v682, 4294901760
        %2155 = vmatpush1.msra.mxu0 %v2154
        %v2156 = vand.u32 %v687, 4294901760
        %2157 = vmatprep.subr.mxu0 %v2156
        %v2158 = vand.u32 %v686, 4294901760
        %2159 = vmatpush1.msra.mxu0 %v2158
        %v2160 = vand.u32 %v691, 4294901760
        %2161 = vmatprep.subr.mxu0 %v2160
        %v2162 = vand.u32 %v690, 4294901760
        %2163 = vmatpush1.msra.mxu0 %v2162
        %v2164 = vand.u32 %v695, 4294901760
        %2165 = vmatprep.subr.mxu0 %v2164
        %v2166 = vand.u32 %v694, 4294901760
        %2167 = vmatpush1.msra.mxu0 %v2166
        %v2168 = vand.u32 %v699, 4294901760
        %2169 = vmatprep.subr.mxu0 %v2168
        %v2170 = vand.u32 %v698, 4294901760
        %2171 = vmatpush1.msra.mxu0 %v2170
        %v2172 = vand.u32 %v703, 4294901760
        %2173 = vmatprep.subr.mxu0 %v2172
        %v2174 = vand.u32 %v702, 4294901760
        %2175 = vmatpush1.msra.mxu0 %v2174
        %v2176 = vand.u32 %v707, 4294901760
        %2177 = vmatprep.subr.mxu0 %v2176
        %v2178 = vand.u32 %v706, 4294901760
        %2179 = vmatpush1.msra.mxu0 %v2178
        %v2180 = vand.u32 %v711, 4294901760
        %2181 = vmatprep.subr.mxu0 %v2180
        %v2182 = vand.u32 %v710, 4294901760
        %2183 = vmatpush1.msra.mxu0 %v2182
        %v2184 = vand.u32 %v715, 4294901760
        %2185 = vmatprep.subr.mxu0 %v2184
        %v2186 = vand.u32 %v714, 4294901760
        %2187 = vmatpush1.msra.mxu0 %v2186
        %v2188 = vand.u32 %v719, 4294901760
        %2189 = vmatprep.subr.mxu0 %v2188
        %v2190 = vand.u32 %v718, 4294901760
        %2191 = vmatpush1.msra.mxu0 %v2190
        %v2192 = vand.u32 %v723, 4294901760
        %2193 = vmatprep.subr.mxu0 %v2192
        %v2194 = vand.u32 %v722, 4294901760
        %2195 = vmatpush1.msra.mxu0 %v2194
        %v2196 = vand.u32 %v727, 4294901760
        %2197 = vmatprep.subr.mxu0 %v2196
        %v2198 = vand.u32 %v726, 4294901760
        %2199 = vmatpush1.msra.mxu0 %v2198
        %v2200 = vand.u32 %v731, 4294901760
        %2201 = vmatprep.subr.mxu0 %v2200
        %v2202 = vand.u32 %v730, 4294901760
        %2203 = vmatpush1.msra.mxu0 %v2202
        %v2204 = vand.u32 %v735, 4294901760
        %2205 = vmatprep.subr.mxu0 %v2204
        %v2206 = vand.u32 %v734, 4294901760
        %2207 = vmatpush1.msra.mxu0 %v2206
        %v2208 = vand.u32 %v739, 4294901760
        %2209 = vmatprep.subr.mxu0 %v2208
        %v2210 = vand.u32 %v738, 4294901760
        %2211 = vmatpush1.msra.mxu0 %v2210
        %2212 = vmatprep.subr.mxu0 0.0
        %2213 = vmatpush1.msra.mxu0 0.0
        %2214 = vmatprep.subr.mxu0 0.0
        %2215 = vmatpush1.msra.mxu0 0.0
        %2216 = vmatprep.subr.mxu0 0.0
        %2217 = vmatpush1.msra.mxu0 0.0
        %2218 = vmatprep.subr.mxu0 0.0
        %2219 = vmatpush1.msra.mxu0 0.0
        %2220 = vmatprep.subr.mxu0 0.0
        %2221 = vmatpush1.msra.mxu0 0.0
        %2222 = vmatprep.subr.mxu0 0.0
        %2223 = vmatpush1.msra.mxu0 0.0
        %2224 = vmatprep.subr.mxu0 0.0
        %2225 = vmatpush1.msra.mxu0 0.0
        %2226 = vmatprep.subr.mxu0 0.0
        %2227 = vmatpush1.msra.mxu0 0.0
        %v2228 = vand.u32 %v760, 4294901760
        %2229 = vmatprep.mubr.f32.mxu0 %v2228
        %v2230 = vand.u32 %v742, 4294901760
        %2231 = vmatmul.mubr.f32.gmra.mrb[0].mxu0 %v2230
        %v2232 = vpop.f32.mrb[0].mxu0
        %v2233 = vadd.f32 %v2056, %v2232
        %v2234 = vpop.f32.mrb[0].mxu0
        %v2235 = vadd.f32 %v2058, %v2234
        %v2236 = vand.u32 %v763, 4294901760
        %2237 = vmatprep.mubr.f32.mxu0 %v2236
        %v2238 = vand.u32 %v744, 4294901760
        %2239 = vmatmul.mubr.f32.gmra.mrb[0].mxu0 %v2238
        %v2240 = vpop.f32.mrb[0].mxu0
        %v2241 = vadd.f32 %v2064, %v2240
        %v2242 = vpop.f32.mrb[0].mxu0
        %v2243 = vadd.f32 %v2066, %v2242
        %v2244 = vand.u32 %v766, 4294901760
        %2245 = vmatprep.mubr.f32.mxu0 %v2244
        %v2246 = vand.u32 %v746, 4294901760
        %2247 = vmatmul.mubr.f32.gmra.mrb[0].mxu0 %v2246
        %v2248 = vpop.f32.mrb[0].mxu0
        %v2249 = vadd.f32 %v2072, %v2248
        %v2250 = vpop.f32.mrb[0].mxu0
        %v2251 = vadd.f32 %v2074, %v2250
        %v2252 = vand.u32 %v769, 4294901760
        %2253 = vmatprep.mubr.f32.mxu0 %v2252
        %v2254 = vand.u32 %v748, 4294901760
        %2255 = vmatmul.mubr.f32.gmra.mrb[0].mxu0 %v2254
        %v2256 = vpop.f32.mrb[0].mxu0
        %v2257 = vadd.f32 %v2080, %v2256
        %v2258 = vpop.f32.mrb[0].mxu0
        %v2259 = vadd.f32 %v2082, %v2258
        %v2260 = vand.u32 %v772, 4294901760
        %2261 = vmatprep.mubr.f32.mxu0 %v2260
        %v2262 = vand.u32 %v750, 4294901760
        %2263 = vmatmul.mubr.f32.gmra.mrb[0].mxu0 %v2262
        %v2264 = vpop.f32.mrb[0].mxu0
        %v2265 = vadd.f32 %v2088, %v2264
        %v2266 = vpop.f32.mrb[0].mxu0
        %v2267 = vadd.f32 %v2090, %v2266
        %v2268 = vand.u32 %v775, 4294901760
        %2269 = vmatprep.mubr.f32.mxu0 %v2268
        %v2270 = vand.u32 %v752, 4294901760
        %2271 = vmatmul.mubr.f32.gmra.mrb[0].mxu0 %v2270
        %v2272 = vpop.f32.mrb[0].mxu0
        %v2273 = vadd.f32 %v2096, %v2272
        %v2274 = vpop.f32.mrb[0].mxu0
        %v2275 = vadd.f32 %v2098, %v2274
        %v2276 = vand.u32 %v778, 4294901760
        %2277 = vmatprep.mubr.f32.mxu0 %v2276
        %v2278 = vand.u32 %v754, 4294901760
        %2279 = vmatmul.mubr.f32.gmra.mrb[0].mxu0 %v2278
        %v2280 = vpop.f32.mrb[0].mxu0
        %v2281 = vadd.f32 %v2104, %v2280
        %v2282 = vpop.f32.mrb[0].mxu0
        %v2283 = vadd.f32 %v2106, %v2282
        %v2284 = vand.u32 %v781, 4294901760
        %2285 = vmatprep.mubr.f32.mxu0 %v2284
        %v2286 = vand.u32 %v756, 4294901760
        %2287 = vmatmul.mubr.f32.gmra.mrb[0].mxu0 %v2286
        %v2288 = vpop.f32.mrb[0].mxu0
        %v2289 = vadd.f32 %v2112, %v2288
        %v2290 = vpop.f32.mrb[0].mxu0
        %v2291 = vadd.f32 %v2114, %v2290
        %2292 = vdwg.mxu0
        %v2293 = vand.u32 %v649, 4294901760
        %2294 = vmatprep.subr.mxu0 %v2293
        %v2295 = vand.u32 %v648, 4294901760
        %2296 = vmatpush1.msra.mxu0 %v2295
        %v2297 = vand.u32 %v653, 4294901760
        %2298 = vmatprep.subr.mxu0 %v2297
        %v2299 = vand.u32 %v652, 4294901760
        %2300 = vmatpush1.msra.mxu0 %v2299
        %v2301 = vand.u32 %v657, 4294901760
        %2302 = vmatprep.subr.mxu0 %v2301
        %v2303 = vand.u32 %v656, 4294901760
        %2304 = vmatpush1.msra.mxu0 %v2303
        %v2305 = vand.u32 %v661, 4294901760
        %2306 = vmatprep.subr.mxu0 %v2305
        %v2307 = vand.u32 %v660, 4294901760
        %2308 = vmatpush1.msra.mxu0 %v2307
        %v2309 = vand.u32 %v665, 4294901760
        %2310 = vmatprep.subr.mxu0 %v2309
        %v2311 = vand.u32 %v664, 4294901760
        %2312 = vmatpush1.msra.mxu0 %v2311
        %v2313 = vand.u32 %v669, 4294901760
        %2314 = vmatprep.subr.mxu0 %v2313
        %v2315 = vand.u32 %v668, 4294901760
        %2316 = vmatpush1.msra.mxu0 %v2315
        %v2317 = vand.u32 %v673, 4294901760
        %2318 = vmatprep.subr.mxu0 %v2317
        %v2319 = vand.u32 %v672, 4294901760
        %2320 = vmatpush1.msra.mxu0 %v2319
        %v2321 = vand.u32 %v677, 4294901760
        %2322 = vmatprep.subr.mxu0 %v2321
        %v2323 = vand.u32 %v676, 4294901760
        %2324 = vmatpush1.msra.mxu0 %v2323
        %v2325 = vand.u32 %v681, 4294901760
        %2326 = vmatprep.subr.mxu0 %v2325
        %v2327 = vand.u32 %v680, 4294901760
        %2328 = vmatpush1.msra.mxu0 %v2327
        %v2329 = vand.u32 %v685, 4294901760
        %2330 = vmatprep.subr.mxu0 %v2329
        %v2331 = vand.u32 %v684, 4294901760
        %2332 = vmatpush1.msra.mxu0 %v2331
        %v2333 = vand.u32 %v689, 4294901760
        %2334 = vmatprep.subr.mxu0 %v2333
        %v2335 = vand.u32 %v688, 4294901760
        %2336 = vmatpush1.msra.mxu0 %v2335
        %v2337 = vand.u32 %v693, 4294901760
        %2338 = vmatprep.subr.mxu0 %v2337
        %v2339 = vand.u32 %v692, 4294901760
        %2340 = vmatpush1.msra.mxu0 %v2339
        %v2341 = vand.u32 %v697, 4294901760
        %2342 = vmatprep.subr.mxu0 %v2341
        %v2343 = vand.u32 %v696, 4294901760
        %2344 = vmatpush1.msra.mxu0 %v2343
        %v2345 = vand.u32 %v701, 4294901760
        %2346 = vmatprep.subr.mxu0 %v2345
        %v2347 = vand.u32 %v700, 4294901760
        %2348 = vmatpush1.msra.mxu0 %v2347
        %v2349 = vand.u32 %v705, 4294901760
        %2350 = vmatprep.subr.mxu0 %v2349
        %v2351 = vand.u32 %v704, 4294901760
        %2352 = vmatpush1.msra.mxu0 %v2351
        %v2353 = vand.u32 %v709, 4294901760
        %2354 = vmatprep.subr.mxu0 %v2353
        %v2355 = vand.u32 %v708, 4294901760
        %2356 = vmatpush1.msra.mxu0 %v2355
        %v2357 = vand.u32 %v713, 4294901760
        %2358 = vmatprep.subr.mxu0 %v2357
        %v2359 = vand.u32 %v712, 4294901760
        %2360 = vmatpush1.msra.mxu0 %v2359
        %v2361 = vand.u32 %v717, 4294901760
        %2362 = vmatprep.subr.mxu0 %v2361
        %v2363 = vand.u32 %v716, 4294901760
        %2364 = vmatpush1.msra.mxu0 %v2363
        %v2365 = vand.u32 %v721, 4294901760
        %2366 = vmatprep.subr.mxu0 %v2365
        %v2367 = vand.u32 %v720, 4294901760
        %2368 = vmatpush1.msra.mxu0 %v2367
        %v2369 = vand.u32 %v725, 4294901760
        %2370 = vmatprep.subr.mxu0 %v2369
        %v2371 = vand.u32 %v724, 4294901760
        %2372 = vmatpush1.msra.mxu0 %v2371
        %v2373 = vand.u32 %v729, 4294901760
        %2374 = vmatprep.subr.mxu0 %v2373
        %v2375 = vand.u32 %v728, 4294901760
        %2376 = vmatpush1.msra.mxu0 %v2375
        %v2377 = vand.u32 %v733, 4294901760
        %2378 = vmatprep.subr.mxu0 %v2377
        %v2379 = vand.u32 %v732, 4294901760
        %2380 = vmatpush1.msra.mxu0 %v2379
        %v2381 = vand.u32 %v737, 4294901760
        %2382 = vmatprep.subr.mxu0 %v2381
        %v2383 = vand.u32 %v736, 4294901760
        %2384 = vmatpush1.msra.mxu0 %v2383
        %v2385 = vand.u32 %v741, 4294901760
        %2386 = vmatprep.subr.mxu0 %v2385
        %v2387 = vand.u32 %v740, 4294901760
        %2388 = vmatpush1.msra.mxu0 %v2387
        %2389 = vmatprep.subr.mxu0 0.0
        %2390 = vmatpush1.msra.mxu0 0.0
        %2391 = vmatprep.subr.mxu0 0.0
        %2392 = vmatpush1.msra.mxu0 0.0
        %2393 = vmatprep.subr.mxu0 0.0
        %2394 = vmatpush1.msra.mxu0 0.0
        %2395 = vmatprep.subr.mxu0 0.0
        %2396 = vmatpush1.msra.mxu0 0.0
        %2397 = vmatprep.subr.mxu0 0.0
        %2398 = vmatpush1.msra.mxu0 0.0
        %2399 = vmatprep.subr.mxu0 0.0
        %2400 = vmatpush1.msra.mxu0 0.0
        %2401 = vmatprep.subr.mxu0 0.0
        %2402 = vmatpush1.msra.mxu0 0.0
        %2403 = vmatprep.subr.mxu0 0.0
        %2404 = vmatpush1.msra.mxu0 0.0
        %v2405 = vand.u32 %v760, 4294901760
        %v2406 = vsub.f32 %v760, %v2405
        %v2407 = vand.u32 %v2406, 4294901760
        %v2408 = vsub.f32 %v2406, %v2407
        %v2409 = vand.u32 %v2408, 4294901760
        %2410 = vmatprep.mubr.f32.mxu0 %v2409
        %v2411 = vand.u32 %v742, 4294901760
        %v2412 = vsub.f32 %v742, %v2411
        %v2413 = vand.u32 %v2412, 4294901760
        %v2414 = vsub.f32 %v2412, %v2413
        %v2415 = vand.u32 %v2414, 4294901760
        %2416 = vmatmul.mubr.f32.gmra.mrb[0].mxu0 %v2415
        %v2417 = vpop.f32.mrb[0].mxu0
        %v2418 = vadd.f32 0.0, %v2417
        %v2419 = vpop.f32.mrb[0].mxu0
        %v2420 = vadd.f32 0.0, %v2419
        %v2421 = vand.u32 %v763, 4294901760
        %v2422 = vsub.f32 %v763, %v2421
        %v2423 = vand.u32 %v2422, 4294901760
        %v2424 = vsub.f32 %v2422, %v2423
        %v2425 = vand.u32 %v2424, 4294901760
        %2426 = vmatprep.mubr.f32.mxu0 %v2425
        %v2427 = vand.u32 %v744, 4294901760
        %v2428 = vsub.f32 %v744, %v2427
        %v2429 = vand.u32 %v2428, 4294901760
        %v2430 = vsub.f32 %v2428, %v2429
        %v2431 = vand.u32 %v2430, 4294901760
        %2432 = vmatmul.mubr.f32.gmra.mrb[0].mxu0 %v2431
        %v2433 = vpop.f32.mrb[0].mxu0
        %v2434 = vadd.f32 0.0, %v2433
        %v2435 = vpop.f32.mrb[0].mxu0
        %v2436 = vadd.f32 0.0, %v2435
        %v2437 = vand.u32 %v766, 4294901760
        %v2438 = vsub.f32 %v766, %v2437
        %v2439 = vand.u32 %v2438, 4294901760
        %v2440 = vsub.f32 %v2438, %v2439
        %v2441 = vand.u32 %v2440, 4294901760
        %2442 = vmatprep.mubr.f32.mxu0 %v2441
        %v2443 = vand.u32 %v746, 4294901760
        %v2444 = vsub.f32 %v746, %v2443
        %v2445 = vand.u32 %v2444, 4294901760
        %v2446 = vsub.f32 %v2444, %v2445
        %v2447 = vand.u32 %v2446, 4294901760
        %2448 = vmatmul.mubr.f32.gmra.mrb[0].mxu0 %v2447
        %v2449 = vpop.f32.mrb[0].mxu0
        %v2450 = vadd.f32 0.0, %v2449
        %v2451 = vpop.f32.mrb[0].mxu0
        %v2452 = vadd.f32 0.0, %v2451
        %v2453 = vand.u32 %v769, 4294901760
        %v2454 = vsub.f32 %v769, %v2453
        %v2455 = vand.u32 %v2454, 4294901760
        %v2456 = vsub.f32 %v2454, %v2455
        %v2457 = vand.u32 %v2456, 4294901760
        %2458 = vmatprep.mubr.f32.mxu0 %v2457
        %v2459 = vand.u32 %v748, 4294901760
        %v2460 = vsub.f32 %v748, %v2459
        %v2461 = vand.u32 %v2460, 4294901760
        %v2462 = vsub.f32 %v2460, %v2461
        %v2463 = vand.u32 %v2462, 4294901760
        %2464 = vmatmul.mubr.f32.gmra.mrb[0].mxu0 %v2463
        %v2465 = vpop.f32.mrb[0].mxu0
        %v2466 = vadd.f32 0.0, %v2465
        %v2467 = vpop.f32.mrb[0].mxu0
        %v2468 = vadd.f32 0.0, %v2467
        %v2469 = vand.u32 %v772, 4294901760
        %v2470 = vsub.f32 %v772, %v2469
        %v2471 = vand.u32 %v2470, 4294901760
        %v2472 = vsub.f32 %v2470, %v2471
        %v2473 = vand.u32 %v2472, 4294901760
        %2474 = vmatprep.mubr.f32.mxu0 %v2473
        %v2475 = vand.u32 %v750, 4294901760
        %v2476 = vsub.f32 %v750, %v2475
        %v2477 = vand.u32 %v2476, 4294901760
        %v2478 = vsub.f32 %v2476, %v2477
        %v2479 = vand.u32 %v2478, 4294901760
        %2480 = vmatmul.mubr.f32.gmra.mrb[0].mxu0 %v2479
        %v2481 = vpop.f32.mrb[0].mxu0
        %v2482 = vadd.f32 0.0, %v2481
        %v2483 = vpop.f32.mrb[0].mxu0
        %v2484 = vadd.f32 0.0, %v2483
        %v2485 = vand.u32 %v775, 4294901760
        %v2486 = vsub.f32 %v775, %v2485
        %v2487 = vand.u32 %v2486, 4294901760
        %v2488 = vsub.f32 %v2486, %v2487
        %v2489 = vand.u32 %v2488, 4294901760
        %2490 = vmatprep.mubr.f32.mxu0 %v2489
        %v2491 = vand.u32 %v752, 4294901760
        %v2492 = vsub.f32 %v752, %v2491
        %v2493 = vand.u32 %v2492, 4294901760
        %v2494 = vsub.f32 %v2492, %v2493
        %v2495 = vand.u32 %v2494, 4294901760
        %2496 = vmatmul.mubr.f32.gmra.mrb[0].mxu0 %v2495
        %v2497 = vpop.f32.mrb[0].mxu0
        %v2498 = vadd.f32 0.0, %v2497
        %v2499 = vpop.f32.mrb[0].mxu0
        %v2500 = vadd.f32 0.0, %v2499
        %v2501 = vand.u32 %v778, 4294901760
        %v2502 = vsub.f32 %v778, %v2501
        %v2503 = vand.u32 %v2502, 4294901760
        %v2504 = vsub.f32 %v2502, %v2503
        %v2505 = vand.u32 %v2504, 4294901760
        %2506 = vmatprep.mubr.f32.mxu0 %v2505
        %v2507 = vand.u32 %v754, 4294901760
        %v2508 = vsub.f32 %v754, %v2507
        %v2509 = vand.u32 %v2508, 4294901760
        %v2510 = vsub.f32 %v2508, %v2509
        %v2511 = vand.u32 %v2510, 4294901760
        %2512 = vmatmul.mubr.f32.gmra.mrb[0].mxu0 %v2511
        %v2513 = vpop.f32.mrb[0].mxu0
        %v2514 = vadd.f32 0.0, %v2513
        %v2515 = vpop.f32.mrb[0].mxu0
        %v2516 = vadd.f32 0.0, %v2515
        %v2517 = vand.u32 %v781, 4294901760
        %v2518 = vsub.f32 %v781, %v2517
        %v2519 = vand.u32 %v2518, 4294901760
        %v2520 = vsub.f32 %v2518, %v2519
        %v2521 = vand.u32 %v2520, 4294901760
        %2522 = vmatprep.mubr.f32.mxu0 %v2521
        %v2523 = vand.u32 %v756, 4294901760
        %v2524 = vsub.f32 %v756, %v2523
        %v2525 = vand.u32 %v2524, 4294901760
        %v2526 = vsub.f32 %v2524, %v2525
        %v2527 = vand.u32 %v2526, 4294901760
        %2528 = vmatmul.mubr.f32.gmra.mrb[0].mxu0 %v2527
        %v2529 = vpop.f32.mrb[0].mxu0
        %v2530 = vadd.f32 0.0, %v2529
        %v2531 = vpop.f32.mrb[0].mxu0
        %v2532 = vadd.f32 0.0, %v2531
        %2533 = vdwg.mxu0
        %v2534 = vand.u32 %v649, 4294901760
        %v2535 = vsub.f32 %v649, %v2534
        %v2536 = vand.u32 %v2535, 4294901760
        %v2537 = vsub.f32 %v2535, %v2536
        %v2538 = vand.u32 %v2537, 4294901760
        %2539 = vmatprep.subr.mxu0 %v2538
        %v2540 = vand.u32 %v648, 4294901760
        %v2541 = vsub.f32 %v648, %v2540
        %v2542 = vand.u32 %v2541, 4294901760
        %v2543 = vsub.f32 %v2541, %v2542
        %v2544 = vand.u32 %v2543, 4294901760
        %2545 = vmatpush1.msra.mxu0 %v2544
        %v2546 = vand.u32 %v653, 4294901760
        %v2547 = vsub.f32 %v653, %v2546
        %v2548 = vand.u32 %v2547, 4294901760
        %v2549 = vsub.f32 %v2547, %v2548
        %v2550 = vand.u32 %v2549, 4294901760
        %2551 = vmatprep.subr.mxu0 %v2550
        %v2552 = vand.u32 %v652, 4294901760
        %v2553 = vsub.f32 %v652, %v2552
        %v2554 = vand.u32 %v2553, 4294901760
        %v2555 = vsub.f32 %v2553, %v2554
        %v2556 = vand.u32 %v2555, 4294901760
        %2557 = vmatpush1.msra.mxu0 %v2556
        %v2558 = vand.u32 %v657, 4294901760
        %v2559 = vsub.f32 %v657, %v2558
        %v2560 = vand.u32 %v2559, 4294901760
        %v2561 = vsub.f32 %v2559, %v2560
        %v2562 = vand.u32 %v2561, 4294901760
        %2563 = vmatprep.subr.mxu0 %v2562
        %v2564 = vand.u32 %v656, 4294901760
        %v2565 = vsub.f32 %v656, %v2564
        %v2566 = vand.u32 %v2565, 4294901760
        %v2567 = vsub.f32 %v2565, %v2566
        %v2568 = vand.u32 %v2567, 4294901760
        %2569 = vmatpush1.msra.mxu0 %v2568
        %v2570 = vand.u32 %v661, 4294901760
        %v2571 = vsub.f32 %v661, %v2570
        %v2572 = vand.u32 %v2571, 4294901760
        %v2573 = vsub.f32 %v2571, %v2572
        %v2574 = vand.u32 %v2573, 4294901760
        %2575 = vmatprep.subr.mxu0 %v2574
        %v2576 = vand.u32 %v660, 4294901760
        %v2577 = vsub.f32 %v660, %v2576
        %v2578 = vand.u32 %v2577, 4294901760
        %v2579 = vsub.f32 %v2577, %v2578
        %v2580 = vand.u32 %v2579, 4294901760
        %2581 = vmatpush1.msra.mxu0 %v2580
        %v2582 = vand.u32 %v665, 4294901760
        %v2583 = vsub.f32 %v665, %v2582
        %v2584 = vand.u32 %v2583, 4294901760
        %v2585 = vsub.f32 %v2583, %v2584
        %v2586 = vand.u32 %v2585, 4294901760
        %2587 = vmatprep.subr.mxu0 %v2586
        %v2588 = vand.u32 %v664, 4294901760
        %v2589 = vsub.f32 %v664, %v2588
        %v2590 = vand.u32 %v2589, 4294901760
        %v2591 = vsub.f32 %v2589, %v2590
        %v2592 = vand.u32 %v2591, 4294901760
        %2593 = vmatpush1.msra.mxu0 %v2592
        %v2594 = vand.u32 %v669, 4294901760
        %v2595 = vsub.f32 %v669, %v2594
        %v2596 = vand.u32 %v2595, 4294901760
        %v2597 = vsub.f32 %v2595, %v2596
        %v2598 = vand.u32 %v2597, 4294901760
        %2599 = vmatprep.subr.mxu0 %v2598
        %v2600 = vand.u32 %v668, 4294901760
        %v2601 = vsub.f32 %v668, %v2600
        %v2602 = vand.u32 %v2601, 4294901760
        %v2603 = vsub.f32 %v2601, %v2602
        %v2604 = vand.u32 %v2603, 4294901760
        %2605 = vmatpush1.msra.mxu0 %v2604
        %v2606 = vand.u32 %v673, 4294901760
        %v2607 = vsub.f32 %v673, %v2606
        %v2608 = vand.u32 %v2607, 4294901760
        %v2609 = vsub.f32 %v2607, %v2608
        %v2610 = vand.u32 %v2609, 4294901760
        %2611 = vmatprep.subr.mxu0 %v2610
        %v2612 = vand.u32 %v672, 4294901760
        %v2613 = vsub.f32 %v672, %v2612
        %v2614 = vand.u32 %v2613, 4294901760
        %v2615 = vsub.f32 %v2613, %v2614
        %v2616 = vand.u32 %v2615, 4294901760
        %2617 = vmatpush1.msra.mxu0 %v2616
        %v2618 = vand.u32 %v677, 4294901760
        %v2619 = vsub.f32 %v677, %v2618
        %v2620 = vand.u32 %v2619, 4294901760
        %v2621 = vsub.f32 %v2619, %v2620
        %v2622 = vand.u32 %v2621, 4294901760
        %2623 = vmatprep.subr.mxu0 %v2622
        %v2624 = vand.u32 %v676, 4294901760
        %v2625 = vsub.f32 %v676, %v2624
        %v2626 = vand.u32 %v2625, 4294901760
        %v2627 = vsub.f32 %v2625, %v2626
        %v2628 = vand.u32 %v2627, 4294901760
        %2629 = vmatpush1.msra.mxu0 %v2628
        %v2630 = vand.u32 %v681, 4294901760
        %v2631 = vsub.f32 %v681, %v2630
        %v2632 = vand.u32 %v2631, 4294901760
        %v2633 = vsub.f32 %v2631, %v2632
        %v2634 = vand.u32 %v2633, 4294901760
        %2635 = vmatprep.subr.mxu0 %v2634
        %v2636 = vand.u32 %v680, 4294901760
        %v2637 = vsub.f32 %v680, %v2636
        %v2638 = vand.u32 %v2637, 4294901760
        %v2639 = vsub.f32 %v2637, %v2638
        %v2640 = vand.u32 %v2639, 4294901760
        %2641 = vmatpush1.msra.mxu0 %v2640
        %v2642 = vand.u32 %v685, 4294901760
        %v2643 = vsub.f32 %v685, %v2642
        %v2644 = vand.u32 %v2643, 4294901760
        %v2645 = vsub.f32 %v2643, %v2644
        %v2646 = vand.u32 %v2645, 4294901760
        %2647 = vmatprep.subr.mxu0 %v2646
        %v2648 = vand.u32 %v684, 4294901760
        %v2649 = vsub.f32 %v684, %v2648
        %v2650 = vand.u32 %v2649, 4294901760
        %v2651 = vsub.f32 %v2649, %v2650
        %v2652 = vand.u32 %v2651, 4294901760
        %2653 = vmatpush1.msra.mxu0 %v2652
        %v2654 = vand.u32 %v689, 4294901760
        %v2655 = vsub.f32 %v689, %v2654
        %v2656 = vand.u32 %v2655, 4294901760
        %v2657 = vsub.f32 %v2655, %v2656
        %v2658 = vand.u32 %v2657, 4294901760
        %2659 = vmatprep.subr.mxu0 %v2658
        %v2660 = vand.u32 %v688, 4294901760
        %v2661 = vsub.f32 %v688, %v2660
        %v2662 = vand.u32 %v2661, 4294901760
        %v2663 = vsub.f32 %v2661, %v2662
        %v2664 = vand.u32 %v2663, 4294901760
        %2665 = vmatpush1.msra.mxu0 %v2664
        %v2666 = vand.u32 %v693, 4294901760
        %v2667 = vsub.f32 %v693, %v2666
        %v2668 = vand.u32 %v2667, 4294901760
        %v2669 = vsub.f32 %v2667, %v2668
        %v2670 = vand.u32 %v2669, 4294901760
        %2671 = vmatprep.subr.mxu0 %v2670
        %v2672 = vand.u32 %v692, 4294901760
        %v2673 = vsub.f32 %v692, %v2672
        %v2674 = vand.u32 %v2673, 4294901760
        %v2675 = vsub.f32 %v2673, %v2674
        %v2676 = vand.u32 %v2675, 4294901760
        %2677 = vmatpush1.msra.mxu0 %v2676
        %v2678 = vand.u32 %v697, 4294901760
        %v2679 = vsub.f32 %v697, %v2678
        %v2680 = vand.u32 %v2679, 4294901760
        %v2681 = vsub.f32 %v2679, %v2680
        %v2682 = vand.u32 %v2681, 4294901760
        %2683 = vmatprep.subr.mxu0 %v2682
        %v2684 = vand.u32 %v696, 4294901760
        %v2685 = vsub.f32 %v696, %v2684
        %v2686 = vand.u32 %v2685, 4294901760
        %v2687 = vsub.f32 %v2685, %v2686
        %v2688 = vand.u32 %v2687, 4294901760
        %2689 = vmatpush1.msra.mxu0 %v2688
        %v2690 = vand.u32 %v701, 4294901760
        %v2691 = vsub.f32 %v701, %v2690
        %v2692 = vand.u32 %v2691, 4294901760
        %v2693 = vsub.f32 %v2691, %v2692
        %v2694 = vand.u32 %v2693, 4294901760
        %2695 = vmatprep.subr.mxu0 %v2694
        %v2696 = vand.u32 %v700, 4294901760
        %v2697 = vsub.f32 %v700, %v2696
        %v2698 = vand.u32 %v2697, 4294901760
        %v2699 = vsub.f32 %v2697, %v2698
        %v2700 = vand.u32 %v2699, 4294901760
        %2701 = vmatpush1.msra.mxu0 %v2700
        %v2702 = vand.u32 %v705, 4294901760
        %v2703 = vsub.f32 %v705, %v2702
        %v2704 = vand.u32 %v2703, 4294901760
        %v2705 = vsub.f32 %v2703, %v2704
        %v2706 = vand.u32 %v2705, 4294901760
        %2707 = vmatprep.subr.mxu0 %v2706
        %v2708 = vand.u32 %v704, 4294901760
        %v2709 = vsub.f32 %v704, %v2708
        %v2710 = vand.u32 %v2709, 4294901760
        %v2711 = vsub.f32 %v2709, %v2710
        %v2712 = vand.u32 %v2711, 4294901760
        %2713 = vmatpush1.msra.mxu0 %v2712
        %v2714 = vand.u32 %v709, 4294901760
        %v2715 = vsub.f32 %v709, %v2714
        %v2716 = vand.u32 %v2715, 4294901760
        %v2717 = vsub.f32 %v2715, %v2716
        %v2718 = vand.u32 %v2717, 4294901760
        %2719 = vmatprep.subr.mxu0 %v2718
        %v2720 = vand.u32 %v708, 4294901760
        %v2721 = vsub.f32 %v708, %v2720
        %v2722 = vand.u32 %v2721, 4294901760
        %v2723 = vsub.f32 %v2721, %v2722
        %v2724 = vand.u32 %v2723, 4294901760
        %2725 = vmatpush1.msra.mxu0 %v2724
        %v2726 = vand.u32 %v713, 4294901760
        %v2727 = vsub.f32 %v713, %v2726
        %v2728 = vand.u32 %v2727, 4294901760
        %v2729 = vsub.f32 %v2727, %v2728
        %v2730 = vand.u32 %v2729, 4294901760
        %2731 = vmatprep.subr.mxu0 %v2730
        %v2732 = vand.u32 %v712, 4294901760
        %v2733 = vsub.f32 %v712, %v2732
        %v2734 = vand.u32 %v2733, 4294901760
        %v2735 = vsub.f32 %v2733, %v2734
        %v2736 = vand.u32 %v2735, 4294901760
        %2737 = vmatpush1.msra.mxu0 %v2736
        %v2738 = vand.u32 %v717, 4294901760
        %v2739 = vsub.f32 %v717, %v2738
        %v2740 = vand.u32 %v2739, 4294901760
        %v2741 = vsub.f32 %v2739, %v2740
        %v2742 = vand.u32 %v2741, 4294901760
        %2743 = vmatprep.subr.mxu0 %v2742
        %v2744 = vand.u32 %v716, 4294901760
        %v2745 = vsub.f32 %v716, %v2744
        %v2746 = vand.u32 %v2745, 4294901760
        %v2747 = vsub.f32 %v2745, %v2746
        %v2748 = vand.u32 %v2747, 4294901760
        %2749 = vmatpush1.msra.mxu0 %v2748
        %v2750 = vand.u32 %v721, 4294901760
        %v2751 = vsub.f32 %v721, %v2750
        %v2752 = vand.u32 %v2751, 4294901760
        %v2753 = vsub.f32 %v2751, %v2752
        %v2754 = vand.u32 %v2753, 4294901760
        %2755 = vmatprep.subr.mxu0 %v2754
        %v2756 = vand.u32 %v720, 4294901760
        %v2757 = vsub.f32 %v720, %v2756
        %v2758 = vand.u32 %v2757, 4294901760
        %v2759 = vsub.f32 %v2757, %v2758
        %v2760 = vand.u32 %v2759, 4294901760
        %2761 = vmatpush1.msra.mxu0 %v2760
        %v2762 = vand.u32 %v725, 4294901760
        %v2763 = vsub.f32 %v725, %v2762
        %v2764 = vand.u32 %v2763, 4294901760
        %v2765 = vsub.f32 %v2763, %v2764
        %v2766 = vand.u32 %v2765, 4294901760
        %2767 = vmatprep.subr.mxu0 %v2766
        %v2768 = vand.u32 %v724, 4294901760
        %v2769 = vsub.f32 %v724, %v2768
        %v2770 = vand.u32 %v2769, 4294901760
        %v2771 = vsub.f32 %v2769, %v2770
        %v2772 = vand.u32 %v2771, 4294901760
        %2773 = vmatpush1.msra.mxu0 %v2772
        %v2774 = vand.u32 %v729, 4294901760
        %v2775 = vsub.f32 %v729, %v2774
        %v2776 = vand.u32 %v2775, 4294901760
        %v2777 = vsub.f32 %v2775, %v2776
        %v2778 = vand.u32 %v2777, 4294901760
        %2779 = vmatprep.subr.mxu0 %v2778
        %v2780 = vand.u32 %v728, 4294901760
        %v2781 = vsub.f32 %v728, %v2780
        %v2782 = vand.u32 %v2781, 4294901760
        %v2783 = vsub.f32 %v2781, %v2782
        %v2784 = vand.u32 %v2783, 4294901760
        %2785 = vmatpush1.msra.mxu0 %v2784
        %v2786 = vand.u32 %v733, 4294901760
        %v2787 = vsub.f32 %v733, %v2786
        %v2788 = vand.u32 %v2787, 4294901760
        %v2789 = vsub.f32 %v2787, %v2788
        %v2790 = vand.u32 %v2789, 4294901760
        %2791 = vmatprep.subr.mxu0 %v2790
        %v2792 = vand.u32 %v732, 4294901760
        %v2793 = vsub.f32 %v732, %v2792
        %v2794 = vand.u32 %v2793, 4294901760
        %v2795 = vsub.f32 %v2793, %v2794
        %v2796 = vand.u32 %v2795, 4294901760
        %2797 = vmatpush1.msra.mxu0 %v2796
        %v2798 = vand.u32 %v737, 4294901760
        %v2799 = vsub.f32 %v737, %v2798
        %v2800 = vand.u32 %v2799, 4294901760
        %v2801 = vsub.f32 %v2799, %v2800
        %v2802 = vand.u32 %v2801, 4294901760
        %2803 = vmatprep.subr.mxu0 %v2802
        %v2804 = vand.u32 %v736, 4294901760
        %v2805 = vsub.f32 %v736, %v2804
        %v2806 = vand.u32 %v2805, 4294901760
        %v2807 = vsub.f32 %v2805, %v2806
        %v2808 = vand.u32 %v2807, 4294901760
        %2809 = vmatpush1.msra.mxu0 %v2808
        %v2810 = vand.u32 %v741, 4294901760
        %v2811 = vsub.f32 %v741, %v2810
        %v2812 = vand.u32 %v2811, 4294901760
        %v2813 = vsub.f32 %v2811, %v2812
        %v2814 = vand.u32 %v2813, 4294901760
        %2815 = vmatprep.subr.mxu0 %v2814
        %v2816 = vand.u32 %v740, 4294901760
        %v2817 = vsub.f32 %v740, %v2816
        %v2818 = vand.u32 %v2817, 4294901760
        %v2819 = vsub.f32 %v2817, %v2818
        %v2820 = vand.u32 %v2819, 4294901760
        %2821 = vmatpush1.msra.mxu0 %v2820
        %2822 = vmatprep.subr.mxu0 0.0
        %2823 = vmatpush1.msra.mxu0 0.0
        %2824 = vmatprep.subr.mxu0 0.0
        %2825 = vmatpush1.msra.mxu0 0.0
        %2826 = vmatprep.subr.mxu0 0.0
        %2827 = vmatpush1.msra.mxu0 0.0
        %2828 = vmatprep.subr.mxu0 0.0
        %2829 = vmatpush1.msra.mxu0 0.0
        %2830 = vmatprep.subr.mxu0 0.0
        %2831 = vmatpush1.msra.mxu0 0.0
        %2832 = vmatprep.subr.mxu0 0.0
        %2833 = vmatpush1.msra.mxu0 0.0
        %2834 = vmatprep.subr.mxu0 0.0
        %2835 = vmatpush1.msra.mxu0 0.0
        %2836 = vmatprep.subr.mxu0 0.0
        %2837 = vmatpush1.msra.mxu0 0.0
        %v2838 = vand.u32 %v760, 4294901760
        %2839 = vmatprep.mubr.f32.mxu0 %v2838
        %v2840 = vand.u32 %v742, 4294901760
        %2841 = vmatmul.mubr.f32.gmra.mrb[0].mxu0 %v2840
        %v2842 = vpop.f32.mrb[0].mxu0
        %v2843 = vadd.f32 %v2418, %v2842
        %v2844 = vpop.f32.mrb[0].mxu0
        %v2845 = vadd.f32 %v2420, %v2844
        %v2846 = vand.u32 %v763, 4294901760
        %2847 = vmatprep.mubr.f32.mxu0 %v2846
        %v2848 = vand.u32 %v744, 4294901760
        %2849 = vmatmul.mubr.f32.gmra.mrb[0].mxu0 %v2848
        %v2850 = vpop.f32.mrb[0].mxu0
        %v2851 = vadd.f32 %v2434, %v2850
        %v2852 = vpop.f32.mrb[0].mxu0
        %v2853 = vadd.f32 %v2436, %v2852
        %v2854 = vand.u32 %v766, 4294901760
        %2855 = vmatprep.mubr.f32.mxu0 %v2854
        %v2856 = vand.u32 %v746, 4294901760
        %2857 = vmatmul.mubr.f32.gmra.mrb[0].mxu0 %v2856
        %v2858 = vpop.f32.mrb[0].mxu0
        %v2859 = vadd.f32 %v2450, %v2858
        %v2860 = vpop.f32.mrb[0].mxu0
        %v2861 = vadd.f32 %v2452, %v2860
        %v2862 = vand.u32 %v769, 4294901760
        %2863 = vmatprep.mubr.f32.mxu0 %v2862
        %v2864 = vand.u32 %v748, 4294901760
        %2865 = vmatmul.mubr.f32.gmra.mrb[0].mxu0 %v2864
        %v2866 = vpop.f32.mrb[0].mxu0
        %v2867 = vadd.f32 %v2466, %v2866
        %v2868 = vpop.f32.mrb[0].mxu0
        %v2869 = vadd.f32 %v2468, %v2868
        %v2870 = vand.u32 %v772, 4294901760
        %2871 = vmatprep.mubr.f32.mxu0 %v2870
        %v2872 = vand.u32 %v750, 4294901760
        %2873 = vmatmul.mubr.f32.gmra.mrb[0].mxu0 %v2872
        %v2874 = vpop.f32.mrb[0].mxu0
        %v2875 = vadd.f32 %v2482, %v2874
        %v2876 = vpop.f32.mrb[0].mxu0
        %v2877 = vadd.f32 %v2484, %v2876
        %v2878 = vand.u32 %v775, 4294901760
        %2879 = vmatprep.mubr.f32.mxu0 %v2878
        %v2880 = vand.u32 %v752, 4294901760
        %2881 = vmatmul.mubr.f32.gmra.mrb[0].mxu0 %v2880
        %v2882 = vpop.f32.mrb[0].mxu0
        %v2883 = vadd.f32 %v2498, %v2882
        %v2884 = vpop.f32.mrb[0].mxu0
        %v2885 = vadd.f32 %v2500, %v2884
        %v2886 = vand.u32 %v778, 4294901760
        %2887 = vmatprep.mubr.f32.mxu0 %v2886
        %v2888 = vand.u32 %v754, 4294901760
        %2889 = vmatmul.mubr.f32.gmra.mrb[0].mxu0 %v2888
        %v2890 = vpop.f32.mrb[0].mxu0
        %v2891 = vadd.f32 %v2514, %v2890
        %v2892 = vpop.f32.mrb[0].mxu0
        %v2893 = vadd.f32 %v2516, %v2892
        %v2894 = vand.u32 %v781, 4294901760
        %2895 = vmatprep.mubr.f32.mxu0 %v2894
        %v2896 = vand.u32 %v756, 4294901760
        %2897 = vmatmul.mubr.f32.gmra.mrb[0].mxu0 %v2896
        %v2898 = vpop.f32.mrb[0].mxu0
        %v2899 = vadd.f32 %v2530, %v2898
        %v2900 = vpop.f32.mrb[0].mxu0
        %v2901 = vadd.f32 %v2532, %v2900
        %2902 = vdwg.mxu0
        %v2903 = vand.u32 %v649, 4294901760
        %v2904 = vsub.f32 %v649, %v2903
        %2905 = vmatprep.subr.mxu0 %v2904
        %v2906 = vand.u32 %v648, 4294901760
        %v2907 = vsub.f32 %v648, %v2906
        %2908 = vmatpush1.msra.mxu0 %v2907
        %v2909 = vand.u32 %v653, 4294901760
        %v2910 = vsub.f32 %v653, %v2909
        %2911 = vmatprep.subr.mxu0 %v2910
        %v2912 = vand.u32 %v652, 4294901760
        %v2913 = vsub.f32 %v652, %v2912
        %2914 = vmatpush1.msra.mxu0 %v2913
        %v2915 = vand.u32 %v657, 4294901760
        %v2916 = vsub.f32 %v657, %v2915
        %2917 = vmatprep.subr.mxu0 %v2916
        %v2918 = vand.u32 %v656, 4294901760
        %v2919 = vsub.f32 %v656, %v2918
        %2920 = vmatpush1.msra.mxu0 %v2919
        %v2921 = vand.u32 %v661, 4294901760
        %v2922 = vsub.f32 %v661, %v2921
        %2923 = vmatprep.subr.mxu0 %v2922
        %v2924 = vand.u32 %v660, 4294901760
        %v2925 = vsub.f32 %v660, %v2924
        %2926 = vmatpush1.msra.mxu0 %v2925
        %v2927 = vand.u32 %v665, 4294901760
        %v2928 = vsub.f32 %v665, %v2927
        %2929 = vmatprep.subr.mxu0 %v2928
        %v2930 = vand.u32 %v664, 4294901760
        %v2931 = vsub.f32 %v664, %v2930
        %2932 = vmatpush1.msra.mxu0 %v2931
        %v2933 = vand.u32 %v669, 4294901760
        %v2934 = vsub.f32 %v669, %v2933
        %2935 = vmatprep.subr.mxu0 %v2934
        %v2936 = vand.u32 %v668, 4294901760
        %v2937 = vsub.f32 %v668, %v2936
        %2938 = vmatpush1.msra.mxu0 %v2937
        %v2939 = vand.u32 %v673, 4294901760
        %v2940 = vsub.f32 %v673, %v2939
        %2941 = vmatprep.subr.mxu0 %v2940
        %v2942 = vand.u32 %v672, 4294901760
        %v2943 = vsub.f32 %v672, %v2942
        %2944 = vmatpush1.msra.mxu0 %v2943
        %v2945 = vand.u32 %v677, 4294901760
        %v2946 = vsub.f32 %v677, %v2945
        %2947 = vmatprep.subr.mxu0 %v2946
        %v2948 = vand.u32 %v676, 4294901760
        %v2949 = vsub.f32 %v676, %v2948
        %2950 = vmatpush1.msra.mxu0 %v2949
        %v2951 = vand.u32 %v681, 4294901760
        %v2952 = vsub.f32 %v681, %v2951
        %2953 = vmatprep.subr.mxu0 %v2952
        %v2954 = vand.u32 %v680, 4294901760
        %v2955 = vsub.f32 %v680, %v2954
        %2956 = vmatpush1.msra.mxu0 %v2955
        %v2957 = vand.u32 %v685, 4294901760
        %v2958 = vsub.f32 %v685, %v2957
        %2959 = vmatprep.subr.mxu0 %v2958
        %v2960 = vand.u32 %v684, 4294901760
        %v2961 = vsub.f32 %v684, %v2960
        %2962 = vmatpush1.msra.mxu0 %v2961
        %v2963 = vand.u32 %v689, 4294901760
        %v2964 = vsub.f32 %v689, %v2963
        %2965 = vmatprep.subr.mxu0 %v2964
        %v2966 = vand.u32 %v688, 4294901760
        %v2967 = vsub.f32 %v688, %v2966
        %2968 = vmatpush1.msra.mxu0 %v2967
        %v2969 = vand.u32 %v693, 4294901760
        %v2970 = vsub.f32 %v693, %v2969
        %2971 = vmatprep.subr.mxu0 %v2970
        %v2972 = vand.u32 %v692, 4294901760
        %v2973 = vsub.f32 %v692, %v2972
        %2974 = vmatpush1.msra.mxu0 %v2973
        %v2975 = vand.u32 %v697, 4294901760
        %v2976 = vsub.f32 %v697, %v2975
        %2977 = vmatprep.subr.mxu0 %v2976
        %v2978 = vand.u32 %v696, 4294901760
        %v2979 = vsub.f32 %v696, %v2978
        %2980 = vmatpush1.msra.mxu0 %v2979
        %v2981 = vand.u32 %v701, 4294901760
        %v2982 = vsub.f32 %v701, %v2981
        %2983 = vmatprep.subr.mxu0 %v2982
        %v2984 = vand.u32 %v700, 4294901760
        %v2985 = vsub.f32 %v700, %v2984
        %2986 = vmatpush1.msra.mxu0 %v2985
        %v2987 = vand.u32 %v705, 4294901760
        %v2988 = vsub.f32 %v705, %v2987
        %2989 = vmatprep.subr.mxu0 %v2988
        %v2990 = vand.u32 %v704, 4294901760
        %v2991 = vsub.f32 %v704, %v2990
        %2992 = vmatpush1.msra.mxu0 %v2991
        %v2993 = vand.u32 %v709, 4294901760
        %v2994 = vsub.f32 %v709, %v2993
        %2995 = vmatprep.subr.mxu0 %v2994
        %v2996 = vand.u32 %v708, 4294901760
        %v2997 = vsub.f32 %v708, %v2996
        %2998 = vmatpush1.msra.mxu0 %v2997
        %v2999 = vand.u32 %v713, 4294901760
        %v3000 = vsub.f32 %v713, %v2999
        %3001 = vmatprep.subr.mxu0 %v3000
        %v3002 = vand.u32 %v712, 4294901760
        %v3003 = vsub.f32 %v712, %v3002
        %3004 = vmatpush1.msra.mxu0 %v3003
        %v3005 = vand.u32 %v717, 4294901760
        %v3006 = vsub.f32 %v717, %v3005
        %3007 = vmatprep.subr.mxu0 %v3006
        %v3008 = vand.u32 %v716, 4294901760
        %v3009 = vsub.f32 %v716, %v3008
        %3010 = vmatpush1.msra.mxu0 %v3009
        %v3011 = vand.u32 %v721, 4294901760
        %v3012 = vsub.f32 %v721, %v3011
        %3013 = vmatprep.subr.mxu0 %v3012
        %v3014 = vand.u32 %v720, 4294901760
        %v3015 = vsub.f32 %v720, %v3014
        %3016 = vmatpush1.msra.mxu0 %v3015
        %v3017 = vand.u32 %v725, 4294901760
        %v3018 = vsub.f32 %v725, %v3017
        %3019 = vmatprep.subr.mxu0 %v3018
        %v3020 = vand.u32 %v724, 4294901760
        %v3021 = vsub.f32 %v724, %v3020
        %3022 = vmatpush1.msra.mxu0 %v3021
        %v3023 = vand.u32 %v729, 4294901760
        %v3024 = vsub.f32 %v729, %v3023
        %3025 = vmatprep.subr.mxu0 %v3024
        %v3026 = vand.u32 %v728, 4294901760
        %v3027 = vsub.f32 %v728, %v3026
        %3028 = vmatpush1.msra.mxu0 %v3027
        %v3029 = vand.u32 %v733, 4294901760
        %v3030 = vsub.f32 %v733, %v3029
        %3031 = vmatprep.subr.mxu0 %v3030
        %v3032 = vand.u32 %v732, 4294901760
        %v3033 = vsub.f32 %v732, %v3032
        %3034 = vmatpush1.msra.mxu0 %v3033
        %v3035 = vand.u32 %v737, 4294901760
        %v3036 = vsub.f32 %v737, %v3035
        %3037 = vmatprep.subr.mxu0 %v3036
        %v3038 = vand.u32 %v736, 4294901760
        %v3039 = vsub.f32 %v736, %v3038
        %3040 = vmatpush1.msra.mxu0 %v3039
        %v3041 = vand.u32 %v741, 4294901760
        %v3042 = vsub.f32 %v741, %v3041
        %3043 = vmatprep.subr.mxu0 %v3042
        %v3044 = vand.u32 %v740, 4294901760
        %v3045 = vsub.f32 %v740, %v3044
        %3046 = vmatpush1.msra.mxu0 %v3045
        %3047 = vmatprep.subr.mxu0 0.0
        %3048 = vmatpush1.msra.mxu0 0.0
        %3049 = vmatprep.subr.mxu0 0.0
        %3050 = vmatpush1.msra.mxu0 0.0
        %3051 = vmatprep.subr.mxu0 0.0
        %3052 = vmatpush1.msra.mxu0 0.0
        %3053 = vmatprep.subr.mxu0 0.0
        %3054 = vmatpush1.msra.mxu0 0.0
        %3055 = vmatprep.subr.mxu0 0.0
        %3056 = vmatpush1.msra.mxu0 0.0
        %3057 = vmatprep.subr.mxu0 0.0
        %3058 = vmatpush1.msra.mxu0 0.0
        %3059 = vmatprep.subr.mxu0 0.0
        %3060 = vmatpush1.msra.mxu0 0.0
        %3061 = vmatprep.subr.mxu0 0.0
        %3062 = vmatpush1.msra.mxu0 0.0
        %v3063 = vand.u32 %v760, 4294901760
        %v3064 = vsub.f32 %v760, %v3063
        %3065 = vmatprep.mubr.f32.mxu0 %v3064
        %v3066 = vand.u32 %v742, 4294901760
        %v3067 = vsub.f32 %v742, %v3066
        %3068 = vmatmul.mubr.f32.gmra.mrb[0].mxu0 %v3067
        %v3069 = vpop.f32.mrb[0].mxu0
        %v3070 = vadd.f32 %v2843, %v3069
        %v3071 = vpop.f32.mrb[0].mxu0
        %v3072 = vadd.f32 %v2845, %v3071
        %v3073 = vand.u32 %v763, 4294901760
        %v3074 = vsub.f32 %v763, %v3073
        %3075 = vmatprep.mubr.f32.mxu0 %v3074
        %v3076 = vand.u32 %v744, 4294901760
        %v3077 = vsub.f32 %v744, %v3076
        %3078 = vmatmul.mubr.f32.gmra.mrb[0].mxu0 %v3077
        %v3079 = vpop.f32.mrb[0].mxu0
        %v3080 = vadd.f32 %v2851, %v3079
        %v3081 = vpop.f32.mrb[0].mxu0
        %v3082 = vadd.f32 %v2853, %v3081
        %v3083 = vand.u32 %v766, 4294901760
        %v3084 = vsub.f32 %v766, %v3083
        %3085 = vmatprep.mubr.f32.mxu0 %v3084
        %v3086 = vand.u32 %v746, 4294901760
        %v3087 = vsub.f32 %v746, %v3086
        %3088 = vmatmul.mubr.f32.gmra.mrb[0].mxu0 %v3087
        %v3089 = vpop.f32.mrb[0].mxu0
        %v3090 = vadd.f32 %v2859, %v3089
        %v3091 = vpop.f32.mrb[0].mxu0
        %v3092 = vadd.f32 %v2861, %v3091
        %v3093 = vand.u32 %v769, 4294901760
        %v3094 = vsub.f32 %v769, %v3093
        %3095 = vmatprep.mubr.f32.mxu0 %v3094
        %v3096 = vand.u32 %v748, 4294901760
        %v3097 = vsub.f32 %v748, %v3096
        %3098 = vmatmul.mubr.f32.gmra.mrb[0].mxu0 %v3097
        %v3099 = vpop.f32.mrb[0].mxu0
        %v3100 = vadd.f32 %v2867, %v3099
        %v3101 = vpop.f32.mrb[0].mxu0
        %v3102 = vadd.f32 %v2869, %v3101
        %v3103 = vand.u32 %v772, 4294901760
        %v3104 = vsub.f32 %v772, %v3103
        %3105 = vmatprep.mubr.f32.mxu0 %v3104
        %v3106 = vand.u32 %v750, 4294901760
        %v3107 = vsub.f32 %v750, %v3106
        %3108 = vmatmul.mubr.f32.gmra.mrb[0].mxu0 %v3107
        %v3109 = vpop.f32.mrb[0].mxu0
        %v3110 = vadd.f32 %v2875, %v3109
        %v3111 = vpop.f32.mrb[0].mxu0
        %v3112 = vadd.f32 %v2877, %v3111
        %v3113 = vand.u32 %v775, 4294901760
        %v3114 = vsub.f32 %v775, %v3113
        %3115 = vmatprep.mubr.f32.mxu0 %v3114
        %v3116 = vand.u32 %v752, 4294901760
        %v3117 = vsub.f32 %v752, %v3116
        %3118 = vmatmul.mubr.f32.gmra.mrb[0].mxu0 %v3117
        %v3119 = vpop.f32.mrb[0].mxu0
        %v3120 = vadd.f32 %v2883, %v3119
        %v3121 = vpop.f32.mrb[0].mxu0
        %v3122 = vadd.f32 %v2885, %v3121
        %v3123 = vand.u32 %v778, 4294901760
        %v3124 = vsub.f32 %v778, %v3123
        %3125 = vmatprep.mubr.f32.mxu0 %v3124
        %v3126 = vand.u32 %v754, 4294901760
        %v3127 = vsub.f32 %v754, %v3126
        %3128 = vmatmul.mubr.f32.gmra.mrb[0].mxu0 %v3127
        %v3129 = vpop.f32.mrb[0].mxu0
        %v3130 = vadd.f32 %v2891, %v3129
        %v3131 = vpop.f32.mrb[0].mxu0
        %v3132 = vadd.f32 %v2893, %v3131
        %v3133 = vand.u32 %v781, 4294901760
        %v3134 = vsub.f32 %v781, %v3133
        %3135 = vmatprep.mubr.f32.mxu0 %v3134
        %v3136 = vand.u32 %v756, 4294901760
        %v3137 = vsub.f32 %v756, %v3136
        %3138 = vmatmul.mubr.f32.gmra.mrb[0].mxu0 %v3137
        %v3139 = vpop.f32.mrb[0].mxu0
        %v3140 = vadd.f32 %v2899, %v3139
        %v3141 = vpop.f32.mrb[0].mxu0
        %v3142 = vadd.f32 %v2901, %v3141
        %3143 = vdwg.mxu0
        %v3144 = vand.u32 %v649, 4294901760
        %3145 = vmatprep.subr.mxu0 %v3144
        %v3146 = vand.u32 %v648, 4294901760
        %3147 = vmatpush1.msra.mxu0 %v3146
        %v3148 = vand.u32 %v653, 4294901760
        %3149 = vmatprep.subr.mxu0 %v3148
        %v3150 = vand.u32 %v652, 4294901760
        %3151 = vmatpush1.msra.mxu0 %v3150
        %v3152 = vand.u32 %v657, 4294901760
        %3153 = vmatprep.subr.mxu0 %v3152
        %v3154 = vand.u32 %v656, 4294901760
        %3155 = vmatpush1.msra.mxu0 %v3154
        %v3156 = vand.u32 %v661, 4294901760
        %3157 = vmatprep.subr.mxu0 %v3156
        %v3158 = vand.u32 %v660, 4294901760
        %3159 = vmatpush1.msra.mxu0 %v3158
        %v3160 = vand.u32 %v665, 4294901760
        %3161 = vmatprep.subr.mxu0 %v3160
        %v3162 = vand.u32 %v664, 4294901760
        %3163 = vmatpush1.msra.mxu0 %v3162
        %v3164 = vand.u32 %v669, 4294901760
        %3165 = vmatprep.subr.mxu0 %v3164
        %v3166 = vand.u32 %v668, 4294901760
        %3167 = vmatpush1.msra.mxu0 %v3166
        %v3168 = vand.u32 %v673, 4294901760
        %3169 = vmatprep.subr.mxu0 %v3168
        %v3170 = vand.u32 %v672, 4294901760
        %3171 = vmatpush1.msra.mxu0 %v3170
        %v3172 = vand.u32 %v677, 4294901760
        %3173 = vmatprep.subr.mxu0 %v3172
        %v3174 = vand.u32 %v676, 4294901760
        %3175 = vmatpush1.msra.mxu0 %v3174
        %v3176 = vand.u32 %v681, 4294901760
        %3177 = vmatprep.subr.mxu0 %v3176
        %v3178 = vand.u32 %v680, 4294901760
        %3179 = vmatpush1.msra.mxu0 %v3178
        %v3180 = vand.u32 %v685, 4294901760
        %3181 = vmatprep.subr.mxu0 %v3180
        %v3182 = vand.u32 %v684, 4294901760
        %3183 = vmatpush1.msra.mxu0 %v3182
        %v3184 = vand.u32 %v689, 4294901760
        %3185 = vmatprep.subr.mxu0 %v3184
        %v3186 = vand.u32 %v688, 4294901760
        %3187 = vmatpush1.msra.mxu0 %v3186
        %v3188 = vand.u32 %v693, 4294901760
        %3189 = vmatprep.subr.mxu0 %v3188
        %v3190 = vand.u32 %v692, 4294901760
        %3191 = vmatpush1.msra.mxu0 %v3190
        %v3192 = vand.u32 %v697, 4294901760
        %3193 = vmatprep.subr.mxu0 %v3192
        %v3194 = vand.u32 %v696, 4294901760
        %3195 = vmatpush1.msra.mxu0 %v3194
        %v3196 = vand.u32 %v701, 4294901760
        %3197 = vmatprep.subr.mxu0 %v3196
        %v3198 = vand.u32 %v700, 4294901760
        %3199 = vmatpush1.msra.mxu0 %v3198
        %v3200 = vand.u32 %v705, 4294901760
        %3201 = vmatprep.subr.mxu0 %v3200
        %v3202 = vand.u32 %v704, 4294901760
        %3203 = vmatpush1.msra.mxu0 %v3202
        %v3204 = vand.u32 %v709, 4294901760
        %3205 = vmatprep.subr.mxu0 %v3204
        %v3206 = vand.u32 %v708, 4294901760
        %3207 = vmatpush1.msra.mxu0 %v3206
        %v3208 = vand.u32 %v713, 4294901760
        %3209 = vmatprep.subr.mxu0 %v3208
        %v3210 = vand.u32 %v712, 4294901760
        %3211 = vmatpush1.msra.mxu0 %v3210
        %v3212 = vand.u32 %v717, 4294901760
        %3213 = vmatprep.subr.mxu0 %v3212
        %v3214 = vand.u32 %v716, 4294901760
        %3215 = vmatpush1.msra.mxu0 %v3214
        %v3216 = vand.u32 %v721, 4294901760
        %3217 = vmatprep.subr.mxu0 %v3216
        %v3218 = vand.u32 %v720, 4294901760
        %3219 = vmatpush1.msra.mxu0 %v3218
        %v3220 = vand.u32 %v725, 4294901760
        %3221 = vmatprep.subr.mxu0 %v3220
        %v3222 = vand.u32 %v724, 4294901760
        %3223 = vmatpush1.msra.mxu0 %v3222
        %v3224 = vand.u32 %v729, 4294901760
        %3225 = vmatprep.subr.mxu0 %v3224
        %v3226 = vand.u32 %v728, 4294901760
        %3227 = vmatpush1.msra.mxu0 %v3226
        %v3228 = vand.u32 %v733, 4294901760
        %3229 = vmatprep.subr.mxu0 %v3228
        %v3230 = vand.u32 %v732, 4294901760
        %3231 = vmatpush1.msra.mxu0 %v3230
        %v3232 = vand.u32 %v737, 4294901760
        %3233 = vmatprep.subr.mxu0 %v3232
        %v3234 = vand.u32 %v736, 4294901760
        %3235 = vmatpush1.msra.mxu0 %v3234
        %v3236 = vand.u32 %v741, 4294901760
        %3237 = vmatprep.subr.mxu0 %v3236
        %v3238 = vand.u32 %v740, 4294901760
        %3239 = vmatpush1.msra.mxu0 %v3238
        %3240 = vmatprep.subr.mxu0 0.0
        %3241 = vmatpush1.msra.mxu0 0.0
        %3242 = vmatprep.subr.mxu0 0.0
        %3243 = vmatpush1.msra.mxu0 0.0
        %3244 = vmatprep.subr.mxu0 0.0
        %3245 = vmatpush1.msra.mxu0 0.0
        %3246 = vmatprep.subr.mxu0 0.0
        %3247 = vmatpush1.msra.mxu0 0.0
        %3248 = vmatprep.subr.mxu0 0.0
        %3249 = vmatpush1.msra.mxu0 0.0
        %3250 = vmatprep.subr.mxu0 0.0
        %3251 = vmatpush1.msra.mxu0 0.0
        %3252 = vmatprep.subr.mxu0 0.0
        %3253 = vmatpush1.msra.mxu0 0.0
        %3254 = vmatprep.subr.mxu0 0.0
        %3255 = vmatpush1.msra.mxu0 0.0
        %v3256 = vand.u32 %v760, 4294901760
        %v3257 = vsub.f32 %v760, %v3256
        %v3258 = vand.u32 %v3257, 4294901760
        %3259 = vmatprep.mubr.f32.mxu0 %v3258
        %v3260 = vand.u32 %v742, 4294901760
        %v3261 = vsub.f32 %v742, %v3260
        %v3262 = vand.u32 %v3261, 4294901760
        %3263 = vmatmul.mubr.f32.gmra.mrb[0].mxu0 %v3262
        %v3264 = vpop.f32.mrb[0].mxu0
        %v3265 = vadd.f32 %v3070, %v3264
        %v3266 = vpop.f32.mrb[0].mxu0
        %v3267 = vadd.f32 %v3072, %v3266
        %v3268 = vand.u32 %v763, 4294901760
        %v3269 = vsub.f32 %v763, %v3268
        %v3270 = vand.u32 %v3269, 4294901760
        %3271 = vmatprep.mubr.f32.mxu0 %v3270
        %v3272 = vand.u32 %v744, 4294901760
        %v3273 = vsub.f32 %v744, %v3272
        %v3274 = vand.u32 %v3273, 4294901760
        %3275 = vmatmul.mubr.f32.gmra.mrb[0].mxu0 %v3274
        %v3276 = vpop.f32.mrb[0].mxu0
        %v3277 = vadd.f32 %v3080, %v3276
        %v3278 = vpop.f32.mrb[0].mxu0
        %v3279 = vadd.f32 %v3082, %v3278
        %v3280 = vand.u32 %v766, 4294901760
        %v3281 = vsub.f32 %v766, %v3280
        %v3282 = vand.u32 %v3281, 4294901760
        %3283 = vmatprep.mubr.f32.mxu0 %v3282
        %v3284 = vand.u32 %v746, 4294901760
        %v3285 = vsub.f32 %v746, %v3284
        %v3286 = vand.u32 %v3285, 4294901760
        %3287 = vmatmul.mubr.f32.gmra.mrb[0].mxu0 %v3286
        %v3288 = vpop.f32.mrb[0].mxu0
        %v3289 = vadd.f32 %v3090, %v3288
        %v3290 = vpop.f32.mrb[0].mxu0
        %v3291 = vadd.f32 %v3092, %v3290
        %v3292 = vand.u32 %v769, 4294901760
        %v3293 = vsub.f32 %v769, %v3292
        %v3294 = vand.u32 %v3293, 4294901760
        %3295 = vmatprep.mubr.f32.mxu0 %v3294
        %v3296 = vand.u32 %v748, 4294901760
        %v3297 = vsub.f32 %v748, %v3296
        %v3298 = vand.u32 %v3297, 4294901760
        %3299 = vmatmul.mubr.f32.gmra.mrb[0].mxu0 %v3298
        %v3300 = vpop.f32.mrb[0].mxu0
        %v3301 = vadd.f32 %v3100, %v3300
        %v3302 = vpop.f32.mrb[0].mxu0
        %v3303 = vadd.f32 %v3102, %v3302
        %v3304 = vand.u32 %v772, 4294901760
        %v3305 = vsub.f32 %v772, %v3304
        %v3306 = vand.u32 %v3305, 4294901760
        %3307 = vmatprep.mubr.f32.mxu0 %v3306
        %v3308 = vand.u32 %v750, 4294901760
        %v3309 = vsub.f32 %v750, %v3308
        %v3310 = vand.u32 %v3309, 4294901760
        %3311 = vmatmul.mubr.f32.gmra.mrb[0].mxu0 %v3310
        %v3312 = vpop.f32.mrb[0].mxu0
        %v3313 = vadd.f32 %v3110, %v3312
        %v3314 = vpop.f32.mrb[0].mxu0
        %v3315 = vadd.f32 %v3112, %v3314
        %v3316 = vand.u32 %v775, 4294901760
        %v3317 = vsub.f32 %v775, %v3316
        %v3318 = vand.u32 %v3317, 4294901760
        %3319 = vmatprep.mubr.f32.mxu0 %v3318
        %v3320 = vand.u32 %v752, 4294901760
        %v3321 = vsub.f32 %v752, %v3320
        %v3322 = vand.u32 %v3321, 4294901760
        %3323 = vmatmul.mubr.f32.gmra.mrb[0].mxu0 %v3322
        %v3324 = vpop.f32.mrb[0].mxu0
        %v3325 = vadd.f32 %v3120, %v3324
        %v3326 = vpop.f32.mrb[0].mxu0
        %v3327 = vadd.f32 %v3122, %v3326
        %v3328 = vand.u32 %v778, 4294901760
        %v3329 = vsub.f32 %v778, %v3328
        %v3330 = vand.u32 %v3329, 4294901760
        %3331 = vmatprep.mubr.f32.mxu0 %v3330
        %v3332 = vand.u32 %v754, 4294901760
        %v3333 = vsub.f32 %v754, %v3332
        %v3334 = vand.u32 %v3333, 4294901760
        %3335 = vmatmul.mubr.f32.gmra.mrb[0].mxu0 %v3334
        %v3336 = vpop.f32.mrb[0].mxu0
        %v3337 = vadd.f32 %v3130, %v3336
        %v3338 = vpop.f32.mrb[0].mxu0
        %v3339 = vadd.f32 %v3132, %v3338
        %v3340 = vand.u32 %v781, 4294901760
        %v3341 = vsub.f32 %v781, %v3340
        %v3342 = vand.u32 %v3341, 4294901760
        %3343 = vmatprep.mubr.f32.mxu0 %v3342
        %v3344 = vand.u32 %v756, 4294901760
        %v3345 = vsub.f32 %v756, %v3344
        %v3346 = vand.u32 %v3345, 4294901760
        %3347 = vmatmul.mubr.f32.gmra.mrb[0].mxu0 %v3346
        %v3348 = vpop.f32.mrb[0].mxu0
        %v3349 = vadd.f32 %v3140, %v3348
        %v3350 = vpop.f32.mrb[0].mxu0
        %v3351 = vadd.f32 %v3142, %v3350
        %3352 = vdwg.mxu0
        %v3353 = vand.u32 %v649, 4294901760
        %v3354 = vsub.f32 %v649, %v3353
        %v3355 = vand.u32 %v3354, 4294901760
        %3356 = vmatprep.subr.mxu0 %v3355
        %v3357 = vand.u32 %v648, 4294901760
        %v3358 = vsub.f32 %v648, %v3357
        %v3359 = vand.u32 %v3358, 4294901760
        %3360 = vmatpush1.msra.mxu0 %v3359
        %v3361 = vand.u32 %v653, 4294901760
        %v3362 = vsub.f32 %v653, %v3361
        %v3363 = vand.u32 %v3362, 4294901760
        %3364 = vmatprep.subr.mxu0 %v3363
        %v3365 = vand.u32 %v652, 4294901760
        %v3366 = vsub.f32 %v652, %v3365
        %v3367 = vand.u32 %v3366, 4294901760
        %3368 = vmatpush1.msra.mxu0 %v3367
        %v3369 = vand.u32 %v657, 4294901760
        %v3370 = vsub.f32 %v657, %v3369
        %v3371 = vand.u32 %v3370, 4294901760
        %3372 = vmatprep.subr.mxu0 %v3371
        %v3373 = vand.u32 %v656, 4294901760
        %v3374 = vsub.f32 %v656, %v3373
        %v3375 = vand.u32 %v3374, 4294901760
        %3376 = vmatpush1.msra.mxu0 %v3375
        %v3377 = vand.u32 %v661, 4294901760
        %v3378 = vsub.f32 %v661, %v3377
        %v3379 = vand.u32 %v3378, 4294901760
        %3380 = vmatprep.subr.mxu0 %v3379
        %v3381 = vand.u32 %v660, 4294901760
        %v3382 = vsub.f32 %v660, %v3381
        %v3383 = vand.u32 %v3382, 4294901760
        %3384 = vmatpush1.msra.mxu0 %v3383
        %v3385 = vand.u32 %v665, 4294901760
        %v3386 = vsub.f32 %v665, %v3385
        %v3387 = vand.u32 %v3386, 4294901760
        %3388 = vmatprep.subr.mxu0 %v3387
        %v3389 = vand.u32 %v664, 4294901760
        %v3390 = vsub.f32 %v664, %v3389
        %v3391 = vand.u32 %v3390, 4294901760
        %3392 = vmatpush1.msra.mxu0 %v3391
        %v3393 = vand.u32 %v669, 4294901760
        %v3394 = vsub.f32 %v669, %v3393
        %v3395 = vand.u32 %v3394, 4294901760
        %3396 = vmatprep.subr.mxu0 %v3395
        %v3397 = vand.u32 %v668, 4294901760
        %v3398 = vsub.f32 %v668, %v3397
        %v3399 = vand.u32 %v3398, 4294901760
        %3400 = vmatpush1.msra.mxu0 %v3399
        %v3401 = vand.u32 %v673, 4294901760
        %v3402 = vsub.f32 %v673, %v3401
        %v3403 = vand.u32 %v3402, 4294901760
        %3404 = vmatprep.subr.mxu0 %v3403
        %v3405 = vand.u32 %v672, 4294901760
        %v3406 = vsub.f32 %v672, %v3405
        %v3407 = vand.u32 %v3406, 4294901760
        %3408 = vmatpush1.msra.mxu0 %v3407
        %v3409 = vand.u32 %v677, 4294901760
        %v3410 = vsub.f32 %v677, %v3409
        %v3411 = vand.u32 %v3410, 4294901760
        %3412 = vmatprep.subr.mxu0 %v3411
        %v3413 = vand.u32 %v676, 4294901760
        %v3414 = vsub.f32 %v676, %v3413
        %v3415 = vand.u32 %v3414, 4294901760
        %3416 = vmatpush1.msra.mxu0 %v3415
        %v3417 = vand.u32 %v681, 4294901760
        %v3418 = vsub.f32 %v681, %v3417
        %v3419 = vand.u32 %v3418, 4294901760
        %3420 = vmatprep.subr.mxu0 %v3419
        %v3421 = vand.u32 %v680, 4294901760
        %v3422 = vsub.f32 %v680, %v3421
        %v3423 = vand.u32 %v3422, 4294901760
        %3424 = vmatpush1.msra.mxu0 %v3423
        %v3425 = vand.u32 %v685, 4294901760
        %v3426 = vsub.f32 %v685, %v3425
        %v3427 = vand.u32 %v3426, 4294901760
        %3428 = vmatprep.subr.mxu0 %v3427
        %v3429 = vand.u32 %v684, 4294901760
        %v3430 = vsub.f32 %v684, %v3429
        %v3431 = vand.u32 %v3430, 4294901760
        %3432 = vmatpush1.msra.mxu0 %v3431
        %v3433 = vand.u32 %v689, 4294901760
        %v3434 = vsub.f32 %v689, %v3433
        %v3435 = vand.u32 %v3434, 4294901760
        %3436 = vmatprep.subr.mxu0 %v3435
        %v3437 = vand.u32 %v688, 4294901760
        %v3438 = vsub.f32 %v688, %v3437
        %v3439 = vand.u32 %v3438, 4294901760
        %3440 = vmatpush1.msra.mxu0 %v3439
        %v3441 = vand.u32 %v693, 4294901760
        %v3442 = vsub.f32 %v693, %v3441
        %v3443 = vand.u32 %v3442, 4294901760
        %3444 = vmatprep.subr.mxu0 %v3443
        %v3445 = vand.u32 %v692, 4294901760
        %v3446 = vsub.f32 %v692, %v3445
        %v3447 = vand.u32 %v3446, 4294901760
        %3448 = vmatpush1.msra.mxu0 %v3447
        %v3449 = vand.u32 %v697, 4294901760
        %v3450 = vsub.f32 %v697, %v3449
        %v3451 = vand.u32 %v3450, 4294901760
        %3452 = vmatprep.subr.mxu0 %v3451
        %v3453 = vand.u32 %v696, 4294901760
        %v3454 = vsub.f32 %v696, %v3453
        %v3455 = vand.u32 %v3454, 4294901760
        %3456 = vmatpush1.msra.mxu0 %v3455
        %v3457 = vand.u32 %v701, 4294901760
        %v3458 = vsub.f32 %v701, %v3457
        %v3459 = vand.u32 %v3458, 4294901760
        %3460 = vmatprep.subr.mxu0 %v3459
        %v3461 = vand.u32 %v700, 4294901760
        %v3462 = vsub.f32 %v700, %v3461
        %v3463 = vand.u32 %v3462, 4294901760
        %3464 = vmatpush1.msra.mxu0 %v3463
        %v3465 = vand.u32 %v705, 4294901760
        %v3466 = vsub.f32 %v705, %v3465
        %v3467 = vand.u32 %v3466, 4294901760
        %3468 = vmatprep.subr.mxu0 %v3467
        %v3469 = vand.u32 %v704, 4294901760
        %v3470 = vsub.f32 %v704, %v3469
        %v3471 = vand.u32 %v3470, 4294901760
        %3472 = vmatpush1.msra.mxu0 %v3471
        %v3473 = vand.u32 %v709, 4294901760
        %v3474 = vsub.f32 %v709, %v3473
        %v3475 = vand.u32 %v3474, 4294901760
        %3476 = vmatprep.subr.mxu0 %v3475
        %v3477 = vand.u32 %v708, 4294901760
        %v3478 = vsub.f32 %v708, %v3477
        %v3479 = vand.u32 %v3478, 4294901760
        %3480 = vmatpush1.msra.mxu0 %v3479
        %v3481 = vand.u32 %v713, 4294901760
        %v3482 = vsub.f32 %v713, %v3481
        %v3483 = vand.u32 %v3482, 4294901760
        %3484 = vmatprep.subr.mxu0 %v3483
        %v3485 = vand.u32 %v712, 4294901760
        %v3486 = vsub.f32 %v712, %v3485
        %v3487 = vand.u32 %v3486, 4294901760
        %3488 = vmatpush1.msra.mxu0 %v3487
        %v3489 = vand.u32 %v717, 4294901760
        %v3490 = vsub.f32 %v717, %v3489
        %v3491 = vand.u32 %v3490, 4294901760
        %3492 = vmatprep.subr.mxu0 %v3491
        %v3493 = vand.u32 %v716, 4294901760
        %v3494 = vsub.f32 %v716, %v3493
        %v3495 = vand.u32 %v3494, 4294901760
        %3496 = vmatpush1.msra.mxu0 %v3495
        %v3497 = vand.u32 %v721, 4294901760
        %v3498 = vsub.f32 %v721, %v3497
        %v3499 = vand.u32 %v3498, 4294901760
        %3500 = vmatprep.subr.mxu0 %v3499
        %v3501 = vand.u32 %v720, 4294901760
        %v3502 = vsub.f32 %v720, %v3501
        %v3503 = vand.u32 %v3502, 4294901760
        %3504 = vmatpush1.msra.mxu0 %v3503
        %v3505 = vand.u32 %v725, 4294901760
        %v3506 = vsub.f32 %v725, %v3505
        %v3507 = vand.u32 %v3506, 4294901760
        %3508 = vmatprep.subr.mxu0 %v3507
        %v3509 = vand.u32 %v724, 4294901760
        %v3510 = vsub.f32 %v724, %v3509
        %v3511 = vand.u32 %v3510, 4294901760
        %3512 = vmatpush1.msra.mxu0 %v3511
        %v3513 = vand.u32 %v729, 4294901760
        %v3514 = vsub.f32 %v729, %v3513
        %v3515 = vand.u32 %v3514, 4294901760
        %3516 = vmatprep.subr.mxu0 %v3515
        %v3517 = vand.u32 %v728, 4294901760
        %v3518 = vsub.f32 %v728, %v3517
        %v3519 = vand.u32 %v3518, 4294901760
        %3520 = vmatpush1.msra.mxu0 %v3519
        %v3521 = vand.u32 %v733, 4294901760
        %v3522 = vsub.f32 %v733, %v3521
        %v3523 = vand.u32 %v3522, 4294901760
        %3524 = vmatprep.subr.mxu0 %v3523
        %v3525 = vand.u32 %v732, 4294901760
        %v3526 = vsub.f32 %v732, %v3525
        %v3527 = vand.u32 %v3526, 4294901760
        %3528 = vmatpush1.msra.mxu0 %v3527
        %v3529 = vand.u32 %v737, 4294901760
        %v3530 = vsub.f32 %v737, %v3529
        %v3531 = vand.u32 %v3530, 4294901760
        %3532 = vmatprep.subr.mxu0 %v3531
        %v3533 = vand.u32 %v736, 4294901760
        %v3534 = vsub.f32 %v736, %v3533
        %v3535 = vand.u32 %v3534, 4294901760
        %3536 = vmatpush1.msra.mxu0 %v3535
        %v3537 = vand.u32 %v741, 4294901760
        %v3538 = vsub.f32 %v741, %v3537
        %v3539 = vand.u32 %v3538, 4294901760
        %3540 = vmatprep.subr.mxu0 %v3539
        %v3541 = vand.u32 %v740, 4294901760
        %v3542 = vsub.f32 %v740, %v3541
        %v3543 = vand.u32 %v3542, 4294901760
        %3544 = vmatpush1.msra.mxu0 %v3543
        %3545 = vmatprep.subr.mxu0 0.0
        %3546 = vmatpush1.msra.mxu0 0.0
        %3547 = vmatprep.subr.mxu0 0.0
        %3548 = vmatpush1.msra.mxu0 0.0
        %3549 = vmatprep.subr.mxu0 0.0
        %3550 = vmatpush1.msra.mxu0 0.0
        %3551 = vmatprep.subr.mxu0 0.0
        %3552 = vmatpush1.msra.mxu0 0.0
        %3553 = vmatprep.subr.mxu0 0.0
        %3554 = vmatpush1.msra.mxu0 0.0
        %3555 = vmatprep.subr.mxu0 0.0
        %3556 = vmatpush1.msra.mxu0 0.0
        %3557 = vmatprep.subr.mxu0 0.0
        %3558 = vmatpush1.msra.mxu0 0.0
        %3559 = vmatprep.subr.mxu0 0.0
        %3560 = vmatpush1.msra.mxu0 0.0
        %v3561 = vand.u32 %v760, 4294901760
        %3562 = vmatprep.mubr.f32.mxu0 %v3561
        %v3563 = vand.u32 %v742, 4294901760
        %3564 = vmatmul.mubr.f32.gmra.mrb[0].mxu0 %v3563
        %v3565 = vpop.f32.mrb[0].mxu0
        %v3566 = vadd.f32 %v3265, %v3565
        %v3567 = vpop.f32.mrb[0].mxu0
        %v3568 = vadd.f32 %v3267, %v3567
        %v3569 = vand.u32 %v763, 4294901760
        %3570 = vmatprep.mubr.f32.mxu0 %v3569
        %v3571 = vand.u32 %v744, 4294901760
        %3572 = vmatmul.mubr.f32.gmra.mrb[0].mxu0 %v3571
        %v3573 = vpop.f32.mrb[0].mxu0
        %v3574 = vadd.f32 %v3277, %v3573
        %v3575 = vpop.f32.mrb[0].mxu0
        %v3576 = vadd.f32 %v3279, %v3575
        %v3577 = vand.u32 %v766, 4294901760
        %3578 = vmatprep.mubr.f32.mxu0 %v3577
        %v3579 = vand.u32 %v746, 4294901760
        %3580 = vmatmul.mubr.f32.gmra.mrb[0].mxu0 %v3579
        %v3581 = vpop.f32.mrb[0].mxu0
        %v3582 = vadd.f32 %v3289, %v3581
        %v3583 = vpop.f32.mrb[0].mxu0
        %v3584 = vadd.f32 %v3291, %v3583
        %v3585 = vand.u32 %v769, 4294901760
        %3586 = vmatprep.mubr.f32.mxu0 %v3585
        %v3587 = vand.u32 %v748, 4294901760
        %3588 = vmatmul.mubr.f32.gmra.mrb[0].mxu0 %v3587
        %v3589 = vpop.f32.mrb[0].mxu0
        %v3590 = vadd.f32 %v3301, %v3589
        %v3591 = vpop.f32.mrb[0].mxu0
        %v3592 = vadd.f32 %v3303, %v3591
        %v3593 = vand.u32 %v772, 4294901760
        %3594 = vmatprep.mubr.f32.mxu0 %v3593
        %v3595 = vand.u32 %v750, 4294901760
        %3596 = vmatmul.mubr.f32.gmra.mrb[0].mxu0 %v3595
        %v3597 = vpop.f32.mrb[0].mxu0
        %v3598 = vadd.f32 %v3313, %v3597
        %v3599 = vpop.f32.mrb[0].mxu0
        %v3600 = vadd.f32 %v3315, %v3599
        %v3601 = vand.u32 %v775, 4294901760
        %3602 = vmatprep.mubr.f32.mxu0 %v3601
        %v3603 = vand.u32 %v752, 4294901760
        %3604 = vmatmul.mubr.f32.gmra.mrb[0].mxu0 %v3603
        %v3605 = vpop.f32.mrb[0].mxu0
        %v3606 = vadd.f32 %v3325, %v3605
        %v3607 = vpop.f32.mrb[0].mxu0
        %v3608 = vadd.f32 %v3327, %v3607
        %v3609 = vand.u32 %v778, 4294901760
        %3610 = vmatprep.mubr.f32.mxu0 %v3609
        %v3611 = vand.u32 %v754, 4294901760
        %3612 = vmatmul.mubr.f32.gmra.mrb[0].mxu0 %v3611
        %v3613 = vpop.f32.mrb[0].mxu0
        %v3614 = vadd.f32 %v3337, %v3613
        %v3615 = vpop.f32.mrb[0].mxu0
        %v3616 = vadd.f32 %v3339, %v3615
        %v3617 = vand.u32 %v781, 4294901760
        %3618 = vmatprep.mubr.f32.mxu0 %v3617
        %v3619 = vand.u32 %v756, 4294901760
        %3620 = vmatmul.mubr.f32.gmra.mrb[0].mxu0 %v3619
        %v3621 = vpop.f32.mrb[0].mxu0
        %v3622 = vadd.f32 %v3349, %v3621
        %v3623 = vpop.f32.mrb[0].mxu0
        %v3624 = vadd.f32 %v3351, %v3623
        %3625 = vdwg.mxu0
        %v3626 = vand.u32 %v649, 4294901760
        %3627 = vmatprep.subr.mxu0 %v3626
        %v3628 = vand.u32 %v648, 4294901760
        %3629 = vmatpush1.msra.mxu0 %v3628
        %v3630 = vand.u32 %v653, 4294901760
        %3631 = vmatprep.subr.mxu0 %v3630
        %v3632 = vand.u32 %v652, 4294901760
        %3633 = vmatpush1.msra.mxu0 %v3632
        %v3634 = vand.u32 %v657, 4294901760
        %3635 = vmatprep.subr.mxu0 %v3634
        %v3636 = vand.u32 %v656, 4294901760
        %3637 = vmatpush1.msra.mxu0 %v3636
        %v3638 = vand.u32 %v661, 4294901760
        %3639 = vmatprep.subr.mxu0 %v3638
        %v3640 = vand.u32 %v660, 4294901760
        %3641 = vmatpush1.msra.mxu0 %v3640
        %v3642 = vand.u32 %v665, 4294901760
        %3643 = vmatprep.subr.mxu0 %v3642
        %v3644 = vand.u32 %v664, 4294901760
        %3645 = vmatpush1.msra.mxu0 %v3644
        %v3646 = vand.u32 %v669, 4294901760
        %3647 = vmatprep.subr.mxu0 %v3646
        %v3648 = vand.u32 %v668, 4294901760
        %3649 = vmatpush1.msra.mxu0 %v3648
        %v3650 = vand.u32 %v673, 4294901760
        %3651 = vmatprep.subr.mxu0 %v3650
        %v3652 = vand.u32 %v672, 4294901760
        %3653 = vmatpush1.msra.mxu0 %v3652
        %v3654 = vand.u32 %v677, 4294901760
        %3655 = vmatprep.subr.mxu0 %v3654
        %v3656 = vand.u32 %v676, 4294901760
        %3657 = vmatpush1.msra.mxu0 %v3656
        %v3658 = vand.u32 %v681, 4294901760
        %3659 = vmatprep.subr.mxu0 %v3658
        %v3660 = vand.u32 %v680, 4294901760
        %3661 = vmatpush1.msra.mxu0 %v3660
        %v3662 = vand.u32 %v685, 4294901760
        %3663 = vmatprep.subr.mxu0 %v3662
        %v3664 = vand.u32 %v684, 4294901760
        %3665 = vmatpush1.msra.mxu0 %v3664
        %v3666 = vand.u32 %v689, 4294901760
        %3667 = vmatprep.subr.mxu0 %v3666
        %v3668 = vand.u32 %v688, 4294901760
        %3669 = vmatpush1.msra.mxu0 %v3668
        %v3670 = vand.u32 %v693, 4294901760
        %3671 = vmatprep.subr.mxu0 %v3670
        %v3672 = vand.u32 %v692, 4294901760
        %3673 = vmatpush1.msra.mxu0 %v3672
        %v3674 = vand.u32 %v697, 4294901760
        %3675 = vmatprep.subr.mxu0 %v3674
        %v3676 = vand.u32 %v696, 4294901760
        %3677 = vmatpush1.msra.mxu0 %v3676
        %v3678 = vand.u32 %v701, 4294901760
        %3679 = vmatprep.subr.mxu0 %v3678
        %v3680 = vand.u32 %v700, 4294901760
        %3681 = vmatpush1.msra.mxu0 %v3680
        %v3682 = vand.u32 %v705, 4294901760
        %3683 = vmatprep.subr.mxu0 %v3682
        %v3684 = vand.u32 %v704, 4294901760
        %3685 = vmatpush1.msra.mxu0 %v3684
        %v3686 = vand.u32 %v709, 4294901760
        %3687 = vmatprep.subr.mxu0 %v3686
        %v3688 = vand.u32 %v708, 4294901760
        %3689 = vmatpush1.msra.mxu0 %v3688
        %v3690 = vand.u32 %v713, 4294901760
        %3691 = vmatprep.subr.mxu0 %v3690
        %v3692 = vand.u32 %v712, 4294901760
        %3693 = vmatpush1.msra.mxu0 %v3692
        %v3694 = vand.u32 %v717, 4294901760
        %3695 = vmatprep.subr.mxu0 %v3694
        %v3696 = vand.u32 %v716, 4294901760
        %3697 = vmatpush1.msra.mxu0 %v3696
        %v3698 = vand.u32 %v721, 4294901760
        %3699 = vmatprep.subr.mxu0 %v3698
        %v3700 = vand.u32 %v720, 4294901760
        %3701 = vmatpush1.msra.mxu0 %v3700
        %v3702 = vand.u32 %v725, 4294901760
        %3703 = vmatprep.subr.mxu0 %v3702
        %v3704 = vand.u32 %v724, 4294901760
        %3705 = vmatpush1.msra.mxu0 %v3704
        %v3706 = vand.u32 %v729, 4294901760
        %3707 = vmatprep.subr.mxu0 %v3706
        %v3708 = vand.u32 %v728, 4294901760
        %3709 = vmatpush1.msra.mxu0 %v3708
        %v3710 = vand.u32 %v733, 4294901760
        %3711 = vmatprep.subr.mxu0 %v3710
        %v3712 = vand.u32 %v732, 4294901760
        %3713 = vmatpush1.msra.mxu0 %v3712
        %v3714 = vand.u32 %v737, 4294901760
        %3715 = vmatprep.subr.mxu0 %v3714
        %v3716 = vand.u32 %v736, 4294901760
        %3717 = vmatpush1.msra.mxu0 %v3716
        %v3718 = vand.u32 %v741, 4294901760
        %3719 = vmatprep.subr.mxu0 %v3718
        %v3720 = vand.u32 %v740, 4294901760
        %3721 = vmatpush1.msra.mxu0 %v3720
        %3722 = vmatprep.subr.mxu0 0.0
        %3723 = vmatpush1.msra.mxu0 0.0
        %3724 = vmatprep.subr.mxu0 0.0
        %3725 = vmatpush1.msra.mxu0 0.0
        %3726 = vmatprep.subr.mxu0 0.0
        %3727 = vmatpush1.msra.mxu0 0.0
        %3728 = vmatprep.subr.mxu0 0.0
        %3729 = vmatpush1.msra.mxu0 0.0
        %3730 = vmatprep.subr.mxu0 0.0
        %3731 = vmatpush1.msra.mxu0 0.0
        %3732 = vmatprep.subr.mxu0 0.0
        %3733 = vmatpush1.msra.mxu0 0.0
        %3734 = vmatprep.subr.mxu0 0.0
        %3735 = vmatpush1.msra.mxu0 0.0
        %3736 = vmatprep.subr.mxu0 0.0
        %3737 = vmatpush1.msra.mxu0 0.0
        %v3738 = vand.u32 %v760, 4294901760
        %3739 = vmatprep.mubr.f32.mxu0 %v3738
        %v3740 = vand.u32 %v742, 4294901760
        %3741 = vmatmul.mubr.f32.gmra.mrb[0].mxu0 %v3740
        %v3742 = vpop.f32.mrb[0].mxu0
        %v3743 = vadd.f32 %v3566, %v3742
        %v3744 = vpop.f32.mrb[0].mxu0
        %v3745 = vadd.f32 %v3568, %v3744
        %v3746 = vand.u32 %v763, 4294901760
        %3747 = vmatprep.mubr.f32.mxu0 %v3746
        %v3748 = vand.u32 %v744, 4294901760
        %3749 = vmatmul.mubr.f32.gmra.mrb[0].mxu0 %v3748
        %v3750 = vpop.f32.mrb[0].mxu0
        %v3751 = vadd.f32 %v3574, %v3750
        %v3752 = vpop.f32.mrb[0].mxu0
        %v3753 = vadd.f32 %v3576, %v3752
        %v3754 = vand.u32 %v766, 4294901760
        %3755 = vmatprep.mubr.f32.mxu0 %v3754
        %v3756 = vand.u32 %v746, 4294901760
        %3757 = vmatmul.mubr.f32.gmra.mrb[0].mxu0 %v3756
        %v3758 = vpop.f32.mrb[0].mxu0
        %v3759 = vadd.f32 %v3582, %v3758
        %v3760 = vpop.f32.mrb[0].mxu0
        %v3761 = vadd.f32 %v3584, %v3760
        %v3762 = vand.u32 %v769, 4294901760
        %3763 = vmatprep.mubr.f32.mxu0 %v3762
        %v3764 = vand.u32 %v748, 4294901760
        %3765 = vmatmul.mubr.f32.gmra.mrb[0].mxu0 %v3764
        %v3766 = vpop.f32.mrb[0].mxu0
        %v3767 = vadd.f32 %v3590, %v3766
        %v3768 = vpop.f32.mrb[0].mxu0
        %v3769 = vadd.f32 %v3592, %v3768
        %v3770 = vand.u32 %v772, 4294901760
        %3771 = vmatprep.mubr.f32.mxu0 %v3770
        %v3772 = vand.u32 %v750, 4294901760
        %3773 = vmatmul.mubr.f32.gmra.mrb[0].mxu0 %v3772
        %v3774 = vpop.f32.mrb[0].mxu0
        %v3775 = vadd.f32 %v3598, %v3774
        %v3776 = vpop.f32.mrb[0].mxu0
        %v3777 = vadd.f32 %v3600, %v3776
        %v3778 = vand.u32 %v775, 4294901760
        %3779 = vmatprep.mubr.f32.mxu0 %v3778
        %v3780 = vand.u32 %v752, 4294901760
        %3781 = vmatmul.mubr.f32.gmra.mrb[0].mxu0 %v3780
        %v3782 = vpop.f32.mrb[0].mxu0
        %v3783 = vadd.f32 %v3606, %v3782
        %v3784 = vpop.f32.mrb[0].mxu0
        %v3785 = vadd.f32 %v3608, %v3784
        %v3786 = vand.u32 %v778, 4294901760
        %3787 = vmatprep.mubr.f32.mxu0 %v3786
        %v3788 = vand.u32 %v754, 4294901760
        %3789 = vmatmul.mubr.f32.gmra.mrb[0].mxu0 %v3788
        %v3790 = vpop.f32.mrb[0].mxu0
        %v3791 = vadd.f32 %v3614, %v3790
        %v3792 = vpop.f32.mrb[0].mxu0
        %v3793 = vadd.f32 %v3616, %v3792
        %v3794 = vand.u32 %v781, 4294901760
        %3795 = vmatprep.mubr.f32.mxu0 %v3794
        %v3796 = vand.u32 %v756, 4294901760
        %3797 = vmatmul.mubr.f32.gmra.mrb[0].mxu0 %v3796
        %v3798 = vpop.f32.mrb[0].mxu0
        %v3799 = vadd.f32 %v3622, %v3798
        %v3800 = vpop.f32.mrb[0].mxu0
        %v3801 = vadd.f32 %v3624, %v3800
        %3802 = vdwg.mxu0
        %v3803 = vmul.f32 %v2233, %v2265
        %v3804 = vmul.f32 %v2235, %v2267
        %v3805 = vmul.f32 %v3743, %v3775
        %v3806 = vmul.f32 %v3745, %v3777
        %v3807 = vmul.f32 %v2241, %v2273
        %v3808 = vmul.f32 %v2243, %v2275
        %v3809 = vmul.f32 %v3751, %v3783
        %v3810 = vmul.f32 %v3753, %v3785
        %v3811 = vmul.f32 %v2249, %v2281
        %v3812 = vmul.f32 %v2251, %v2283
        %v3813 = vmul.f32 %v3759, %v3791
        %v3814 = vmul.f32 %v3761, %v3793
        %v3815 = vmul.f32 %v2257, %v2289
        %v3816 = vmul.f32 %v2259, %v2291
        %v3817 = vmul.f32 %v3767, %v3799
        %v3818 = vmul.f32 %v3769, %v3801
        %v3819 = vadd.f32 %v3803, %v3807
        %v3820 = vadd.f32 %v3819, %v3811
        %v3821 = vadd.f32 %v3820, %v3815
        %v3822 = vrot.slane %v3821, 4
        %v3823 = vadd.f32 %v3821, %v3822
        %v3824 = vrot.slane %v3823, 2
        %v3825 = vadd.f32 %v3823, %v3824
        %v3826 = vrot.slane %v3825, 1
        %v3827 = vadd.f32 %v3825, %v3826
        %v3828 = vadd.f32 %v3804, %v3808
        %v3829 = vadd.f32 %v3828, %v3812
        %v3830 = vadd.f32 %v3829, %v3816
        %v3831 = vrot.slane %v3830, 4
        %v3832 = vadd.f32 %v3830, %v3831
        %v3833 = vrot.slane %v3832, 2
        %v3834 = vadd.f32 %v3832, %v3833
        %v3835 = vrot.slane %v3834, 1
        %v3836 = vadd.f32 %v3834, %v3835
        %v3837 = vadd.f32 %v3805, %v3809
        %v3838 = vadd.f32 %v3837, %v3813
        %v3839 = vadd.f32 %v3838, %v3817
        %v3840 = vrot.slane %v3839, 4
        %v3841 = vadd.f32 %v3839, %v3840
        %v3842 = vrot.slane %v3841, 2
        %v3843 = vadd.f32 %v3841, %v3842
        %v3844 = vrot.slane %v3843, 1
        %v3845 = vadd.f32 %v3843, %v3844
        %v3846 = vadd.f32 %v3806, %v3810
        %v3847 = vadd.f32 %v3846, %v3814
        %v3848 = vadd.f32 %v3847, %v3818
        %v3849 = vrot.slane %v3848, 4
        %v3850 = vadd.f32 %v3848, %v3849
        %v3851 = vrot.slane %v3850, 2
        %v3852 = vadd.f32 %v3850, %v3851
        %v3853 = vrot.slane %v3852, 1
        %v3854 = vadd.f32 %v3852, %v3853
        %v3859 = vcombine.low %v3827, %v3836
        %v3860 = vcombine.low %v3845, %v3854
        %v3862 = vunpack.c.l.s4 1966171168
        %v3863 = vunpack.c.0.s8 %v3862
        %v3864 = vlaneseq
        %v3865 = vshrl.u32 %v3864, 7
        %v3866 = vsub.s32 %v3863, %v3865
        %v3867 = vrot.slane %v3859, %v3866
        %v3869 = vunpack.c.l.s4 1966171168
        %v3870 = vunpack.c.0.s8 %v3869
        %v3871 = vlaneseq
        %v3872 = vshrl.u32 %v3871, 7
        %v3873 = vsub.s32 %v3870, %v3872
        %v3874 = vrot.slane %v3860, %v3873
        %v3875 = vcombine.low %v3867, %v3874
        %v3877 = vunpack.c.l.s4 1966171168
        %v3878 = vunpack.c.0.s8 %v3877
        %v3879 = vlaneseq
        %v3880 = vshrl.u32 %v3879, 7
        %v3881 = vsub.s32 %v3878, %v3880
        %v3882 = vrot.slane %v3875, %v3881
        %v3884 = vlaneseq
        %vm3885 = vcmp.ge.s32.totalorder %v3884, 0
        %vm3886 = vcmp.lt.s32.totalorder %v3884, 512
        %vm3887 = vmand %vm3885, %vm3886
        %3888 = vst.msk [vmem:[%s191] sm:$0xf] %vm3887, %v3882
        %s3889 = sand.u32 %s99, 1
        %s3890 = scalar_lea.sflag [#allocation4], %s3889
        %s3891 = sand.u32 %s99, 1
        %s3892 = smul.addr %s3891, 4
        %s3893 = scalar_lea.vmem [#allocation5], %s3892
        // Predicated region
        $region37: #{svd_mf_dot_pallas.1} parent=31 // pred_check
          %p3894 = pneg %p109
        $region38: #{svd_mf_dot_pallas.1} parent=31 // pred_check_branch
          %3896 = sbr.rel (%p3894) target = $region40
        $region39: #{svd_mf_dot_pallas.1} parent=31 // pred_region
          %s3897 = smul.u32 4, %s18
          %s3899 = ssub.s32 64, 64
          %3900 = vsyncadd %s3890, %s3899
          %s3901 = smul.addr %s3897, 16
          %s3902 = scalar_lea.hbm %s3, %s3901
          %s3904 = sshll.u32 %s3893, 4
          %s3905 = int_to_ptr.vmem [resolvable:$true] %s3904
          %3907 = dma.vmem_to_hbm [thread:$0]  %s3905, 64, %s3902, %s3890
        $region40: #{svd_mf_dot_pallas.1} parent=31 // pred_fallthru
          _
      $region32: #{svd_mf_dot_pallas.1} parent=5 // pred_fallthru
        _
      %p3908 = scmp.le.s32.totalorder 2, %s13
      // Predicated region
      $region41: #{svd_mf_dot_pallas.1} parent=5 // pred_check
        %p3909 = pneg %p3908
      $region42: #{svd_mf_dot_pallas.1} parent=5 // pred_check_branch
        %3911 = sbr.rel (%p3909) target = $region44
      $region43: #{svd_mf_dot_pallas.1} parent=5 // pred_region
        %s3912 = ssub.s32 %s13, 2
        // Predicated region
        $region45: #{svd_mf_dot_pallas.1} parent=43 // pred_check
          %p3913 = pneg %p115
        $region46: #{svd_mf_dot_pallas.1} parent=43 // pred_check_branch
          %3915 = sbr.rel (%p3913) target = $region48
        $region47: #{svd_mf_dot_pallas.1} parent=43 // pred_region
          %s3916 = sand.u32 %s100, 1
          %s3917 = scalar_lea.sflag [#allocation4], %s3916
          %s3918 = sand.u32 %s100, 1
          %s3919 = smul.addr %s3918, 4
          %s3920 = scalar_lea.vmem [#allocation5], %s3919
          %3921 = dma.done %s3917, 64
        $region48: #{svd_mf_dot_pallas.1} parent=43 // pred_fallthru
          _
      $region44: #{svd_mf_dot_pallas.1} parent=5 // pred_fallthru
        _
    $region6: #{svd_mf_dot_pallas.1} parent=1 // loop_footer
      %s17 = sadd.s32 1, %s13
    $region7: #{svd_mf_dot_pallas.1} parent=1 // loop_footer_branch
      %12 = sbr.rel target = $region3
    $region8: #{svd_mf_dot_pallas.1} parent=1 // loop_exit
      _
    %3922 = vsyncpa [#allocation3], 1
    %s3923 = scalar_lea.sflag [#allocation3], 1
    %3924 = vsyncpa %s3923, 1
    %3925 = vsyncpa [#allocation4], 1
    %s3926 = scalar_lea.sflag [#allocation4], 1
    %3927 = vsyncpa %s3926, 1

</llo_original>
